<compile_context>
chip_gen: v7x
topology: tpu7x:2x2x1
jax: 0.10.0
libtpu: 0.0.40
codegen_flags: <defaults>
</compile_context>

<pallas_src>
import functools

import jax
import jax.numpy as jnp
from jax.experimental import pallas as pl
from jax.experimental.pallas import tpu as pltpu

# ---- model dimensions (small, consistent with the module's forward) ----
BATCH = 2                     # batch size of x1 / x2
SEQ = 8                       # per-input sequence length
SEQ_TOTAL = 2 * SEQ           # concatenated pair length
B2 = BATCH * BATCH            # number of (x1_i, x2_j) pairs
HIDDEN = 32                   # bert hidden size
NUM_HEADS = 4
HEAD_DIM = HIDDEN // NUM_HEADS
FFN = 64
VOCAB = 100

VEC_ROWS = 16                 # packed bias/LN/fc slab rows (multiple of 8)
VEC_COLS = FFN                # widest packed vector (b1 is FFN wide)


def _layernorm(x, gamma, beta, eps=1e-5):
    mu = jnp.mean(x, axis=-1, keepdims=True)
    var = jnp.mean((x - mu) ** 2, axis=-1, keepdims=True)
    return (x - mu) * jax.lax.rsqrt(var + eps) * gamma + beta


def encoder_cls_kernel(x_ref, wqkvo_ref, w1_ref, w2_ref, vec_ref, out_ref):
    """One encoder layer + CLS pooling + Linear(H, 1) for all B2 pairs at once."""
    x = x_ref[...]                  # [B2*S_TOTAL, H] = [64, 32]
    w_all = wqkvo_ref[...]          # [H, 4H] = [32, 128]  (wq | wk | wv | wo)
    vec = vec_ref[...]              # [16, 64] packed biases / LN / fc params

    bq = vec[0:1, :HIDDEN]
    bk = vec[1:2, :HIDDEN]
    bv = vec[2:3, :HIDDEN]
    bo = vec[3:4, :HIDDEN]
    g1 = vec[4:5, :HIDDEN]
    bt1 = vec[5:6, :HIDDEN]
    b1 = vec[6:7, :FFN]
    b2 = vec[7:8, :HIDDEN]
    g2 = vec[8:9, :HIDDEN]
    bt2 = vec[9:10, :HIDDEN]
    wfc = vec[10:11, :HIDDEN]       # Linear(H, 1) weight stored as a row
    bfc = vec[11:12, 0:1]           # Linear(H, 1) bias

    # --- fused QKV projection on the MXU: one [64,32] x [32,128] matmul ---
    qkvo = jnp.dot(x, w_all, preferred_element_type=jnp.float32)   # [64, 128]
    q = qkvo[:, 0:HIDDEN] + bq
    k = qkvo[:, HIDDEN:2 * HIDDEN] + bk
    v = qkvo[:, 2 * HIDDEN:3 * HIDDEN] + bv
    wo = w_all[:, 3 * HIDDEN:4 * HIDDEN]                            # [H, H]

    # per-sequence view (free reshape: only the leading dim is split)
    q3 = q.reshape(B2, SEQ_TOTAL, HIDDEN)
    k3 = k.reshape(B2, SEQ_TOTAL, HIDDEN)
    v3 = v.reshape(B2, SEQ_TOTAL, HIDDEN)

    scale = 1.0 / (HEAD_DIM ** 0.5)
    attn = jnp.zeros((B2 * SEQ_TOTAL, HIDDEN), jnp.float32)
    for h in range(NUM_HEADS):      # static unroll; each iter batched over B2
        sl = slice(h * HEAD_DIM, (h + 1) * HEAD_DIM)
        qh, kh, vh = q3[:, :, sl], k3[:, :, sl], v3[:, :, sl]       # [B2, S, D]
        s = jnp.einsum('bqd,bkd->bqk', qh, kh,
                       preferred_element_type=jnp.float32) * scale  # [B2, S, S]
        s = s - jnp.max(s, axis=-1, keepdims=True)
        p = jnp.exp(s)
        p = p * pl.reciprocal(jnp.sum(p, axis=-1, keepdims=True), approx=True)
        ctx_h = jnp.einsum('bqk,bkd->bqd', p, vh,
                           preferred_element_type=jnp.float32)      # [B2, S, D]
        # Fold the output projection per head (avoids lane-concat of 8-wide
        # pieces): sum_h ctx_h @ wo[h*D:(h+1)*D, :]  ==  concat(ctx) @ wo.
        attn = attn + jnp.dot(ctx_h.reshape(B2 * SEQ_TOTAL, HEAD_DIM),
                              wo[sl, :], preferred_element_type=jnp.float32)
    attn = attn + bo

    h1 = _layernorm(x + attn, g1, bt1)

    # --- feed-forward ---
    f = jnp.dot(h1, w1_ref[...], preferred_element_type=jnp.float32) + b1
    f = jax.nn.gelu(f, approximate=True)
    f = jnp.dot(f, w2_ref[...], preferred_element_type=jnp.float32) + b2
    h2 = _layernorm(h1 + f, g2, bt2)

    # --- CLS token per pair -> Linear(H, 1); one store for all B2 scores ---
    cls = h2.reshape(B2, SEQ_TOTAL, HIDDEN)[:, 0, :]                 # [B2, H]
    scores = jnp.sum(cls * wfc, axis=-1, keepdims=True) + bfc        # [B2, 1]
    out_ref[...] = scores


def run_encoder_cls(emb_flat, wqkvo, w1, w2, vec):
    """emb_flat: [B2*S_TOTAL, H] float32 -> scores [B2, 1]."""
    vmem = pltpu.MemorySpace.VMEM
    return pl.pallas_call(
        encoder_cls_kernel,
        out_shape=jax.ShapeDtypeStruct((B2, 1), jnp.float32),
        in_specs=[pl.BlockSpec(memory_space=vmem)] * 5,
        out_specs=pl.BlockSpec(memory_space=vmem),
    )(emb_flat, wqkvo, w1, w2, vec)


def init_params(key):
    ks = jax.random.split(key, 16)

    def dense(k, shape, scale=0.02):
        return (scale * jax.random.normal(k, shape)).astype(jnp.float32)

    return {
        "tok_emb": dense(ks[0], (VOCAB, HIDDEN)),
        "pos_emb": dense(ks[1], (SEQ_TOTAL, HIDDEN)),
        "wq": dense(ks[2], (HIDDEN, HIDDEN)), "bq": jnp.zeros((1, HIDDEN), jnp.float32),
        "wk": dense(ks[3], (HIDDEN, HIDDEN)), "bk": jnp.zeros((1, HIDDEN), jnp.float32),
        "wv": dense(ks[4], (HIDDEN, HIDDEN)), "bv": jnp.zeros((1, HIDDEN), jnp.float32),
        "wo": dense(ks[5], (HIDDEN, HIDDEN)), "bo": jnp.zeros((1, HIDDEN), jnp.float32),
        "ln1_g": jnp.ones((1, HIDDEN), jnp.float32),
        "ln1_b": jnp.zeros((1, HIDDEN), jnp.float32),
        "w1": dense(ks[6], (HIDDEN, FFN)), "b1": jnp.zeros((1, FFN), jnp.float32),
        "w2": dense(ks[7], (FFN, HIDDEN)), "b2": jnp.zeros((1, HIDDEN), jnp.float32),
        "ln2_g": jnp.ones((1, HIDDEN), jnp.float32),
        "ln2_b": jnp.zeros((1, HIDDEN), jnp.float32),
        "w_fc": dense(ks[8], (HIDDEN, 1)),
        "b_fc": jnp.zeros((1, 1), jnp.float32),
    }


def pack_kernel_params(params):
    """Consolidate the 18 small weights into 4 kernel operands."""
    wqkvo = jnp.concatenate(
        [params["wq"], params["wk"], params["wv"], params["wo"]], axis=1)  # [32,128]
    vec = jnp.zeros((VEC_ROWS, VEC_COLS), jnp.float32)
    rows = [
        (0, params["bq"]), (1, params["bk"]), (2, params["bv"]), (3, params["bo"]),
        (4, params["ln1_g"]), (5, params["ln1_b"]),
        (6, params["b1"]),
        (7, params["b2"]), (8, params["ln2_g"]), (9, params["ln2_b"]),
        (10, params["w_fc"].reshape(1, HIDDEN)),
        (11, params["b_fc"]),
    ]
    for r, val in rows:
        val2 = val.reshape(1, -1)
        vec = vec.at[r:r + 1, :val2.shape[1]].set(val2)
    return wqkvo, params["w1"], params["w2"], vec


@functools.partial(jax.jit)
def cl_concat_forward(params, x1, x2):
    """Mirrors CLConcatModel.forward: pair every x1 row with every x2 row."""
    batch_size = x1.shape[0]
    # x1.repeat_interleave(batch_size, dim=0) ; x2.repeat(batch_size, 1)
    x1r = jnp.repeat(x1, batch_size, axis=0)             # [B*B, S]
    x2r = jnp.tile(x2, (batch_size, 1))                  # [B*B, S]
    x = jnp.concatenate([x1r, x2r], axis=-1)             # [B*B, 2*S]

    # embedding lookup + position embeddings (XLA glue, outside the kernel)
    emb = jnp.take(params["tok_emb"], x, axis=0) + params["pos_emb"][None, :, :]
    emb_flat = emb.reshape(batch_size * batch_size * SEQ_TOTAL,
                           HIDDEN).astype(jnp.float32)   # [64, 32]

    wqkvo, w1, w2, vec = pack_kernel_params(params)
    scores = run_encoder_cls(emb_flat, wqkvo, w1, w2, vec)   # [B*B, 1]
    return scores.reshape(-1, batch_size)                    # [B, B]


if __name__ == "__main__":
    key = jax.random.PRNGKey(0)
    k_param, k_x1, k_x2 = jax.random.split(key, 3)

    params = init_params(k_param)
    x1 = jax.random.randint(k_x1, (BATCH, SEQ), 0, VOCAB, dtype=jnp.int32)
    x2 = jax.random.randint(k_x2, (BATCH, SEQ), 0, VOCAB, dtype=jnp.int32)

    scores = cl_concat_forward(params, x1, x2)
    jax.block_until_ready(scores)
    assert scores.shape == (BATCH, BATCH), scores.shape
    assert jnp.all(jnp.isfinite(scores))
    print("KERNEL_OK")
</pallas_src>

<mosaic_0001>
module attributes {stable_mosaic.version = 11 : i64} {
  func.func @encoder_cls_kernel(%arg0: memref<64x32xf32, #tpu.memory_space<vmem>>, %arg1: memref<32x128xf32, #tpu.memory_space<vmem>>, %arg2: memref<32x64xf32, #tpu.memory_space<vmem>>, %arg3: memref<64x32xf32, #tpu.memory_space<vmem>>, %arg4: memref<16x64xf32, #tpu.memory_space<vmem>>, %arg5: memref<4x1xf32, #tpu.memory_space<vmem>>) attributes {dimension_semantics = [], scalar_prefetch = 0 : i64, scratch_operands = 0 : i64, tpu.core_type = #tpu.core_type<tc>} {
    %c0 = arith.constant 0 : index
    %c0_0 = arith.constant 0 : index
    %0 = vector.load %arg0[%c0, %c0_0] : memref<64x32xf32, #tpu.memory_space<vmem>>, vector<64x32xf32>
    %c0_1 = arith.constant 0 : index
    %c0_2 = arith.constant 0 : index
    %1 = vector.load %arg1[%c0_1, %c0_2] : memref<32x128xf32, #tpu.memory_space<vmem>>, vector<32x128xf32>
    %c0_3 = arith.constant 0 : index
    %c0_4 = arith.constant 0 : index
    %2 = vector.load %arg4[%c0_3, %c0_4] : memref<16x64xf32, #tpu.memory_space<vmem>>, vector<16x64xf32>
    %3 = vector.extract_strided_slice %2 {offsets = [0, 0], sizes = [1, 32], strides = [1, 1]} : vector<16x64xf32> to vector<1x32xf32>
    %4 = vector.extract_strided_slice %2 {offsets = [1, 0], sizes = [1, 32], strides = [1, 1]} : vector<16x64xf32> to vector<1x32xf32>
    %5 = vector.extract_strided_slice %2 {offsets = [2, 0], sizes = [1, 32], strides = [1, 1]} : vector<16x64xf32> to vector<1x32xf32>
    %6 = vector.extract_strided_slice %2 {offsets = [3, 0], sizes = [1, 32], strides = [1, 1]} : vector<16x64xf32> to vector<1x32xf32>
    %7 = vector.extract_strided_slice %2 {offsets = [4, 0], sizes = [1, 32], strides = [1, 1]} : vector<16x64xf32> to vector<1x32xf32>
    %8 = vector.extract_strided_slice %2 {offsets = [5, 0], sizes = [1, 32], strides = [1, 1]} : vector<16x64xf32> to vector<1x32xf32>
    %9 = vector.extract_strided_slice %2 {offsets = [6, 0], sizes = [1, 64], strides = [1, 1]} : vector<16x64xf32> to vector<1x64xf32>
    %10 = vector.extract_strided_slice %2 {offsets = [7, 0], sizes = [1, 32], strides = [1, 1]} : vector<16x64xf32> to vector<1x32xf32>
    %11 = vector.extract_strided_slice %2 {offsets = [8, 0], sizes = [1, 32], strides = [1, 1]} : vector<16x64xf32> to vector<1x32xf32>
    %12 = vector.extract_strided_slice %2 {offsets = [9, 0], sizes = [1, 32], strides = [1, 1]} : vector<16x64xf32> to vector<1x32xf32>
    %13 = vector.extract_strided_slice %2 {offsets = [10, 0], sizes = [1, 32], strides = [1, 1]} : vector<16x64xf32> to vector<1x32xf32>
    %14 = vector.extract_strided_slice %2 {offsets = [11, 0], sizes = [1, 1], strides = [1, 1]} : vector<16x64xf32> to vector<1x1xf32>
    %cst = arith.constant dense<0.000000e+00> : vector<64x128xf32>
    %15 = tpu.matmul %0, %1, %cst {dimension_numbers = #tpu.dot_dimension_numbers<[1], [0], [0], [1], [0, 0, 1, 1], [], []>} : vector<64x32xf32>, vector<32x128xf32>, vector<64x128xf32> -> vector<64x128xf32>
    %16 = vector.extract_strided_slice %15 {offsets = [0, 0], sizes = [64, 32], strides = [1, 1]} : vector<64x128xf32> to vector<64x32xf32>
    %17 = vector.broadcast %3 : vector<1x32xf32> to vector<64x32xf32>
    %18 = arith.addf %16, %17 : vector<64x32xf32>
    %19 = vector.extract_strided_slice %15 {offsets = [0, 32], sizes = [64, 32], strides = [1, 1]} : vector<64x128xf32> to vector<64x32xf32>
    %20 = vector.broadcast %4 : vector<1x32xf32> to vector<64x32xf32>
    %21 = arith.addf %19, %20 : vector<64x32xf32>
    %22 = vector.extract_strided_slice %15 {offsets = [0, 64], sizes = [64, 32], strides = [1, 1]} : vector<64x128xf32> to vector<64x32xf32>
    %23 = vector.broadcast %5 : vector<1x32xf32> to vector<64x32xf32>
    %24 = arith.addf %22, %23 : vector<64x32xf32>
    %25 = vector.extract_strided_slice %1 {offsets = [0, 96], sizes = [32, 32], strides = [1, 1]} : vector<32x128xf32> to vector<32x32xf32>
    %26 = vector.shape_cast %18 : vector<64x32xf32> to vector<4x16x32xf32>
    %27 = vector.shape_cast %21 : vector<64x32xf32> to vector<4x16x32xf32>
    %28 = vector.shape_cast %24 : vector<64x32xf32> to vector<4x16x32xf32>
    %cst_5 = arith.constant 0.000000e+00 : f32
    %29 = vector.broadcast %cst_5 : f32 to vector<64x32xf32>
    %30 = vector.extract_strided_slice %26 {offsets = [0, 0, 0], sizes = [4, 16, 8], strides = [1, 1, 1]} : vector<4x16x32xf32> to vector<4x16x8xf32>
    %31 = vector.extract_strided_slice %27 {offsets = [0, 0, 0], sizes = [4, 16, 8], strides = [1, 1, 1]} : vector<4x16x32xf32> to vector<4x16x8xf32>
    %32 = vector.extract_strided_slice %28 {offsets = [0, 0, 0], sizes = [4, 16, 8], strides = [1, 1, 1]} : vector<4x16x32xf32> to vector<4x16x8xf32>
    "tpu.trace_start"() <{level = 10 : i32, message = "bqd,bkd->bqk"}> : () -> ()
    %cst_6 = arith.constant dense<0.000000e+00> : vector<4x16x16xf32>
    %33 = tpu.matmul %30, %31, %cst_6 {dimension_numbers = #tpu.dot_dimension_numbers<[2], [2], [1], [1], [0, 0, 0, 1, 1, 1], [0], [0]>} : vector<4x16x8xf32>, vector<4x16x8xf32>, vector<4x16x16xf32> -> vector<4x16x16xf32>
    "tpu.trace_stop"() : () -> ()
    %cst_7 = arith.constant 0.353553385 : f32
    %34 = vector.broadcast %cst_7 : f32 to vector<4x16x16xf32>
    %35 = arith.mulf %33, %34 : vector<4x16x16xf32>
    %cst_8 = arith.constant dense<0xFF800000> : vector<4x16xf32>
    %36 = vector.multi_reduction <maximumf>, %35, %cst_8 [2] : vector<4x16x16xf32> to vector<4x16xf32>
    %37 = vector.shape_cast %36 : vector<4x16xf32> to vector<4x16x1xf32>
    %38 = vector.broadcast %37 : vector<4x16x1xf32> to vector<4x16x16xf32>
    %39 = arith.subf %35, %38 : vector<4x16x16xf32>
    %40 = math.exp %39 : vector<4x16x16xf32>
    %cst_9 = arith.constant dense<0.000000e+00> : vector<4x16xf32>
    %41 = vector.multi_reduction <add>, %40, %cst_9 [2] : vector<4x16x16xf32> to vector<4x16xf32>
    %42 = vector.shape_cast %41 : vector<4x16xf32> to vector<4x16x1xf32>
    %43 = tpu.reciprocal %42 {approx = true} : vector<4x16x1xf32> -> vector<4x16x1xf32>
    %44 = vector.broadcast %43 : vector<4x16x1xf32> to vector<4x16x16xf32>
    %45 = arith.mulf %40, %44 : vector<4x16x16xf32>
    "tpu.trace_start"() <{level = 10 : i32, message = "bqk,bkd->bqd"}> : () -> ()
    %cst_10 = arith.constant dense<0.000000e+00> : vector<4x16x8xf32>
    %46 = tpu.matmul %45, %32, %cst_10 {dimension_numbers = #tpu.dot_dimension_numbers<[2], [1], [1], [2], [0, 0, 0, 1, 1, 2], [0], [0]>} : vector<4x16x16xf32>, vector<4x16x8xf32>, vector<4x16x8xf32> -> vector<4x16x8xf32>
    "tpu.trace_stop"() : () -> ()
    %47 = vector.shape_cast %46 : vector<4x16x8xf32> to vector<64x8xf32>
    %48 = vector.extract_strided_slice %25 {offsets = [0, 0], sizes = [8, 32], strides = [1, 1]} : vector<32x32xf32> to vector<8x32xf32>
    %cst_11 = arith.constant dense<0.000000e+00> : vector<64x32xf32>
    %49 = tpu.matmul %47, %48, %cst_11 {dimension_numbers = #tpu.dot_dimension_numbers<[1], [0], [0], [1], [0, 0, 1, 1], [], []>} : vector<64x8xf32>, vector<8x32xf32>, vector<64x32xf32> -> vector<64x32xf32>
    %50 = arith.addf %29, %49 : vector<64x32xf32>
    %51 = vector.extract_strided_slice %26 {offsets = [0, 0, 8], sizes = [4, 16, 8], strides = [1, 1, 1]} : vector<4x16x32xf32> to vector<4x16x8xf32>
    %52 = vector.extract_strided_slice %27 {offsets = [0, 0, 8], sizes = [4, 16, 8], strides = [1, 1, 1]} : vector<4x16x32xf32> to vector<4x16x8xf32>
    %53 = vector.extract_strided_slice %28 {offsets = [0, 0, 8], sizes = [4, 16, 8], strides = [1, 1, 1]} : vector<4x16x32xf32> to vector<4x16x8xf32>
    "tpu.trace_start"() <{level = 10 : i32, message = "bqd,bkd->bqk"}> : () -> ()
    %cst_12 = arith.constant dense<0.000000e+00> : vector<4x16x16xf32>
    %54 = tpu.matmul %51, %52, %cst_12 {dimension_numbers = #tpu.dot_dimension_numbers<[2], [2], [1], [1], [0, 0, 0, 1, 1, 1], [0], [0]>} : vector<4x16x8xf32>, vector<4x16x8xf32>, vector<4x16x16xf32> -> vector<4x16x16xf32>
    "tpu.trace_stop"() : () -> ()
    %cst_13 = arith.constant 0.353553385 : f32
    %55 = vector.broadcast %cst_13 : f32 to vector<4x16x16xf32>
    %56 = arith.mulf %54, %55 : vector<4x16x16xf32>
    %cst_14 = arith.constant dense<0xFF800000> : vector<4x16xf32>
    %57 = vector.multi_reduction <maximumf>, %56, %cst_14 [2] : vector<4x16x16xf32> to vector<4x16xf32>
    %58 = vector.shape_cast %57 : vector<4x16xf32> to vector<4x16x1xf32>
    %59 = vector.broadcast %58 : vector<4x16x1xf32> to vector<4x16x16xf32>
    %60 = arith.subf %56, %59 : vector<4x16x16xf32>
    %61 = math.exp %60 : vector<4x16x16xf32>
    %cst_15 = arith.constant dense<0.000000e+00> : vector<4x16xf32>
    %62 = vector.multi_reduction <add>, %61, %cst_15 [2] : vector<4x16x16xf32> to vector<4x16xf32>
    %63 = vector.shape_cast %62 : vector<4x16xf32> to vector<4x16x1xf32>
    %64 = tpu.reciprocal %63 {approx = true} : vector<4x16x1xf32> -> vector<4x16x1xf32>
    %65 = vector.broadcast %64 : vector<4x16x1xf32> to vector<4x16x16xf32>
    %66 = arith.mulf %61, %65 : vector<4x16x16xf32>
    "tpu.trace_start"() <{level = 10 : i32, message = "bqk,bkd->bqd"}> : () -> ()
    %cst_16 = arith.constant dense<0.000000e+00> : vector<4x16x8xf32>
    %67 = tpu.matmul %66, %53, %cst_16 {dimension_numbers = #tpu.dot_dimension_numbers<[2], [1], [1], [2], [0, 0, 0, 1, 1, 2], [0], [0]>} : vector<4x16x16xf32>, vector<4x16x8xf32>, vector<4x16x8xf32> -> vector<4x16x8xf32>
    "tpu.trace_stop"() : () -> ()
    %68 = vector.shape_cast %67 : vector<4x16x8xf32> to vector<64x8xf32>
    %69 = vector.extract_strided_slice %25 {offsets = [8, 0], sizes = [8, 32], strides = [1, 1]} : vector<32x32xf32> to vector<8x32xf32>
    %cst_17 = arith.constant dense<0.000000e+00> : vector<64x32xf32>
    %70 = tpu.matmul %68, %69, %cst_17 {dimension_numbers = #tpu.dot_dimension_numbers<[1], [0], [0], [1], [0, 0, 1, 1], [], []>} : vector<64x8xf32>, vector<8x32xf32>, vector<64x32xf32> -> vector<64x32xf32>
    %71 = arith.addf %50, %70 : vector<64x32xf32>
    %72 = vector.extract_strided_slice %26 {offsets = [0, 0, 16], sizes = [4, 16, 8], strides = [1, 1, 1]} : vector<4x16x32xf32> to vector<4x16x8xf32>
    %73 = vector.extract_strided_slice %27 {offsets = [0, 0, 16], sizes = [4, 16, 8], strides = [1, 1, 1]} : vector<4x16x32xf32> to vector<4x16x8xf32>
    %74 = vector.extract_strided_slice %28 {offsets = [0, 0, 16], sizes = [4, 16, 8], strides = [1, 1, 1]} : vector<4x16x32xf32> to vector<4x16x8xf32>
    "tpu.trace_start"() <{level = 10 : i32, message = "bqd,bkd->bqk"}> : () -> ()
    %cst_18 = arith.constant dense<0.000000e+00> : vector<4x16x16xf32>
    %75 = tpu.matmul %72, %73, %cst_18 {dimension_numbers = #tpu.dot_dimension_numbers<[2], [2], [1], [1], [0, 0, 0, 1, 1, 1], [0], [0]>} : vector<4x16x8xf32>, vector<4x16x8xf32>, vector<4x16x16xf32> -> vector<4x16x16xf32>
    "tpu.trace_stop"() : () -> ()
    %cst_19 = arith.constant 0.353553385 : f32
    %76 = vector.broadcast %cst_19 : f32 to vector<4x16x16xf32>
    %77 = arith.mulf %75, %76 : vector<4x16x16xf32>
    %cst_20 = arith.constant dense<0xFF800000> : vector<4x16xf32>
    %78 = vector.multi_reduction <maximumf>, %77, %cst_20 [2] : vector<4x16x16xf32> to vector<4x16xf32>
    %79 = vector.shape_cast %78 : vector<4x16xf32> to vector<4x16x1xf32>
    %80 = vector.broadcast %79 : vector<4x16x1xf32> to vector<4x16x16xf32>
    %81 = arith.subf %77, %80 : vector<4x16x16xf32>
    %82 = math.exp %81 : vector<4x16x16xf32>
    %cst_21 = arith.constant dense<0.000000e+00> : vector<4x16xf32>
    %83 = vector.multi_reduction <add>, %82, %cst_21 [2] : vector<4x16x16xf32> to vector<4x16xf32>
    %84 = vector.shape_cast %83 : vector<4x16xf32> to vector<4x16x1xf32>
    %85 = tpu.reciprocal %84 {approx = true} : vector<4x16x1xf32> -> vector<4x16x1xf32>
    %86 = vector.broadcast %85 : vector<4x16x1xf32> to vector<4x16x16xf32>
    %87 = arith.mulf %82, %86 : vector<4x16x16xf32>
    "tpu.trace_start"() <{level = 10 : i32, message = "bqk,bkd->bqd"}> : () -> ()
    %cst_22 = arith.constant dense<0.000000e+00> : vector<4x16x8xf32>
    %88 = tpu.matmul %87, %74, %cst_22 {dimension_numbers = #tpu.dot_dimension_numbers<[2], [1], [1], [2], [0, 0, 0, 1, 1, 2], [0], [0]>} : vector<4x16x16xf32>, vector<4x16x8xf32>, vector<4x16x8xf32> -> vector<4x16x8xf32>
    "tpu.trace_stop"() : () -> ()
    %89 = vector.shape_cast %88 : vector<4x16x8xf32> to vector<64x8xf32>
    %90 = vector.extract_strided_slice %25 {offsets = [16, 0], sizes = [8, 32], strides = [1, 1]} : vector<32x32xf32> to vector<8x32xf32>
    %cst_23 = arith.constant dense<0.000000e+00> : vector<64x32xf32>
    %91 = tpu.matmul %89, %90, %cst_23 {dimension_numbers = #tpu.dot_dimension_numbers<[1], [0], [0], [1], [0, 0, 1, 1], [], []>} : vector<64x8xf32>, vector<8x32xf32>, vector<64x32xf32> -> vector<64x32xf32>
    %92 = arith.addf %71, %91 : vector<64x32xf32>
    %93 = vector.extract_strided_slice %26 {offsets = [0, 0, 24], sizes = [4, 16, 8], strides = [1, 1, 1]} : vector<4x16x32xf32> to vector<4x16x8xf32>
    %94 = vector.extract_strided_slice %27 {offsets = [0, 0, 24], sizes = [4, 16, 8], strides = [1, 1, 1]} : vector<4x16x32xf32> to vector<4x16x8xf32>
    %95 = vector.extract_strided_slice %28 {offsets = [0, 0, 24], sizes = [4, 16, 8], strides = [1, 1, 1]} : vector<4x16x32xf32> to vector<4x16x8xf32>
    "tpu.trace_start"() <{level = 10 : i32, message = "bqd,bkd->bqk"}> : () -> ()
    %cst_24 = arith.constant dense<0.000000e+00> : vector<4x16x16xf32>
    %96 = tpu.matmul %93, %94, %cst_24 {dimension_numbers = #tpu.dot_dimension_numbers<[2], [2], [1], [1], [0, 0, 0, 1, 1, 1], [0], [0]>} : vector<4x16x8xf32>, vector<4x16x8xf32>, vector<4x16x16xf32> -> vector<4x16x16xf32>
    "tpu.trace_stop"() : () -> ()
    %cst_25 = arith.constant 0.353553385 : f32
    %97 = vector.broadcast %cst_25 : f32 to vector<4x16x16xf32>
    %98 = arith.mulf %96, %97 : vector<4x16x16xf32>
    %cst_26 = arith.constant dense<0xFF800000> : vector<4x16xf32>
    %99 = vector.multi_reduction <maximumf>, %98, %cst_26 [2] : vector<4x16x16xf32> to vector<4x16xf32>
    %100 = vector.shape_cast %99 : vector<4x16xf32> to vector<4x16x1xf32>
    %101 = vector.broadcast %100 : vector<4x16x1xf32> to vector<4x16x16xf32>
    %102 = arith.subf %98, %101 : vector<4x16x16xf32>
    %103 = math.exp %102 : vector<4x16x16xf32>
    %cst_27 = arith.constant dense<0.000000e+00> : vector<4x16xf32>
    %104 = vector.multi_reduction <add>, %103, %cst_27 [2] : vector<4x16x16xf32> to vector<4x16xf32>
    %105 = vector.shape_cast %104 : vector<4x16xf32> to vector<4x16x1xf32>
    %106 = tpu.reciprocal %105 {approx = true} : vector<4x16x1xf32> -> vector<4x16x1xf32>
    %107 = vector.broadcast %106 : vector<4x16x1xf32> to vector<4x16x16xf32>
    %108 = arith.mulf %103, %107 : vector<4x16x16xf32>
    "tpu.trace_start"() <{level = 10 : i32, message = "bqk,bkd->bqd"}> : () -> ()
    %cst_28 = arith.constant dense<0.000000e+00> : vector<4x16x8xf32>
    %109 = tpu.matmul %108, %95, %cst_28 {dimension_numbers = #tpu.dot_dimension_numbers<[2], [1], [1], [2], [0, 0, 0, 1, 1, 2], [0], [0]>} : vector<4x16x16xf32>, vector<4x16x8xf32>, vector<4x16x8xf32> -> vector<4x16x8xf32>
    "tpu.trace_stop"() : () -> ()
    %110 = vector.shape_cast %109 : vector<4x16x8xf32> to vector<64x8xf32>
    %111 = vector.extract_strided_slice %25 {offsets = [24, 0], sizes = [8, 32], strides = [1, 1]} : vector<32x32xf32> to vector<8x32xf32>
    %cst_29 = arith.constant dense<0.000000e+00> : vector<64x32xf32>
    %112 = tpu.matmul %110, %111, %cst_29 {dimension_numbers = #tpu.dot_dimension_numbers<[1], [0], [0], [1], [0, 0, 1, 1], [], []>} : vector<64x8xf32>, vector<8x32xf32>, vector<64x32xf32> -> vector<64x32xf32>
    %113 = arith.addf %92, %112 : vector<64x32xf32>
    %114 = vector.broadcast %6 : vector<1x32xf32> to vector<64x32xf32>
    %115 = arith.addf %113, %114 : vector<64x32xf32>
    %116 = arith.addf %0, %115 : vector<64x32xf32>
    %cst_30 = arith.constant dense<0.000000e+00> : vector<64xf32>
    %117 = vector.multi_reduction <add>, %116, %cst_30 [1] : vector<64x32xf32> to vector<64xf32>
    %118 = vector.shape_cast %117 : vector<64xf32> to vector<64x1xf32>
    %cst_31 = arith.constant 3.200000e+01 : f32
    %119 = vector.broadcast %cst_31 : f32 to vector<64x1xf32>
    %120 = arith.divf %118, %119 : vector<64x1xf32>
    %121 = vector.broadcast %120 : vector<64x1xf32> to vector<64x32xf32>
    %122 = arith.subf %116, %121 : vector<64x32xf32>
    %123 = arith.mulf %122, %122 : vector<64x32xf32>
    %cst_32 = arith.constant dense<0.000000e+00> : vector<64xf32>
    %124 = vector.multi_reduction <add>, %123, %cst_32 [1] : vector<64x32xf32> to vector<64xf32>
    %125 = vector.shape_cast %124 : vector<64xf32> to vector<64x1xf32>
    %cst_33 = arith.constant 3.200000e+01 : f32
    %126 = vector.broadcast %cst_33 : f32 to vector<64x1xf32>
    %127 = arith.divf %125, %126 : vector<64x1xf32>
    %128 = vector.broadcast %120 : vector<64x1xf32> to vector<64x32xf32>
    %129 = arith.subf %116, %128 : vector<64x32xf32>
    %cst_34 = arith.constant 9.99999974E-6 : f32
    %130 = vector.broadcast %cst_34 : f32 to vector<64x1xf32>
    %131 = arith.addf %127, %130 : vector<64x1xf32>
    %132 = math.rsqrt %131 : vector<64x1xf32>
    %133 = vector.broadcast %132 : vector<64x1xf32> to vector<64x32xf32>
    %134 = arith.mulf %129, %133 : vector<64x32xf32>
    %135 = vector.broadcast %7 : vector<1x32xf32> to vector<64x32xf32>
    %136 = arith.mulf %134, %135 : vector<64x32xf32>
    %137 = vector.broadcast %8 : vector<1x32xf32> to vector<64x32xf32>
    %138 = arith.addf %136, %137 : vector<64x32xf32>
    %c0_35 = arith.constant 0 : index
    %c0_36 = arith.constant 0 : index
    %139 = vector.load %arg2[%c0_35, %c0_36] : memref<32x64xf32, #tpu.memory_space<vmem>>, vector<32x64xf32>
    %cst_37 = arith.constant dense<0.000000e+00> : vector<64x64xf32>
    %140 = tpu.matmul %138, %139, %cst_37 {dimension_numbers = #tpu.dot_dimension_numbers<[1], [0], [0], [1], [0, 0, 1, 1], [], []>} : vector<64x32xf32>, vector<32x64xf32>, vector<64x64xf32> -> vector<64x64xf32>
    %141 = vector.broadcast %9 : vector<1x64xf32> to vector<64x64xf32>
    %142 = arith.addf %140, %141 : vector<64x64xf32>
    %143 = arith.mulf %142, %142 : vector<64x64xf32>
    %144 = arith.mulf %142, %143 : vector<64x64xf32>
    %cst_38 = arith.constant 4.471500e-02 : f32
    %145 = vector.broadcast %cst_38 : f32 to vector<64x64xf32>
    %146 = arith.mulf %145, %144 : vector<64x64xf32>
    %147 = arith.addf %142, %146 : vector<64x64xf32>
    %cst_39 = arith.constant 0.797884583 : f32
    %148 = vector.broadcast %cst_39 : f32 to vector<64x64xf32>
    %149 = arith.mulf %148, %147 : vector<64x64xf32>
    %150 = math.tanh %149 : vector<64x64xf32>
    %cst_40 = arith.constant 1.000000e+00 : f32
    %151 = vector.broadcast %cst_40 : f32 to vector<64x64xf32>
    %152 = arith.addf %151, %150 : vector<64x64xf32>
    %cst_41 = arith.constant 5.000000e-01 : f32
    %153 = vector.broadcast %cst_41 : f32 to vector<64x64xf32>
    %154 = arith.mulf %153, %152 : vector<64x64xf32>
    %155 = arith.mulf %142, %154 : vector<64x64xf32>
    %c0_42 = arith.constant 0 : index
    %c0_43 = arith.constant 0 : index
    %156 = vector.load %arg3[%c0_42, %c0_43] : memref<64x32xf32, #tpu.memory_space<vmem>>, vector<64x32xf32>
    %cst_44 = arith.constant dense<0.000000e+00> : vector<64x32xf32>
    %157 = tpu.matmul %155, %156, %cst_44 {dimension_numbers = #tpu.dot_dimension_numbers<[1], [0], [0], [1], [0, 0, 1, 1], [], []>} : vector<64x64xf32>, vector<64x32xf32>, vector<64x32xf32> -> vector<64x32xf32>
    %158 = vector.broadcast %10 : vector<1x32xf32> to vector<64x32xf32>
    %159 = arith.addf %157, %158 : vector<64x32xf32>
    %160 = arith.addf %138, %159 : vector<64x32xf32>
    %cst_45 = arith.constant dense<0.000000e+00> : vector<64xf32>
    %161 = vector.multi_reduction <add>, %160, %cst_45 [1] : vector<64x32xf32> to vector<64xf32>
    %162 = vector.shape_cast %161 : vector<64xf32> to vector<64x1xf32>
    %cst_46 = arith.constant 3.200000e+01 : f32
    %163 = vector.broadcast %cst_46 : f32 to vector<64x1xf32>
    %164 = arith.divf %162, %163 : vector<64x1xf32>
    %165 = vector.broadcast %164 : vector<64x1xf32> to vector<64x32xf32>
    %166 = arith.subf %160, %165 : vector<64x32xf32>
    %167 = arith.mulf %166, %166 : vector<64x32xf32>
    %cst_47 = arith.constant dense<0.000000e+00> : vector<64xf32>
    %168 = vector.multi_reduction <add>, %167, %cst_47 [1] : vector<64x32xf32> to vector<64xf32>
    %169 = vector.shape_cast %168 : vector<64xf32> to vector<64x1xf32>
    %cst_48 = arith.constant 3.200000e+01 : f32
    %170 = vector.broadcast %cst_48 : f32 to vector<64x1xf32>
    %171 = arith.divf %169, %170 : vector<64x1xf32>
    %172 = vector.broadcast %164 : vector<64x1xf32> to vector<64x32xf32>
    %173 = arith.subf %160, %172 : vector<64x32xf32>
    %cst_49 = arith.constant 9.99999974E-6 : f32
    %174 = vector.broadcast %cst_49 : f32 to vector<64x1xf32>
    %175 = arith.addf %171, %174 : vector<64x1xf32>
    %176 = math.rsqrt %175 : vector<64x1xf32>
    %177 = vector.broadcast %176 : vector<64x1xf32> to vector<64x32xf32>
    %178 = arith.mulf %173, %177 : vector<64x32xf32>
    %179 = vector.broadcast %11 : vector<1x32xf32> to vector<64x32xf32>
    %180 = arith.mulf %178, %179 : vector<64x32xf32>
    %181 = vector.broadcast %12 : vector<1x32xf32> to vector<64x32xf32>
    %182 = arith.addf %180, %181 : vector<64x32xf32>
    %183 = vector.shape_cast %182 : vector<64x32xf32> to vector<4x16x32xf32>
    %184 = vector.extract_strided_slice %183 {offsets = [0, 0, 0], sizes = [4, 1, 32], strides = [1, 1, 1]} : vector<4x16x32xf32> to vector<4x1x32xf32>
    %185 = vector.shape_cast %184 : vector<4x1x32xf32> to vector<4x32xf32>
    %186 = vector.broadcast %13 : vector<1x32xf32> to vector<4x32xf32>
    %187 = arith.mulf %185, %186 : vector<4x32xf32>
    %cst_50 = arith.constant dense<0.000000e+00> : vector<4xf32>
    %188 = vector.multi_reduction <add>, %187, %cst_50 [1] : vector<4x32xf32> to vector<4xf32>
    %189 = vector.shape_cast %188 : vector<4xf32> to vector<4x1xf32>
    %190 = vector.broadcast %14 : vector<1x1xf32> to vector<4x1xf32>
    %191 = arith.addf %189, %190 : vector<4x1xf32>
    %c0_51 = arith.constant 0 : index
    %c0_52 = arith.constant 0 : index
    %192 = vector.load %arg5[%c0_51, %c0_52] : memref<4x1xf32, #tpu.memory_space<vmem>>, vector<4x1xf32>
    tpu.vector_store %arg5[%c0_51, %c0_52], %191 {strides = array<i32>} : memref<4x1xf32, #tpu.memory_space<vmem>>, vector<4x1xf32>,
    return
  }
}

</mosaic_0001>

<llo_original>
// kernel: cl_concat_forward.1
$region0: #{cl_concat_forward.1}
  #allocation0 [shape = 'u32[]', space=smem, size = 0x4, offset = 0x4, fixed_abs, tag = 'smem constant byte address 0x4 - core index']
  #allocation1 [shape = 'u32[144,128]{1,0:T(1,128)}', space=vmem, size = 0x12000, scoped, tag = 'internal scratch']
  %s0 = inlined_call_operand.vmem [shape: f32[64,32], index: 0, kind: input, shape index: {}]
  %s1 = inlined_call_operand.vmem [shape: f32[32,128], index: 1, kind: input, shape index: {}]
  %s2 = inlined_call_operand.vmem [shape: f32[32,64], index: 2, kind: input, shape index: {}]
  %s3 = inlined_call_operand.vmem [shape: f32[64,32], index: 3, kind: input, shape index: {}]
  %s4 = inlined_call_operand.vmem [shape: f32[16,64], index: 4, kind: input, shape index: {}]
  %s5 = inlined_call_operand.vmem [shape: f32[4,1], index: 5, kind: output, shape index: {}]
  %s6 = sld [smem:[#allocation0]]
  $region30: #{cl_concat_forward.1} parent=0
    _
  %s8 = ssub.s32 1, %s6
  %s9 = scalar_select 0, %s8, %s6
  // Predicated region
  $region2: #{cl_concat_forward.1} parent=0 // pred_check
    _
  $region3: #{cl_concat_forward.1} parent=0 // pred_check_branch
    %11 = sbr.rel (0) target = $region5
  $region4: #{cl_concat_forward.1} parent=0 // pred_region
    _
  $region5: #{cl_concat_forward.1} parent=0 // pred_fallthru
    _
  // Predicated region
  $region6: #{cl_concat_forward.1} parent=0 // pred_check
    _
  $region7: #{cl_concat_forward.1} parent=0 // pred_check_branch
    %13 = sbr.rel (0) target = $region9
  $region8: #{cl_concat_forward.1} parent=0 // pred_region
    _
  $region9: #{cl_concat_forward.1} parent=0 // pred_fallthru
    _
  // Predicated region
  $region10: #{cl_concat_forward.1} parent=0 // pred_check
    _
  $region11: #{cl_concat_forward.1} parent=0 // pred_check_branch
    %15 = sbr.rel (0) target = $region13
  $region12: #{cl_concat_forward.1} parent=0 // pred_region
    _
  $region13: #{cl_concat_forward.1} parent=0 // pred_fallthru
    _
  // Predicated region
  $region14: #{cl_concat_forward.1} parent=0 // pred_check
    _
  $region15: #{cl_concat_forward.1} parent=0 // pred_check_branch
    %17 = sbr.rel (0) target = $region17
  $region16: #{cl_concat_forward.1} parent=0 // pred_region
    _
  $region17: #{cl_concat_forward.1} parent=0 // pred_fallthru
    _
  // Predicated region
  $region18: #{cl_concat_forward.1} parent=0 // pred_check
    _
  $region19: #{cl_concat_forward.1} parent=0 // pred_check_branch
    %19 = sbr.rel (0) target = $region21
  $region20: #{cl_concat_forward.1} parent=0 // pred_region
    _
  $region21: #{cl_concat_forward.1} parent=0 // pred_fallthru
    _
  %v20 = vld [vmem:[%s0] sm:$0xff]
  %v21 = vld [vmem:[%s0 + $0x8] sm:$0xff]
  %v22 = vld [vmem:[%s0 + $0x10] sm:$0xff]
  %v23 = vld [vmem:[%s0 + $0x18] sm:$0xff]
  %v24 = vld [vmem:[%s0 + $0x20] sm:$0xff]
  %v25 = vld [vmem:[%s0 + $0x28] sm:$0xff]
  %v26 = vld [vmem:[%s0 + $0x30] sm:$0xff]
  %v27 = vld [vmem:[%s0 + $0x38] sm:$0xff]
  %v28 = vld [vmem:[%s1] sm:$0xff]
  %v29 = vld [vmem:[%s1 + $0x8] sm:$0xff]
  %v30 = vld [vmem:[%s1 + $0x10] sm:$0xff]
  %v31 = vld [vmem:[%s1 + $0x18] sm:$0xff]
  %v32 = vld [vmem:[%s4] sm:$0xff]
  %v33 = vld [vmem:[%s4 + $0x8] sm:$0xff]
  %vm34 = vcmask 261120
  %v36 = vsel %vm34, %v20, 0
  %v39 = vsel %vm34, %v21, 0
  %v42 = vsel %vm34, %v22, 0
  %v45 = vsel %vm34, %v23, 0
  %v48 = vsel %vm34, %v24, 0
  %v51 = vsel %vm34, %v25, 0
  %v54 = vsel %vm34, %v26, 0
  %v57 = vsel %vm34, %v27, 0
  %59 = vmatprep.subr.mxu0 0.0
  %60 = vmatpush1.msra.mxu0 %v28
  %61 = vmatprep.subr.mxu0 0.0
  %62 = vmatpush1.msra.mxu0 %v29
  %63 = vmatprep.subr.mxu0 0.0
  %64 = vmatpush1.msra.mxu0 %v30
  %65 = vmatprep.subr.mxu0 0.0
  %66 = vmatpush1.msra.mxu0 %v31
  %67 = vmatprep.subr.mxu0 0.0
  %68 = vmatpush1.msra.mxu0 0.0
  %69 = vmatprep.subr.mxu0 0.0
  %70 = vmatpush1.msra.mxu0 0.0
  %71 = vmatprep.subr.mxu0 0.0
  %72 = vmatpush1.msra.mxu0 0.0
  %73 = vmatprep.subr.mxu0 0.0
  %74 = vmatpush1.msra.mxu0 0.0
  %75 = vmatprep.subr.mxu0 0.0
  %76 = vmatpush1.msra.mxu0 0.0
  %77 = vmatprep.subr.mxu0 0.0
  %78 = vmatpush1.msra.mxu0 0.0
  %79 = vmatprep.subr.mxu0 0.0
  %80 = vmatpush1.msra.mxu0 0.0
  %81 = vmatprep.subr.mxu0 0.0
  %82 = vmatpush1.msra.mxu0 0.0
  %83 = vmatprep.subr.mxu0 0.0
  %84 = vmatpush1.msra.mxu0 0.0
  %85 = vmatprep.subr.mxu0 0.0
  %86 = vmatpush1.msra.mxu0 0.0
  %87 = vmatprep.subr.mxu0 0.0
  %88 = vmatpush1.msra.mxu0 0.0
  %89 = vmatprep.subr.mxu0 0.0
  %90 = vmatpush1.msra.mxu0 0.0
  %91 = vmatprep.subr.mxu0 0.0
  %92 = vmatpush1.msra.mxu0 0.0
  %93 = vmatprep.subr.mxu0 0.0
  %94 = vmatpush1.msra.mxu0 0.0
  %95 = vmatprep.subr.mxu0 0.0
  %96 = vmatpush1.msra.mxu0 0.0
  %97 = vmatprep.subr.mxu0 0.0
  %98 = vmatpush1.msra.mxu0 0.0
  %99 = vmatprep.subr.mxu0 0.0
  %100 = vmatpush1.msra.mxu0 0.0
  %101 = vmatprep.subr.mxu0 0.0
  %102 = vmatpush1.msra.mxu0 0.0
  %103 = vmatprep.subr.mxu0 0.0
  %104 = vmatpush1.msra.mxu0 0.0
  %105 = vmatprep.subr.mxu0 0.0
  %106 = vmatpush1.msra.mxu0 0.0
  %107 = vmatprep.subr.mxu0 0.0
  %108 = vmatpush1.msra.mxu0 0.0
  %109 = vmatprep.subr.mxu0 0.0
  %110 = vmatpush1.msra.mxu0 0.0
  %111 = vmatprep.subr.mxu0 0.0
  %112 = vmatpush1.msra.mxu0 0.0
  %113 = vmatprep.subr.mxu0 0.0
  %114 = vmatpush1.msra.mxu0 0.0
  %115 = vmatprep.subr.mxu0 0.0
  %116 = vmatpush1.msra.mxu0 0.0
  %117 = vmatprep.subr.mxu0 0.0
  %118 = vmatpush1.msra.mxu0 0.0
  %119 = vmatprep.subr.mxu0 0.0
  %120 = vmatpush1.msra.mxu0 0.0
  %121 = vmatprep.subr.mxu0 0.0
  %122 = vmatpush1.msra.mxu0 0.0
  %123 = vmatprep.mubr.f32.mxu0 0.0
  %124 = vmatmul.mubr.f32.gmra.mrb[0].mxu0 %v36
  %v125 = vpop.f32.mrb[0].mxu0
  %v126 = vadd.f32 0.0, %v125
  %v127 = vpop.f32.mrb[0].mxu0
  %128 = vmatprep.mubr.f32.mxu0 0.0
  %129 = vmatmul.mubr.f32.gmra.mrb[0].mxu0 %v39
  %v130 = vpop.f32.mrb[0].mxu0
  %v131 = vadd.f32 0.0, %v130
  %v132 = vpop.f32.mrb[0].mxu0
  %133 = vmatprep.mubr.f32.mxu0 0.0
  %134 = vmatmul.mubr.f32.gmra.mrb[0].mxu0 %v42
  %v135 = vpop.f32.mrb[0].mxu0
  %v136 = vadd.f32 0.0, %v135
  %v137 = vpop.f32.mrb[0].mxu0
  %138 = vmatprep.mubr.f32.mxu0 0.0
  %139 = vmatmul.mubr.f32.gmra.mrb[0].mxu0 %v45
  %v140 = vpop.f32.mrb[0].mxu0
  %v141 = vadd.f32 0.0, %v140
  %v142 = vpop.f32.mrb[0].mxu0
  %143 = vmatprep.mubr.f32.mxu0 0.0
  %144 = vmatmul.mubr.f32.gmra.mrb[0].mxu0 %v48
  %v145 = vpop.f32.mrb[0].mxu0
  %v146 = vadd.f32 0.0, %v145
  %v147 = vpop.f32.mrb[0].mxu0
  %148 = vmatprep.mubr.f32.mxu0 0.0
  %149 = vmatmul.mubr.f32.gmra.mrb[0].mxu0 %v51
  %v150 = vpop.f32.mrb[0].mxu0
  %v151 = vadd.f32 0.0, %v150
  %v152 = vpop.f32.mrb[0].mxu0
  %153 = vmatprep.mubr.f32.mxu0 0.0
  %154 = vmatmul.mubr.f32.gmra.mrb[0].mxu0 %v54
  %v155 = vpop.f32.mrb[0].mxu0
  %v156 = vadd.f32 0.0, %v155
  %v157 = vpop.f32.mrb[0].mxu0
  %158 = vmatprep.mubr.f32.mxu0 0.0
  %159 = vmatmul.mubr.f32.gmra.mrb[0].mxu0 %v57
  %v160 = vpop.f32.mrb[0].mxu0
  %v161 = vadd.f32 0.0, %v160
  %v162 = vpop.f32.mrb[0].mxu0
  %163 = vdwg.mxu0
  %v164 = vlaneseq
  %v165 = vshrl.u32 %v164, 7
  %v166 = vsub.s32 0, %v165
  %v167 = vrot.slane %v32, %v166
  %v168 = vadd.f32 %v126, %v167
  %v169 = vadd.f32 %v131, %v167
  %v170 = vadd.f32 %v136, %v167
  %v171 = vadd.f32 %v141, %v167
  %v172 = vadd.f32 %v146, %v167
  %v173 = vadd.f32 %v151, %v167
  %v174 = vadd.f32 %v156, %v167
  %v175 = vadd.f32 %v161, %v167
  %v176 = vlaneseq
  %v177 = vshrl.u32 %v176, 7
  %v178 = vsub.s32 1, %v177
  %v179 = vrot.slane %v32, %v178
  %181 = vrot.lane.b32.xlu0 %v179, 32
  %v182 = vpop.permute.xlu0 %181
  %v184 = vadd.f32 %v126, %v182
  %v185 = vadd.f32 %v131, %v182
  %v186 = vadd.f32 %v136, %v182
  %v187 = vadd.f32 %v141, %v182
  %v188 = vadd.f32 %v146, %v182
  %v189 = vadd.f32 %v151, %v182
  %v190 = vadd.f32 %v156, %v182
  %v191 = vadd.f32 %v161, %v182
  %v192 = vlaneseq
  %v193 = vshrl.u32 %v192, 7
  %v194 = vsub.s32 2, %v193
  %v195 = vrot.slane %v32, %v194
  %197 = vrot.lane.b32.xlu0 %v195, 64
  %v198 = vpop.permute.xlu0 %197
  %v200 = vadd.f32 %v126, %v198
  %v201 = vadd.f32 %v131, %v198
  %v202 = vadd.f32 %v136, %v198
  %v203 = vadd.f32 %v141, %v198
  %v204 = vadd.f32 %v146, %v198
  %v205 = vadd.f32 %v151, %v198
  %v206 = vadd.f32 %v156, %v198
  %v207 = vadd.f32 %v161, %v198
  %210 = vrot.lane.b32.xlu0 %v184, 96
  %v211 = vpop.permute.xlu0 %210
  %212 = vrot.lane.b32.xlu0 %v185, 96
  %v213 = vpop.permute.xlu0 %212
  %vm214 = vcmask 64512
  %v216 = vsel %vm214, %v168, 0
  %v219 = vsel %vm214, %v169, 0
  %v221 = vsel %vm214, %v211, 0
  %v223 = vsel %vm214, %v213, 0
  %225 = vmatprep.subr.mxu0 0.0
  %226 = vmatpush1.xpose.msra.mxu0 %v221
  %227 = vmatprep.subr.mxu0 0.0
  %228 = vmatpush1.xpose.msra.mxu0 %v223
  %229 = vmatprep.subr.mxu0 0.0
  %230 = vmatpush1.xpose.msra.mxu0 0.0
  %231 = vmatprep.subr.mxu0 0.0
  %232 = vmatpush1.xpose.msra.mxu0 0.0
  %233 = vmatprep.subr.mxu0 0.0
  %234 = vmatpush1.xpose.msra.mxu0 0.0
  %235 = vmatprep.subr.mxu0 0.0
  %236 = vmatpush1.xpose.msra.mxu0 0.0
  %237 = vmatprep.subr.mxu0 0.0
  %238 = vmatpush1.xpose.msra.mxu0 0.0
  %239 = vmatprep.subr.mxu0 0.0
  %240 = vmatpush1.xpose.msra.mxu0 0.0
  %241 = vmatprep.subr.mxu0 0.0
  %242 = vmatpush1.xpose.msra.mxu0 0.0
  %243 = vmatprep.subr.mxu0 0.0
  %244 = vmatpush1.xpose.msra.mxu0 0.0
  %245 = vmatprep.subr.mxu0 0.0
  %246 = vmatpush1.xpose.msra.mxu0 0.0
  %247 = vmatprep.subr.mxu0 0.0
  %248 = vmatpush1.xpose.msra.mxu0 0.0
  %249 = vmatprep.subr.mxu0 0.0
  %250 = vmatpush1.xpose.msra.mxu0 0.0
  %251 = vmatprep.subr.mxu0 0.0
  %252 = vmatpush1.xpose.msra.mxu0 0.0
  %253 = vmatprep.subr.mxu0 0.0
  %254 = vmatpush1.xpose.msra.mxu0 0.0
  %255 = vmatprep.subr.mxu0 0.0
  %256 = vmatpush1.xpose.msra.mxu0 0.0
  %257 = vmatprep.subr.mxu0 0.0
  %258 = vmatpush1.xpose.msra.mxu0 0.0
  %259 = vmatprep.subr.mxu0 0.0
  %260 = vmatpush1.xpose.msra.mxu0 0.0
  %261 = vmatprep.subr.mxu0 0.0
  %262 = vmatpush1.xpose.msra.mxu0 0.0
  %263 = vmatprep.subr.mxu0 0.0
  %264 = vmatpush1.xpose.msra.mxu0 0.0
  %265 = vmatprep.subr.mxu0 0.0
  %266 = vmatpush1.xpose.msra.mxu0 0.0
  %267 = vmatprep.subr.mxu0 0.0
  %268 = vmatpush1.xpose.msra.mxu0 0.0
  %269 = vmatprep.subr.mxu0 0.0
  %270 = vmatpush1.xpose.msra.mxu0 0.0
  %271 = vmatprep.subr.mxu0 0.0
  %272 = vmatpush1.xpose.msra.mxu0 0.0
  %273 = vmatprep.subr.mxu0 0.0
  %274 = vmatpush1.xpose.msra.mxu0 0.0
  %275 = vmatprep.subr.mxu0 0.0
  %276 = vmatpush1.xpose.msra.mxu0 0.0
  %277 = vmatprep.subr.mxu0 0.0
  %278 = vmatpush1.xpose.msra.mxu0 0.0
  %279 = vmatprep.subr.mxu0 0.0
  %280 = vmatpush1.xpose.msra.mxu0 0.0
  %281 = vmatprep.subr.mxu0 0.0
  %282 = vmatpush1.xpose.msra.mxu0 0.0
  %283 = vmatprep.subr.mxu0 0.0
  %284 = vmatpush1.xpose.msra.mxu0 0.0
  %285 = vmatprep.subr.mxu0 0.0
  %286 = vmatpush1.xpose.msra.mxu0 0.0
  %287 = vmatprep.subr.mxu0 0.0
  %288 = vmatpush1.xpose.msra.mxu0 0.0
  %289 = vmatprep.mubr.f32.mxu0 0.0
  %290 = vmatmul.mubr.f32.gmra.mrb[0].mxu0 %v216
  %v291 = vpop.f32.mrb[0].mxu0
  %v292 = vadd.f32 0.0, %v291
  %v293 = vpop.f32.mrb[0].mxu0
  %294 = vmatprep.mubr.f32.mxu0 0.0
  %295 = vmatmul.mubr.f32.gmra.mrb[0].mxu0 %v219
  %v296 = vpop.f32.mrb[0].mxu0
  %v297 = vadd.f32 0.0, %v296
  %v298 = vpop.f32.mrb[0].mxu0
  %299 = vdwg.mxu0
  %302 = vrot.lane.b32.xlu0 %v186, 96
  %v303 = vpop.permute.xlu0 %302
  %304 = vrot.lane.b32.xlu0 %v187, 96
  %v305 = vpop.permute.xlu0 %304
  %v307 = vsel %vm214, %v170, 0
  %v310 = vsel %vm214, %v171, 0
  %v312 = vsel %vm214, %v303, 0
  %v314 = vsel %vm214, %v305, 0
  %316 = vmatprep.subr.mxu0 0.0
  %317 = vmatpush1.xpose.msra.mxu0 %v312
  %318 = vmatprep.subr.mxu0 0.0
  %319 = vmatpush1.xpose.msra.mxu0 %v314
  %320 = vmatprep.subr.mxu0 0.0
  %321 = vmatpush1.xpose.msra.mxu0 0.0
  %322 = vmatprep.subr.mxu0 0.0
  %323 = vmatpush1.xpose.msra.mxu0 0.0
  %324 = vmatprep.subr.mxu0 0.0
  %325 = vmatpush1.xpose.msra.mxu0 0.0
  %326 = vmatprep.subr.mxu0 0.0
  %327 = vmatpush1.xpose.msra.mxu0 0.0
  %328 = vmatprep.subr.mxu0 0.0
  %329 = vmatpush1.xpose.msra.mxu0 0.0
  %330 = vmatprep.subr.mxu0 0.0
  %331 = vmatpush1.xpose.msra.mxu0 0.0
  %332 = vmatprep.subr.mxu0 0.0
  %333 = vmatpush1.xpose.msra.mxu0 0.0
  %334 = vmatprep.subr.mxu0 0.0
  %335 = vmatpush1.xpose.msra.mxu0 0.0
  %336 = vmatprep.subr.mxu0 0.0
  %337 = vmatpush1.xpose.msra.mxu0 0.0
  %338 = vmatprep.subr.mxu0 0.0
  %339 = vmatpush1.xpose.msra.mxu0 0.0
  %340 = vmatprep.subr.mxu0 0.0
  %341 = vmatpush1.xpose.msra.mxu0 0.0
  %342 = vmatprep.subr.mxu0 0.0
  %343 = vmatpush1.xpose.msra.mxu0 0.0
  %344 = vmatprep.subr.mxu0 0.0
  %345 = vmatpush1.xpose.msra.mxu0 0.0
  %346 = vmatprep.subr.mxu0 0.0
  %347 = vmatpush1.xpose.msra.mxu0 0.0
  %348 = vmatprep.subr.mxu0 0.0
  %349 = vmatpush1.xpose.msra.mxu0 0.0
  %350 = vmatprep.subr.mxu0 0.0
  %351 = vmatpush1.xpose.msra.mxu0 0.0
  %352 = vmatprep.subr.mxu0 0.0
  %353 = vmatpush1.xpose.msra.mxu0 0.0
  %354 = vmatprep.subr.mxu0 0.0
  %355 = vmatpush1.xpose.msra.mxu0 0.0
  %356 = vmatprep.subr.mxu0 0.0
  %357 = vmatpush1.xpose.msra.mxu0 0.0
  %358 = vmatprep.subr.mxu0 0.0
  %359 = vmatpush1.xpose.msra.mxu0 0.0
  %360 = vmatprep.subr.mxu0 0.0
  %361 = vmatpush1.xpose.msra.mxu0 0.0
  %362 = vmatprep.subr.mxu0 0.0
  %363 = vmatpush1.xpose.msra.mxu0 0.0
  %364 = vmatprep.subr.mxu0 0.0
  %365 = vmatpush1.xpose.msra.mxu0 0.0
  %366 = vmatprep.subr.mxu0 0.0
  %367 = vmatpush1.xpose.msra.mxu0 0.0
  %368 = vmatprep.subr.mxu0 0.0
  %369 = vmatpush1.xpose.msra.mxu0 0.0
  %370 = vmatprep.subr.mxu0 0.0
  %371 = vmatpush1.xpose.msra.mxu0 0.0
  %372 = vmatprep.subr.mxu0 0.0
  %373 = vmatpush1.xpose.msra.mxu0 0.0
  %374 = vmatprep.subr.mxu0 0.0
  %375 = vmatpush1.xpose.msra.mxu0 0.0
  %376 = vmatprep.subr.mxu0 0.0
  %377 = vmatpush1.xpose.msra.mxu0 0.0
  %378 = vmatprep.subr.mxu0 0.0
  %379 = vmatpush1.xpose.msra.mxu0 0.0
  %380 = vmatprep.mubr.f32.mxu0 0.0
  %381 = vmatmul.mubr.f32.gmra.mrb[0].mxu0 %v307
  %v382 = vpop.f32.mrb[0].mxu0
  %v383 = vadd.f32 0.0, %v382
  %v384 = vpop.f32.mrb[0].mxu0
  %385 = vmatprep.mubr.f32.mxu0 0.0
  %386 = vmatmul.mubr.f32.gmra.mrb[0].mxu0 %v310
  %v387 = vpop.f32.mrb[0].mxu0
  %v388 = vadd.f32 0.0, %v387
  %v389 = vpop.f32.mrb[0].mxu0
  %390 = vdwg.mxu0
  %393 = vrot.lane.b32.xlu0 %v188, 96
  %v394 = vpop.permute.xlu0 %393
  %395 = vrot.lane.b32.xlu0 %v189, 96
  %v396 = vpop.permute.xlu0 %395
  %v398 = vsel %vm214, %v172, 0
  %v401 = vsel %vm214, %v173, 0
  %v403 = vsel %vm214, %v394, 0
  %v405 = vsel %vm214, %v396, 0
  %407 = vmatprep.subr.mxu0 0.0
  %408 = vmatpush1.xpose.msra.mxu0 %v403
  %409 = vmatprep.subr.mxu0 0.0
  %410 = vmatpush1.xpose.msra.mxu0 %v405
  %411 = vmatprep.subr.mxu0 0.0
  %412 = vmatpush1.xpose.msra.mxu0 0.0
  %413 = vmatprep.subr.mxu0 0.0
  %414 = vmatpush1.xpose.msra.mxu0 0.0
  %415 = vmatprep.subr.mxu0 0.0
  %416 = vmatpush1.xpose.msra.mxu0 0.0
  %417 = vmatprep.subr.mxu0 0.0
  %418 = vmatpush1.xpose.msra.mxu0 0.0
  %419 = vmatprep.subr.mxu0 0.0
  %420 = vmatpush1.xpose.msra.mxu0 0.0
  %421 = vmatprep.subr.mxu0 0.0
  %422 = vmatpush1.xpose.msra.mxu0 0.0
  %423 = vmatprep.subr.mxu0 0.0
  %424 = vmatpush1.xpose.msra.mxu0 0.0
  %425 = vmatprep.subr.mxu0 0.0
  %426 = vmatpush1.xpose.msra.mxu0 0.0
  %427 = vmatprep.subr.mxu0 0.0
  %428 = vmatpush1.xpose.msra.mxu0 0.0
  %429 = vmatprep.subr.mxu0 0.0
  %430 = vmatpush1.xpose.msra.mxu0 0.0
  %431 = vmatprep.subr.mxu0 0.0
  %432 = vmatpush1.xpose.msra.mxu0 0.0
  %433 = vmatprep.subr.mxu0 0.0
  %434 = vmatpush1.xpose.msra.mxu0 0.0
  %435 = vmatprep.subr.mxu0 0.0
  %436 = vmatpush1.xpose.msra.mxu0 0.0
  %437 = vmatprep.subr.mxu0 0.0
  %438 = vmatpush1.xpose.msra.mxu0 0.0
  %439 = vmatprep.subr.mxu0 0.0
  %440 = vmatpush1.xpose.msra.mxu0 0.0
  %441 = vmatprep.subr.mxu0 0.0
  %442 = vmatpush1.xpose.msra.mxu0 0.0
  %443 = vmatprep.subr.mxu0 0.0
  %444 = vmatpush1.xpose.msra.mxu0 0.0
  %445 = vmatprep.subr.mxu0 0.0
  %446 = vmatpush1.xpose.msra.mxu0 0.0
  %447 = vmatprep.subr.mxu0 0.0
  %448 = vmatpush1.xpose.msra.mxu0 0.0
  %449 = vmatprep.subr.mxu0 0.0
  %450 = vmatpush1.xpose.msra.mxu0 0.0
  %451 = vmatprep.subr.mxu0 0.0
  %452 = vmatpush1.xpose.msra.mxu0 0.0
  %453 = vmatprep.subr.mxu0 0.0
  %454 = vmatpush1.xpose.msra.mxu0 0.0
  %455 = vmatprep.subr.mxu0 0.0
  %456 = vmatpush1.xpose.msra.mxu0 0.0
  %457 = vmatprep.subr.mxu0 0.0
  %458 = vmatpush1.xpose.msra.mxu0 0.0
  %459 = vmatprep.subr.mxu0 0.0
  %460 = vmatpush1.xpose.msra.mxu0 0.0
  %461 = vmatprep.subr.mxu0 0.0
  %462 = vmatpush1.xpose.msra.mxu0 0.0
  %463 = vmatprep.subr.mxu0 0.0
  %464 = vmatpush1.xpose.msra.mxu0 0.0
  %465 = vmatprep.subr.mxu0 0.0
  %466 = vmatpush1.xpose.msra.mxu0 0.0
  %467 = vmatprep.subr.mxu0 0.0
  %468 = vmatpush1.xpose.msra.mxu0 0.0
  %469 = vmatprep.subr.mxu0 0.0
  %470 = vmatpush1.xpose.msra.mxu0 0.0
  %471 = vmatprep.mubr.f32.mxu0 0.0
  %472 = vmatmul.mubr.f32.gmra.mrb[0].mxu0 %v398
  %v473 = vpop.f32.mrb[0].mxu0
  %v474 = vadd.f32 0.0, %v473
  %v475 = vpop.f32.mrb[0].mxu0
  %476 = vmatprep.mubr.f32.mxu0 0.0
  %477 = vmatmul.mubr.f32.gmra.mrb[0].mxu0 %v401
  %v478 = vpop.f32.mrb[0].mxu0
  %v479 = vadd.f32 0.0, %v478
  %v480 = vpop.f32.mrb[0].mxu0
  %481 = vdwg.mxu0
  %484 = vrot.lane.b32.xlu0 %v190, 96
  %v485 = vpop.permute.xlu0 %484
  %486 = vrot.lane.b32.xlu0 %v191, 96
  %v487 = vpop.permute.xlu0 %486
  %v489 = vsel %vm214, %v174, 0
  %v492 = vsel %vm214, %v175, 0
  %v494 = vsel %vm214, %v485, 0
  %v496 = vsel %vm214, %v487, 0
  %498 = vmatprep.subr.mxu0 0.0
  %499 = vmatpush1.xpose.msra.mxu0 %v494
  %500 = vmatprep.subr.mxu0 0.0
  %501 = vmatpush1.xpose.msra.mxu0 %v496
  %502 = vmatprep.subr.mxu0 0.0
  %503 = vmatpush1.xpose.msra.mxu0 0.0
  %504 = vmatprep.subr.mxu0 0.0
  %505 = vmatpush1.xpose.msra.mxu0 0.0
  %506 = vmatprep.subr.mxu0 0.0
  %507 = vmatpush1.xpose.msra.mxu0 0.0
  %508 = vmatprep.subr.mxu0 0.0
  %509 = vmatpush1.xpose.msra.mxu0 0.0
  %510 = vmatprep.subr.mxu0 0.0
  %511 = vmatpush1.xpose.msra.mxu0 0.0
  %512 = vmatprep.subr.mxu0 0.0
  %513 = vmatpush1.xpose.msra.mxu0 0.0
  %514 = vmatprep.subr.mxu0 0.0
  %515 = vmatpush1.xpose.msra.mxu0 0.0
  %516 = vmatprep.subr.mxu0 0.0
  %517 = vmatpush1.xpose.msra.mxu0 0.0
  %518 = vmatprep.subr.mxu0 0.0
  %519 = vmatpush1.xpose.msra.mxu0 0.0
  %520 = vmatprep.subr.mxu0 0.0
  %521 = vmatpush1.xpose.msra.mxu0 0.0
  %522 = vmatprep.subr.mxu0 0.0
  %523 = vmatpush1.xpose.msra.mxu0 0.0
  %524 = vmatprep.subr.mxu0 0.0
  %525 = vmatpush1.xpose.msra.mxu0 0.0
  %526 = vmatprep.subr.mxu0 0.0
  %527 = vmatpush1.xpose.msra.mxu0 0.0
  %528 = vmatprep.subr.mxu0 0.0
  %529 = vmatpush1.xpose.msra.mxu0 0.0
  %530 = vmatprep.subr.mxu0 0.0
  %531 = vmatpush1.xpose.msra.mxu0 0.0
  %532 = vmatprep.subr.mxu0 0.0
  %533 = vmatpush1.xpose.msra.mxu0 0.0
  %534 = vmatprep.subr.mxu0 0.0
  %535 = vmatpush1.xpose.msra.mxu0 0.0
  %536 = vmatprep.subr.mxu0 0.0
  %537 = vmatpush1.xpose.msra.mxu0 0.0
  %538 = vmatprep.subr.mxu0 0.0
  %539 = vmatpush1.xpose.msra.mxu0 0.0
  %540 = vmatprep.subr.mxu0 0.0
  %541 = vmatpush1.xpose.msra.mxu0 0.0
  %542 = vmatprep.subr.mxu0 0.0
  %543 = vmatpush1.xpose.msra.mxu0 0.0
  %544 = vmatprep.subr.mxu0 0.0
  %545 = vmatpush1.xpose.msra.mxu0 0.0
  %546 = vmatprep.subr.mxu0 0.0
  %547 = vmatpush1.xpose.msra.mxu0 0.0
  %548 = vmatprep.subr.mxu0 0.0
  %549 = vmatpush1.xpose.msra.mxu0 0.0
  %550 = vmatprep.subr.mxu0 0.0
  %551 = vmatpush1.xpose.msra.mxu0 0.0
  %552 = vmatprep.subr.mxu0 0.0
  %553 = vmatpush1.xpose.msra.mxu0 0.0
  %554 = vmatprep.subr.mxu0 0.0
  %555 = vmatpush1.xpose.msra.mxu0 0.0
  %556 = vmatprep.subr.mxu0 0.0
  %557 = vmatpush1.xpose.msra.mxu0 0.0
  %558 = vmatprep.subr.mxu0 0.0
  %559 = vmatpush1.xpose.msra.mxu0 0.0
  %560 = vmatprep.subr.mxu0 0.0
  %561 = vmatpush1.xpose.msra.mxu0 0.0
  %562 = vmatprep.mubr.f32.mxu0 0.0
  %563 = vmatmul.mubr.f32.gmra.mrb[0].mxu0 %v489
  %v564 = vpop.f32.mrb[0].mxu0
  %v565 = vadd.f32 0.0, %v564
  %v566 = vpop.f32.mrb[0].mxu0
  %567 = vmatprep.mubr.f32.mxu0 0.0
  %568 = vmatmul.mubr.f32.gmra.mrb[0].mxu0 %v492
  %v569 = vpop.f32.mrb[0].mxu0
  %v570 = vadd.f32 0.0, %v569
  %v571 = vpop.f32.mrb[0].mxu0
  %572 = vdwg.mxu0
  %v573 = vmul.f32 %v292, 0.35355338
  %v574 = vmul.f32 %v297, 0.35355338
  %v575 = vmul.f32 %v383, 0.35355338
  %v576 = vmul.f32 %v388, 0.35355338
  %v577 = vmul.f32 %v474, 0.35355338
  %v578 = vmul.f32 %v479, 0.35355338
  %v579 = vmul.f32 %v565, 0.35355338
  %v580 = vmul.f32 %v570, 0.35355338
  %vm581 = vcmask 130048
  %v582 = vsel %vm581, %v573, -inf
  %583 = vmax.xlane.f32.xlu0 %v582
  %v584 = vpop.xlane.xlu0 %583
  %v585 = vsel %vm581, %v574, -inf
  %586 = vmax.xlane.f32.xlu0 %v585
  %v587 = vpop.xlane.xlu0 %586
  %v588 = vsel %vm581, %v575, -inf
  %589 = vmax.xlane.f32.xlu0 %v588
  %v590 = vpop.xlane.xlu0 %589
  %v591 = vsel %vm581, %v576, -inf
  %592 = vmax.xlane.f32.xlu0 %v591
  %v593 = vpop.xlane.xlu0 %592
  %v594 = vsel %vm581, %v577, -inf
  %595 = vmax.xlane.f32.xlu0 %v594
  %v596 = vpop.xlane.xlu0 %595
  %v597 = vsel %vm581, %v578, -inf
  %598 = vmax.xlane.f32.xlu0 %v597
  %v599 = vpop.xlane.xlu0 %598
  %v600 = vsel %vm581, %v579, -inf
  %601 = vmax.xlane.f32.xlu0 %v600
  %v602 = vpop.xlane.xlu0 %601
  %v603 = vsel %vm581, %v580, -inf
  %604 = vmax.xlane.f32.xlu0 %v603
  %v605 = vpop.xlane.xlu0 %604
  %v606 = vsub.f32 %v573, %v584
  %v607 = vsub.f32 %v574, %v587
  %v608 = vsub.f32 %v575, %v590
  %v609 = vsub.f32 %v576, %v593
  %v610 = vsub.f32 %v577, %v596
  %v611 = vsub.f32 %v578, %v599
  %v612 = vsub.f32 %v579, %v602
  %v613 = vsub.f32 %v580, %v605
  %v614 = vmul.f32 %v606, 1.442695
  %v615 = vpow.pop %v614
  %v616 = vmul.f32 %v607, 1.442695
  %v617 = vpow.pop %v616
  %v618 = vmul.f32 %v608, 1.442695
  %v619 = vpow.pop %v618
  %v620 = vmul.f32 %v609, 1.442695
  %v621 = vpow.pop %v620
  %v622 = vmul.f32 %v610, 1.442695
  %v623 = vpow.pop %v622
  %v624 = vmul.f32 %v611, 1.442695
  %v625 = vpow.pop %v624
  %v626 = vmul.f32 %v612, 1.442695
  %v627 = vpow.pop %v626
  %v628 = vmul.f32 %v613, 1.442695
  %v629 = vpow.pop %v628
  %v630 = vsel %vm581, %v615, 0.0
  %631 = vadd.xlane.f32.xlu0 %v630
  %v632 = vpop.xlane.xlu0 %631
  %v633 = vsel %vm581, %v617, 0.0
  %634 = vadd.xlane.f32.xlu0 %v633
  %v635 = vpop.xlane.xlu0 %634
  %v636 = vsel %vm581, %v619, 0.0
  %637 = vadd.xlane.f32.xlu0 %v636
  %v638 = vpop.xlane.xlu0 %637
  %v639 = vsel %vm581, %v621, 0.0
  %640 = vadd.xlane.f32.xlu0 %v639
  %v641 = vpop.xlane.xlu0 %640
  %v642 = vsel %vm581, %v623, 0.0
  %643 = vadd.xlane.f32.xlu0 %v642
  %v644 = vpop.xlane.xlu0 %643
  %v645 = vsel %vm581, %v625, 0.0
  %646 = vadd.xlane.f32.xlu0 %v645
  %v647 = vpop.xlane.xlu0 %646
  %v648 = vsel %vm581, %v627, 0.0
  %649 = vadd.xlane.f32.xlu0 %v648
  %v650 = vpop.xlane.xlu0 %649
  %v651 = vsel %vm581, %v629, 0.0
  %652 = vadd.xlane.f32.xlu0 %v651
  %v653 = vpop.xlane.xlu0 %652
  %v654 = vrcp.pop %v632
  %v655 = vrcp.pop %v635
  %v656 = vrcp.pop %v638
  %v657 = vrcp.pop %v641
  %v658 = vrcp.pop %v644
  %v659 = vrcp.pop %v647
  %v660 = vrcp.pop %v650
  %v661 = vrcp.pop %v653
  %v662 = vmul.f32 %v615, %v654
  %v663 = vmul.f32 %v617, %v655
  %v664 = vmul.f32 %v619, %v656
  %v665 = vmul.f32 %v621, %v657
  %v666 = vmul.f32 %v623, %v658
  %v667 = vmul.f32 %v625, %v659
  %v668 = vmul.f32 %v627, %v660
  %v669 = vmul.f32 %v629, %v661
  %672 = vrot.lane.b32.xlu0 %v200, 64
  %v673 = vpop.permute.xlu0 %672
  %674 = vrot.lane.b32.xlu0 %v201, 64
  %v675 = vpop.permute.xlu0 %674
  %v679 = vsel %vm581, %v662, 0
  %v682 = vsel %vm581, %v663, 0
  %684 = vmatprep.subr.mxu0 0.0
  %685 = vmatpush1.msra.mxu0 %v673
  %686 = vmatprep.subr.mxu0 0.0
  %687 = vmatpush1.msra.mxu0 %v675
  %688 = vmatprep.subr.mxu0 0.0
  %689 = vmatpush1.msra.mxu0 0.0
  %690 = vmatprep.subr.mxu0 0.0
  %691 = vmatpush1.msra.mxu0 0.0
  %692 = vmatprep.subr.mxu0 0.0
  %693 = vmatpush1.msra.mxu0 0.0
  %694 = vmatprep.subr.mxu0 0.0
  %695 = vmatpush1.msra.mxu0 0.0
  %696 = vmatprep.subr.mxu0 0.0
  %697 = vmatpush1.msra.mxu0 0.0
  %698 = vmatprep.subr.mxu0 0.0
  %699 = vmatpush1.msra.mxu0 0.0
  %700 = vmatprep.subr.mxu0 0.0
  %701 = vmatpush1.msra.mxu0 0.0
  %702 = vmatprep.subr.mxu0 0.0
  %703 = vmatpush1.msra.mxu0 0.0
  %704 = vmatprep.subr.mxu0 0.0
  %705 = vmatpush1.msra.mxu0 0.0
  %706 = vmatprep.subr.mxu0 0.0
  %707 = vmatpush1.msra.mxu0 0.0
  %708 = vmatprep.subr.mxu0 0.0
  %709 = vmatpush1.msra.mxu0 0.0
  %710 = vmatprep.subr.mxu0 0.0
  %711 = vmatpush1.msra.mxu0 0.0
  %712 = vmatprep.subr.mxu0 0.0
  %713 = vmatpush1.msra.mxu0 0.0
  %714 = vmatprep.subr.mxu0 0.0
  %715 = vmatpush1.msra.mxu0 0.0
  %716 = vmatprep.subr.mxu0 0.0
  %717 = vmatpush1.msra.mxu0 0.0
  %718 = vmatprep.subr.mxu0 0.0
  %719 = vmatpush1.msra.mxu0 0.0
  %720 = vmatprep.subr.mxu0 0.0
  %721 = vmatpush1.msra.mxu0 0.0
  %722 = vmatprep.subr.mxu0 0.0
  %723 = vmatpush1.msra.mxu0 0.0
  %724 = vmatprep.subr.mxu0 0.0
  %725 = vmatpush1.msra.mxu0 0.0
  %726 = vmatprep.subr.mxu0 0.0
  %727 = vmatpush1.msra.mxu0 0.0
  %728 = vmatprep.subr.mxu0 0.0
  %729 = vmatpush1.msra.mxu0 0.0
  %730 = vmatprep.subr.mxu0 0.0
  %731 = vmatpush1.msra.mxu0 0.0
  %732 = vmatprep.subr.mxu0 0.0
  %733 = vmatpush1.msra.mxu0 0.0
  %734 = vmatprep.subr.mxu0 0.0
  %735 = vmatpush1.msra.mxu0 0.0
  %736 = vmatprep.subr.mxu0 0.0
  %737 = vmatpush1.msra.mxu0 0.0
  %738 = vmatprep.subr.mxu0 0.0
  %739 = vmatpush1.msra.mxu0 0.0
  %740 = vmatprep.subr.mxu0 0.0
  %741 = vmatpush1.msra.mxu0 0.0
  %742 = vmatprep.subr.mxu0 0.0
  %743 = vmatpush1.msra.mxu0 0.0
  %744 = vmatprep.subr.mxu0 0.0
  %745 = vmatpush1.msra.mxu0 0.0
  %746 = vmatprep.subr.mxu0 0.0
  %747 = vmatpush1.msra.mxu0 0.0
  %748 = vmatprep.mubr.f32.mxu0 0.0
  %749 = vmatmul.mubr.f32.gmra.mrb[0].mxu0 %v679
  %v750 = vpop.f32.mrb[0].mxu0
  %v751 = vadd.f32 0.0, %v750
  %v752 = vpop.f32.mrb[0].mxu0
  %753 = vmatprep.mubr.f32.mxu0 0.0
  %754 = vmatmul.mubr.f32.gmra.mrb[0].mxu0 %v682
  %v755 = vpop.f32.mrb[0].mxu0
  %v756 = vadd.f32 0.0, %v755
  %v757 = vpop.f32.mrb[0].mxu0
  %758 = vdwg.mxu0
  %761 = vrot.lane.b32.xlu0 %v202, 64
  %v762 = vpop.permute.xlu0 %761
  %763 = vrot.lane.b32.xlu0 %v203, 64
  %v764 = vpop.permute.xlu0 %763
  %v768 = vsel %vm581, %v664, 0
  %v771 = vsel %vm581, %v665, 0
  %773 = vmatprep.subr.mxu0 0.0
  %774 = vmatpush1.msra.mxu0 %v762
  %775 = vmatprep.subr.mxu0 0.0
  %776 = vmatpush1.msra.mxu0 %v764
  %777 = vmatprep.subr.mxu0 0.0
  %778 = vmatpush1.msra.mxu0 0.0
  %779 = vmatprep.subr.mxu0 0.0
  %780 = vmatpush1.msra.mxu0 0.0
  %781 = vmatprep.subr.mxu0 0.0
  %782 = vmatpush1.msra.mxu0 0.0
  %783 = vmatprep.subr.mxu0 0.0
  %784 = vmatpush1.msra.mxu0 0.0
  %785 = vmatprep.subr.mxu0 0.0
  %786 = vmatpush1.msra.mxu0 0.0
  %787 = vmatprep.subr.mxu0 0.0
  %788 = vmatpush1.msra.mxu0 0.0
  %789 = vmatprep.subr.mxu0 0.0
  %790 = vmatpush1.msra.mxu0 0.0
  %791 = vmatprep.subr.mxu0 0.0
  %792 = vmatpush1.msra.mxu0 0.0
  %793 = vmatprep.subr.mxu0 0.0
  %794 = vmatpush1.msra.mxu0 0.0
  %795 = vmatprep.subr.mxu0 0.0
  %796 = vmatpush1.msra.mxu0 0.0
  %797 = vmatprep.subr.mxu0 0.0
  %798 = vmatpush1.msra.mxu0 0.0
  %799 = vmatprep.subr.mxu0 0.0
  %800 = vmatpush1.msra.mxu0 0.0
  %801 = vmatprep.subr.mxu0 0.0
  %802 = vmatpush1.msra.mxu0 0.0
  %803 = vmatprep.subr.mxu0 0.0
  %804 = vmatpush1.msra.mxu0 0.0
  %805 = vmatprep.subr.mxu0 0.0
  %806 = vmatpush1.msra.mxu0 0.0
  %807 = vmatprep.subr.mxu0 0.0
  %808 = vmatpush1.msra.mxu0 0.0
  %809 = vmatprep.subr.mxu0 0.0
  %810 = vmatpush1.msra.mxu0 0.0
  %811 = vmatprep.subr.mxu0 0.0
  %812 = vmatpush1.msra.mxu0 0.0
  %813 = vmatprep.subr.mxu0 0.0
  %814 = vmatpush1.msra.mxu0 0.0
  %815 = vmatprep.subr.mxu0 0.0
  %816 = vmatpush1.msra.mxu0 0.0
  %817 = vmatprep.subr.mxu0 0.0
  %818 = vmatpush1.msra.mxu0 0.0
  %819 = vmatprep.subr.mxu0 0.0
  %820 = vmatpush1.msra.mxu0 0.0
  %821 = vmatprep.subr.mxu0 0.0
  %822 = vmatpush1.msra.mxu0 0.0
  %823 = vmatprep.subr.mxu0 0.0
  %824 = vmatpush1.msra.mxu0 0.0
  %825 = vmatprep.subr.mxu0 0.0
  %826 = vmatpush1.msra.mxu0 0.0
  %827 = vmatprep.subr.mxu0 0.0
  %828 = vmatpush1.msra.mxu0 0.0
  %829 = vmatprep.subr.mxu0 0.0
  %830 = vmatpush1.msra.mxu0 0.0
  %831 = vmatprep.subr.mxu0 0.0
  %832 = vmatpush1.msra.mxu0 0.0
  %833 = vmatprep.subr.mxu0 0.0
  %834 = vmatpush1.msra.mxu0 0.0
  %835 = vmatprep.subr.mxu0 0.0
  %836 = vmatpush1.msra.mxu0 0.0
  %837 = vmatprep.mubr.f32.mxu0 0.0
  %838 = vmatmul.mubr.f32.gmra.mrb[0].mxu0 %v768
  %v839 = vpop.f32.mrb[0].mxu0
  %v840 = vadd.f32 0.0, %v839
  %v841 = vpop.f32.mrb[0].mxu0
  %842 = vmatprep.mubr.f32.mxu0 0.0
  %843 = vmatmul.mubr.f32.gmra.mrb[0].mxu0 %v771
  %v844 = vpop.f32.mrb[0].mxu0
  %v845 = vadd.f32 0.0, %v844
  %v846 = vpop.f32.mrb[0].mxu0
  %847 = vdwg.mxu0
  %850 = vrot.lane.b32.xlu0 %v204, 64
  %v851 = vpop.permute.xlu0 %850
  %852 = vrot.lane.b32.xlu0 %v205, 64
  %v853 = vpop.permute.xlu0 %852
  %v857 = vsel %vm581, %v666, 0
  %v860 = vsel %vm581, %v667, 0
  %862 = vmatprep.subr.mxu0 0.0
  %863 = vmatpush1.msra.mxu0 %v851
  %864 = vmatprep.subr.mxu0 0.0
  %865 = vmatpush1.msra.mxu0 %v853
  %866 = vmatprep.subr.mxu0 0.0
  %867 = vmatpush1.msra.mxu0 0.0
  %868 = vmatprep.subr.mxu0 0.0
  %869 = vmatpush1.msra.mxu0 0.0
  %870 = vmatprep.subr.mxu0 0.0
  %871 = vmatpush1.msra.mxu0 0.0
  %872 = vmatprep.subr.mxu0 0.0
  %873 = vmatpush1.msra.mxu0 0.0
  %874 = vmatprep.subr.mxu0 0.0
  %875 = vmatpush1.msra.mxu0 0.0
  %876 = vmatprep.subr.mxu0 0.0
  %877 = vmatpush1.msra.mxu0 0.0
  %878 = vmatprep.subr.mxu0 0.0
  %879 = vmatpush1.msra.mxu0 0.0
  %880 = vmatprep.subr.mxu0 0.0
  %881 = vmatpush1.msra.mxu0 0.0
  %882 = vmatprep.subr.mxu0 0.0
  %883 = vmatpush1.msra.mxu0 0.0
  %884 = vmatprep.subr.mxu0 0.0
  %885 = vmatpush1.msra.mxu0 0.0
  %886 = vmatprep.subr.mxu0 0.0
  %887 = vmatpush1.msra.mxu0 0.0
  %888 = vmatprep.subr.mxu0 0.0
  %889 = vmatpush1.msra.mxu0 0.0
  %890 = vmatprep.subr.mxu0 0.0
  %891 = vmatpush1.msra.mxu0 0.0
  %892 = vmatprep.subr.mxu0 0.0
  %893 = vmatpush1.msra.mxu0 0.0
  %894 = vmatprep.subr.mxu0 0.0
  %895 = vmatpush1.msra.mxu0 0.0
  %896 = vmatprep.subr.mxu0 0.0
  %897 = vmatpush1.msra.mxu0 0.0
  %898 = vmatprep.subr.mxu0 0.0
  %899 = vmatpush1.msra.mxu0 0.0
  %900 = vmatprep.subr.mxu0 0.0
  %901 = vmatpush1.msra.mxu0 0.0
  %902 = vmatprep.subr.mxu0 0.0
  %903 = vmatpush1.msra.mxu0 0.0
  %904 = vmatprep.subr.mxu0 0.0
  %905 = vmatpush1.msra.mxu0 0.0
  %906 = vmatprep.subr.mxu0 0.0
  %907 = vmatpush1.msra.mxu0 0.0
  %908 = vmatprep.subr.mxu0 0.0
  %909 = vmatpush1.msra.mxu0 0.0
  %910 = vmatprep.subr.mxu0 0.0
  %911 = vmatpush1.msra.mxu0 0.0
  %912 = vmatprep.subr.mxu0 0.0
  %913 = vmatpush1.msra.mxu0 0.0
  %914 = vmatprep.subr.mxu0 0.0
  %915 = vmatpush1.msra.mxu0 0.0
  %916 = vmatprep.subr.mxu0 0.0
  %917 = vmatpush1.msra.mxu0 0.0
  %918 = vmatprep.subr.mxu0 0.0
  %919 = vmatpush1.msra.mxu0 0.0
  %920 = vmatprep.subr.mxu0 0.0
  %921 = vmatpush1.msra.mxu0 0.0
  %922 = vmatprep.subr.mxu0 0.0
  %923 = vmatpush1.msra.mxu0 0.0
  %924 = vmatprep.subr.mxu0 0.0
  %925 = vmatpush1.msra.mxu0 0.0
  %926 = vmatprep.mubr.f32.mxu0 0.0
  %927 = vmatmul.mubr.f32.gmra.mrb[0].mxu0 %v857
  %v928 = vpop.f32.mrb[0].mxu0
  %v929 = vadd.f32 0.0, %v928
  %v930 = vpop.f32.mrb[0].mxu0
  %931 = vmatprep.mubr.f32.mxu0 0.0
  %932 = vmatmul.mubr.f32.gmra.mrb[0].mxu0 %v860
  %v933 = vpop.f32.mrb[0].mxu0
  %v934 = vadd.f32 0.0, %v933
  %v935 = vpop.f32.mrb[0].mxu0
  %936 = vdwg.mxu0
  %939 = vrot.lane.b32.xlu0 %v206, 64
  %v940 = vpop.permute.xlu0 %939
  %941 = vrot.lane.b32.xlu0 %v207, 64
  %v942 = vpop.permute.xlu0 %941
  %v946 = vsel %vm581, %v668, 0
  %v949 = vsel %vm581, %v669, 0
  %951 = vmatprep.subr.mxu0 0.0
  %952 = vmatpush1.msra.mxu0 %v940
  %953 = vmatprep.subr.mxu0 0.0
  %954 = vmatpush1.msra.mxu0 %v942
  %955 = vmatprep.subr.mxu0 0.0
  %956 = vmatpush1.msra.mxu0 0.0
  %957 = vmatprep.subr.mxu0 0.0
  %958 = vmatpush1.msra.mxu0 0.0
  %959 = vmatprep.subr.mxu0 0.0
  %960 = vmatpush1.msra.mxu0 0.0
  %961 = vmatprep.subr.mxu0 0.0
  %962 = vmatpush1.msra.mxu0 0.0
  %963 = vmatprep.subr.mxu0 0.0
  %964 = vmatpush1.msra.mxu0 0.0
  %965 = vmatprep.subr.mxu0 0.0
  %966 = vmatpush1.msra.mxu0 0.0
  %967 = vmatprep.subr.mxu0 0.0
  %968 = vmatpush1.msra.mxu0 0.0
  %969 = vmatprep.subr.mxu0 0.0
  %970 = vmatpush1.msra.mxu0 0.0
  %971 = vmatprep.subr.mxu0 0.0
  %972 = vmatpush1.msra.mxu0 0.0
  %973 = vmatprep.subr.mxu0 0.0
  %974 = vmatpush1.msra.mxu0 0.0
  %975 = vmatprep.subr.mxu0 0.0
  %976 = vmatpush1.msra.mxu0 0.0
  %977 = vmatprep.subr.mxu0 0.0
  %978 = vmatpush1.msra.mxu0 0.0
  %979 = vmatprep.subr.mxu0 0.0
  %980 = vmatpush1.msra.mxu0 0.0
  %981 = vmatprep.subr.mxu0 0.0
  %982 = vmatpush1.msra.mxu0 0.0
  %983 = vmatprep.subr.mxu0 0.0
  %984 = vmatpush1.msra.mxu0 0.0
  %985 = vmatprep.subr.mxu0 0.0
  %986 = vmatpush1.msra.mxu0 0.0
  %987 = vmatprep.subr.mxu0 0.0
  %988 = vmatpush1.msra.mxu0 0.0
  %989 = vmatprep.subr.mxu0 0.0
  %990 = vmatpush1.msra.mxu0 0.0
  %991 = vmatprep.subr.mxu0 0.0
  %992 = vmatpush1.msra.mxu0 0.0
  %993 = vmatprep.subr.mxu0 0.0
  %994 = vmatpush1.msra.mxu0 0.0
  %995 = vmatprep.subr.mxu0 0.0
  %996 = vmatpush1.msra.mxu0 0.0
  %997 = vmatprep.subr.mxu0 0.0
  %998 = vmatpush1.msra.mxu0 0.0
  %999 = vmatprep.subr.mxu0 0.0
  %1000 = vmatpush1.msra.mxu0 0.0
  %1001 = vmatprep.subr.mxu0 0.0
  %1002 = vmatpush1.msra.mxu0 0.0
  %1003 = vmatprep.subr.mxu0 0.0
  %1004 = vmatpush1.msra.mxu0 0.0
  %1005 = vmatprep.subr.mxu0 0.0
  %1006 = vmatpush1.msra.mxu0 0.0
  %1007 = vmatprep.subr.mxu0 0.0
  %1008 = vmatpush1.msra.mxu0 0.0
  %1009 = vmatprep.subr.mxu0 0.0
  %1010 = vmatpush1.msra.mxu0 0.0
  %1011 = vmatprep.subr.mxu0 0.0
  %1012 = vmatpush1.msra.mxu0 0.0
  %1013 = vmatprep.subr.mxu0 0.0
  %1014 = vmatpush1.msra.mxu0 0.0
  %1015 = vmatprep.mubr.f32.mxu0 0.0
  %1016 = vmatmul.mubr.f32.gmra.mrb[0].mxu0 %v946
  %v1017 = vpop.f32.mrb[0].mxu0
  %v1018 = vadd.f32 0.0, %v1017
  %v1019 = vpop.f32.mrb[0].mxu0
  %1020 = vmatprep.mubr.f32.mxu0 0.0
  %1021 = vmatmul.mubr.f32.gmra.mrb[0].mxu0 %v949
  %v1022 = vpop.f32.mrb[0].mxu0
  %v1023 = vadd.f32 0.0, %v1022
  %v1024 = vpop.f32.mrb[0].mxu0
  %1025 = vdwg.mxu0
  %1026 = vrot.lane.b32.xlu0 %v168, 120
  %v1027 = vpop.permute.xlu0 %1026
  %1028 = vrot.lane.b32.xlu0 %v169, 120
  %v1029 = vpop.permute.xlu0 %1028
  %1030 = vrot.lane.b32.xlu0 %v184, 88
  %v1031 = vpop.permute.xlu0 %1030
  %1032 = vrot.lane.b32.xlu0 %v185, 88
  %v1033 = vpop.permute.xlu0 %1032
  %v1034 = vsel %vm214, %v1027, 0
  %v1036 = vsel %vm214, %v1029, 0
  %v1038 = vsel %vm214, %v1031, 0
  %v1040 = vsel %vm214, %v1033, 0
  %1042 = vmatprep.subr.mxu0 0.0
  %1043 = vmatpush1.xpose.msra.mxu0 %v1038
  %1044 = vmatprep.subr.mxu0 0.0
  %1045 = vmatpush1.xpose.msra.mxu0 %v1040
  %1046 = vmatprep.subr.mxu0 0.0
  %1047 = vmatpush1.xpose.msra.mxu0 0.0
  %1048 = vmatprep.subr.mxu0 0.0
  %1049 = vmatpush1.xpose.msra.mxu0 0.0
  %1050 = vmatprep.subr.mxu0 0.0
  %1051 = vmatpush1.xpose.msra.mxu0 0.0
  %1052 = vmatprep.subr.mxu0 0.0
  %1053 = vmatpush1.xpose.msra.mxu0 0.0
  %1054 = vmatprep.subr.mxu0 0.0
  %1055 = vmatpush1.xpose.msra.mxu0 0.0
  %1056 = vmatprep.subr.mxu0 0.0
  %1057 = vmatpush1.xpose.msra.mxu0 0.0
  %1058 = vmatprep.subr.mxu0 0.0
  %1059 = vmatpush1.xpose.msra.mxu0 0.0
  %1060 = vmatprep.subr.mxu0 0.0
  %1061 = vmatpush1.xpose.msra.mxu0 0.0
  %1062 = vmatprep.subr.mxu0 0.0
  %1063 = vmatpush1.xpose.msra.mxu0 0.0
  %1064 = vmatprep.subr.mxu0 0.0
  %1065 = vmatpush1.xpose.msra.mxu0 0.0
  %1066 = vmatprep.subr.mxu0 0.0
  %1067 = vmatpush1.xpose.msra.mxu0 0.0
  %1068 = vmatprep.subr.mxu0 0.0
  %1069 = vmatpush1.xpose.msra.mxu0 0.0
  %1070 = vmatprep.subr.mxu0 0.0
  %1071 = vmatpush1.xpose.msra.mxu0 0.0
  %1072 = vmatprep.subr.mxu0 0.0
  %1073 = vmatpush1.xpose.msra.mxu0 0.0
  %1074 = vmatprep.subr.mxu0 0.0
  %1075 = vmatpush1.xpose.msra.mxu0 0.0
  %1076 = vmatprep.subr.mxu0 0.0
  %1077 = vmatpush1.xpose.msra.mxu0 0.0
  %1078 = vmatprep.subr.mxu0 0.0
  %1079 = vmatpush1.xpose.msra.mxu0 0.0
  %1080 = vmatprep.subr.mxu0 0.0
  %1081 = vmatpush1.xpose.msra.mxu0 0.0
  %1082 = vmatprep.subr.mxu0 0.0
  %1083 = vmatpush1.xpose.msra.mxu0 0.0
  %1084 = vmatprep.subr.mxu0 0.0
  %1085 = vmatpush1.xpose.msra.mxu0 0.0
  %1086 = vmatprep.subr.mxu0 0.0
  %1087 = vmatpush1.xpose.msra.mxu0 0.0
  %1088 = vmatprep.subr.mxu0 0.0
  %1089 = vmatpush1.xpose.msra.mxu0 0.0
  %1090 = vmatprep.subr.mxu0 0.0
  %1091 = vmatpush1.xpose.msra.mxu0 0.0
  %1092 = vmatprep.subr.mxu0 0.0
  %1093 = vmatpush1.xpose.msra.mxu0 0.0
  %1094 = vmatprep.subr.mxu0 0.0
  %1095 = vmatpush1.xpose.msra.mxu0 0.0
  %1096 = vmatprep.subr.mxu0 0.0
  %1097 = vmatpush1.xpose.msra.mxu0 0.0
  %1098 = vmatprep.subr.mxu0 0.0
  %1099 = vmatpush1.xpose.msra.mxu0 0.0
  %1100 = vmatprep.subr.mxu0 0.0
  %1101 = vmatpush1.xpose.msra.mxu0 0.0
  %1102 = vmatprep.subr.mxu0 0.0
  %1103 = vmatpush1.xpose.msra.mxu0 0.0
  %1104 = vmatprep.subr.mxu0 0.0
  %1105 = vmatpush1.xpose.msra.mxu0 0.0
  %1106 = vmatprep.mubr.f32.mxu0 0.0
  %1107 = vmatmul.mubr.f32.gmra.mrb[0].mxu0 %v1034
  %v1108 = vpop.f32.mrb[0].mxu0
  %v1109 = vadd.f32 0.0, %v1108
  %v1110 = vpop.f32.mrb[0].mxu0
  %1111 = vmatprep.mubr.f32.mxu0 0.0
  %1112 = vmatmul.mubr.f32.gmra.mrb[0].mxu0 %v1036
  %v1113 = vpop.f32.mrb[0].mxu0
  %v1114 = vadd.f32 0.0, %v1113
  %v1115 = vpop.f32.mrb[0].mxu0
  %1116 = vdwg.mxu0
  %1117 = vrot.lane.b32.xlu0 %v170, 120
  %v1118 = vpop.permute.xlu0 %1117
  %1119 = vrot.lane.b32.xlu0 %v171, 120
  %v1120 = vpop.permute.xlu0 %1119
  %1121 = vrot.lane.b32.xlu0 %v186, 88
  %v1122 = vpop.permute.xlu0 %1121
  %1123 = vrot.lane.b32.xlu0 %v187, 88
  %v1124 = vpop.permute.xlu0 %1123
  %v1125 = vsel %vm214, %v1118, 0
  %v1127 = vsel %vm214, %v1120, 0
  %v1129 = vsel %vm214, %v1122, 0
  %v1131 = vsel %vm214, %v1124, 0
  %1133 = vmatprep.subr.mxu0 0.0
  %1134 = vmatpush1.xpose.msra.mxu0 %v1129
  %1135 = vmatprep.subr.mxu0 0.0
  %1136 = vmatpush1.xpose.msra.mxu0 %v1131
  %1137 = vmatprep.subr.mxu0 0.0
  %1138 = vmatpush1.xpose.msra.mxu0 0.0
  %1139 = vmatprep.subr.mxu0 0.0
  %1140 = vmatpush1.xpose.msra.mxu0 0.0
  %1141 = vmatprep.subr.mxu0 0.0
  %1142 = vmatpush1.xpose.msra.mxu0 0.0
  %1143 = vmatprep.subr.mxu0 0.0
  %1144 = vmatpush1.xpose.msra.mxu0 0.0
  %1145 = vmatprep.subr.mxu0 0.0
  %1146 = vmatpush1.xpose.msra.mxu0 0.0
  %1147 = vmatprep.subr.mxu0 0.0
  %1148 = vmatpush1.xpose.msra.mxu0 0.0
  %1149 = vmatprep.subr.mxu0 0.0
  %1150 = vmatpush1.xpose.msra.mxu0 0.0
  %1151 = vmatprep.subr.mxu0 0.0
  %1152 = vmatpush1.xpose.msra.mxu0 0.0
  %1153 = vmatprep.subr.mxu0 0.0
  %1154 = vmatpush1.xpose.msra.mxu0 0.0
  %1155 = vmatprep.subr.mxu0 0.0
  %1156 = vmatpush1.xpose.msra.mxu0 0.0
  %1157 = vmatprep.subr.mxu0 0.0
  %1158 = vmatpush1.xpose.msra.mxu0 0.0
  %1159 = vmatprep.subr.mxu0 0.0
  %1160 = vmatpush1.xpose.msra.mxu0 0.0
  %1161 = vmatprep.subr.mxu0 0.0
  %1162 = vmatpush1.xpose.msra.mxu0 0.0
  %1163 = vmatprep.subr.mxu0 0.0
  %1164 = vmatpush1.xpose.msra.mxu0 0.0
  %1165 = vmatprep.subr.mxu0 0.0
  %1166 = vmatpush1.xpose.msra.mxu0 0.0
  %1167 = vmatprep.subr.mxu0 0.0
  %1168 = vmatpush1.xpose.msra.mxu0 0.0
  %1169 = vmatprep.subr.mxu0 0.0
  %1170 = vmatpush1.xpose.msra.mxu0 0.0
  %1171 = vmatprep.subr.mxu0 0.0
  %1172 = vmatpush1.xpose.msra.mxu0 0.0
  %1173 = vmatprep.subr.mxu0 0.0
  %1174 = vmatpush1.xpose.msra.mxu0 0.0
  %1175 = vmatprep.subr.mxu0 0.0
  %1176 = vmatpush1.xpose.msra.mxu0 0.0
  %1177 = vmatprep.subr.mxu0 0.0
  %1178 = vmatpush1.xpose.msra.mxu0 0.0
  %1179 = vmatprep.subr.mxu0 0.0
  %1180 = vmatpush1.xpose.msra.mxu0 0.0
  %1181 = vmatprep.subr.mxu0 0.0
  %1182 = vmatpush1.xpose.msra.mxu0 0.0
  %1183 = vmatprep.subr.mxu0 0.0
  %1184 = vmatpush1.xpose.msra.mxu0 0.0
  %1185 = vmatprep.subr.mxu0 0.0
  %1186 = vmatpush1.xpose.msra.mxu0 0.0
  %1187 = vmatprep.subr.mxu0 0.0
  %1188 = vmatpush1.xpose.msra.mxu0 0.0
  %1189 = vmatprep.subr.mxu0 0.0
  %1190 = vmatpush1.xpose.msra.mxu0 0.0
  %1191 = vmatprep.subr.mxu0 0.0
  %1192 = vmatpush1.xpose.msra.mxu0 0.0
  %1193 = vmatprep.subr.mxu0 0.0
  %1194 = vmatpush1.xpose.msra.mxu0 0.0
  %1195 = vmatprep.subr.mxu0 0.0
  %1196 = vmatpush1.xpose.msra.mxu0 0.0
  %1197 = vmatprep.mubr.f32.mxu0 0.0
  %1198 = vmatmul.mubr.f32.gmra.mrb[0].mxu0 %v1125
  %v1199 = vpop.f32.mrb[0].mxu0
  %v1200 = vadd.f32 0.0, %v1199
  %v1201 = vpop.f32.mrb[0].mxu0
  %1202 = vmatprep.mubr.f32.mxu0 0.0
  %1203 = vmatmul.mubr.f32.gmra.mrb[0].mxu0 %v1127
  %v1204 = vpop.f32.mrb[0].mxu0
  %v1205 = vadd.f32 0.0, %v1204
  %v1206 = vpop.f32.mrb[0].mxu0
  %1207 = vdwg.mxu0
  %1208 = vrot.lane.b32.xlu0 %v172, 120
  %v1209 = vpop.permute.xlu0 %1208
  %1210 = vrot.lane.b32.xlu0 %v173, 120
  %v1211 = vpop.permute.xlu0 %1210
  %1212 = vrot.lane.b32.xlu0 %v188, 88
  %v1213 = vpop.permute.xlu0 %1212
  %1214 = vrot.lane.b32.xlu0 %v189, 88
  %v1215 = vpop.permute.xlu0 %1214
  %v1216 = vsel %vm214, %v1209, 0
  %v1218 = vsel %vm214, %v1211, 0
  %v1220 = vsel %vm214, %v1213, 0
  %v1222 = vsel %vm214, %v1215, 0
  %1224 = vmatprep.subr.mxu0 0.0
  %1225 = vmatpush1.xpose.msra.mxu0 %v1220
  %1226 = vmatprep.subr.mxu0 0.0
  %1227 = vmatpush1.xpose.msra.mxu0 %v1222
  %1228 = vmatprep.subr.mxu0 0.0
  %1229 = vmatpush1.xpose.msra.mxu0 0.0
  %1230 = vmatprep.subr.mxu0 0.0
  %1231 = vmatpush1.xpose.msra.mxu0 0.0
  %1232 = vmatprep.subr.mxu0 0.0
  %1233 = vmatpush1.xpose.msra.mxu0 0.0
  %1234 = vmatprep.subr.mxu0 0.0
  %1235 = vmatpush1.xpose.msra.mxu0 0.0
  %1236 = vmatprep.subr.mxu0 0.0
  %1237 = vmatpush1.xpose.msra.mxu0 0.0
  %1238 = vmatprep.subr.mxu0 0.0
  %1239 = vmatpush1.xpose.msra.mxu0 0.0
  %1240 = vmatprep.subr.mxu0 0.0
  %1241 = vmatpush1.xpose.msra.mxu0 0.0
  %1242 = vmatprep.subr.mxu0 0.0
  %1243 = vmatpush1.xpose.msra.mxu0 0.0
  %1244 = vmatprep.subr.mxu0 0.0
  %1245 = vmatpush1.xpose.msra.mxu0 0.0
  %1246 = vmatprep.subr.mxu0 0.0
  %1247 = vmatpush1.xpose.msra.mxu0 0.0
  %1248 = vmatprep.subr.mxu0 0.0
  %1249 = vmatpush1.xpose.msra.mxu0 0.0
  %1250 = vmatprep.subr.mxu0 0.0
  %1251 = vmatpush1.xpose.msra.mxu0 0.0
  %1252 = vmatprep.subr.mxu0 0.0
  %1253 = vmatpush1.xpose.msra.mxu0 0.0
  %1254 = vmatprep.subr.mxu0 0.0
  %1255 = vmatpush1.xpose.msra.mxu0 0.0
  %1256 = vmatprep.subr.mxu0 0.0
  %1257 = vmatpush1.xpose.msra.mxu0 0.0
  %1258 = vmatprep.subr.mxu0 0.0
  %1259 = vmatpush1.xpose.msra.mxu0 0.0
  %1260 = vmatprep.subr.mxu0 0.0
  %1261 = vmatpush1.xpose.msra.mxu0 0.0
  %1262 = vmatprep.subr.mxu0 0.0
  %1263 = vmatpush1.xpose.msra.mxu0 0.0
  %1264 = vmatprep.subr.mxu0 0.0
  %1265 = vmatpush1.xpose.msra.mxu0 0.0
  %1266 = vmatprep.subr.mxu0 0.0
  %1267 = vmatpush1.xpose.msra.mxu0 0.0
  %1268 = vmatprep.subr.mxu0 0.0
  %1269 = vmatpush1.xpose.msra.mxu0 0.0
  %1270 = vmatprep.subr.mxu0 0.0
  %1271 = vmatpush1.xpose.msra.mxu0 0.0
  %1272 = vmatprep.subr.mxu0 0.0
  %1273 = vmatpush1.xpose.msra.mxu0 0.0
  %1274 = vmatprep.subr.mxu0 0.0
  %1275 = vmatpush1.xpose.msra.mxu0 0.0
  %1276 = vmatprep.subr.mxu0 0.0
  %1277 = vmatpush1.xpose.msra.mxu0 0.0
  %1278 = vmatprep.subr.mxu0 0.0
  %1279 = vmatpush1.xpose.msra.mxu0 0.0
  %1280 = vmatprep.subr.mxu0 0.0
  %1281 = vmatpush1.xpose.msra.mxu0 0.0
  %1282 = vmatprep.subr.mxu0 0.0
  %1283 = vmatpush1.xpose.msra.mxu0 0.0
  %1284 = vmatprep.subr.mxu0 0.0
  %1285 = vmatpush1.xpose.msra.mxu0 0.0
  %1286 = vmatprep.subr.mxu0 0.0
  %1287 = vmatpush1.xpose.msra.mxu0 0.0
  %1288 = vmatprep.mubr.f32.mxu0 0.0
  %1289 = vmatmul.mubr.f32.gmra.mrb[0].mxu0 %v1216
  %v1290 = vpop.f32.mrb[0].mxu0
  %v1291 = vadd.f32 0.0, %v1290
  %v1292 = vpop.f32.mrb[0].mxu0
  %1293 = vmatprep.mubr.f32.mxu0 0.0
  %1294 = vmatmul.mubr.f32.gmra.mrb[0].mxu0 %v1218
  %v1295 = vpop.f32.mrb[0].mxu0
  %v1296 = vadd.f32 0.0, %v1295
  %v1297 = vpop.f32.mrb[0].mxu0
  %1298 = vdwg.mxu0
  %1299 = vrot.lane.b32.xlu0 %v174, 120
  %v1300 = vpop.permute.xlu0 %1299
  %1301 = vrot.lane.b32.xlu0 %v175, 120
  %v1302 = vpop.permute.xlu0 %1301
  %1303 = vrot.lane.b32.xlu0 %v190, 88
  %v1304 = vpop.permute.xlu0 %1303
  %1305 = vrot.lane.b32.xlu0 %v191, 88
  %v1306 = vpop.permute.xlu0 %1305
  %v1307 = vsel %vm214, %v1300, 0
  %v1309 = vsel %vm214, %v1302, 0
  %v1311 = vsel %vm214, %v1304, 0
  %v1313 = vsel %vm214, %v1306, 0
  %1315 = vmatprep.subr.mxu0 0.0
  %1316 = vmatpush1.xpose.msra.mxu0 %v1311
  %1317 = vmatprep.subr.mxu0 0.0
  %1318 = vmatpush1.xpose.msra.mxu0 %v1313
  %1319 = vmatprep.subr.mxu0 0.0
  %1320 = vmatpush1.xpose.msra.mxu0 0.0
  %1321 = vmatprep.subr.mxu0 0.0
  %1322 = vmatpush1.xpose.msra.mxu0 0.0
  %1323 = vmatprep.subr.mxu0 0.0
  %1324 = vmatpush1.xpose.msra.mxu0 0.0
  %1325 = vmatprep.subr.mxu0 0.0
  %1326 = vmatpush1.xpose.msra.mxu0 0.0
  %1327 = vmatprep.subr.mxu0 0.0
  %1328 = vmatpush1.xpose.msra.mxu0 0.0
  %1329 = vmatprep.subr.mxu0 0.0
  %1330 = vmatpush1.xpose.msra.mxu0 0.0
  %1331 = vmatprep.subr.mxu0 0.0
  %1332 = vmatpush1.xpose.msra.mxu0 0.0
  %1333 = vmatprep.subr.mxu0 0.0
  %1334 = vmatpush1.xpose.msra.mxu0 0.0
  %1335 = vmatprep.subr.mxu0 0.0
  %1336 = vmatpush1.xpose.msra.mxu0 0.0
  %1337 = vmatprep.subr.mxu0 0.0
  %1338 = vmatpush1.xpose.msra.mxu0 0.0
  %1339 = vmatprep.subr.mxu0 0.0
  %1340 = vmatpush1.xpose.msra.mxu0 0.0
  %1341 = vmatprep.subr.mxu0 0.0
  %1342 = vmatpush1.xpose.msra.mxu0 0.0
  %1343 = vmatprep.subr.mxu0 0.0
  %1344 = vmatpush1.xpose.msra.mxu0 0.0
  %1345 = vmatprep.subr.mxu0 0.0
  %1346 = vmatpush1.xpose.msra.mxu0 0.0
  %1347 = vmatprep.subr.mxu0 0.0
  %1348 = vmatpush1.xpose.msra.mxu0 0.0
  %1349 = vmatprep.subr.mxu0 0.0
  %1350 = vmatpush1.xpose.msra.mxu0 0.0
  %1351 = vmatprep.subr.mxu0 0.0
  %1352 = vmatpush1.xpose.msra.mxu0 0.0
  %1353 = vmatprep.subr.mxu0 0.0
  %1354 = vmatpush1.xpose.msra.mxu0 0.0
  %1355 = vmatprep.subr.mxu0 0.0
  %1356 = vmatpush1.xpose.msra.mxu0 0.0
  %1357 = vmatprep.subr.mxu0 0.0
  %1358 = vmatpush1.xpose.msra.mxu0 0.0
  %1359 = vmatprep.subr.mxu0 0.0
  %1360 = vmatpush1.xpose.msra.mxu0 0.0
  %1361 = vmatprep.subr.mxu0 0.0
  %1362 = vmatpush1.xpose.msra.mxu0 0.0
  %1363 = vmatprep.subr.mxu0 0.0
  %1364 = vmatpush1.xpose.msra.mxu0 0.0
  %1365 = vmatprep.subr.mxu0 0.0
  %1366 = vmatpush1.xpose.msra.mxu0 0.0
  %1367 = vmatprep.subr.mxu0 0.0
  %1368 = vmatpush1.xpose.msra.mxu0 0.0
  %1369 = vmatprep.subr.mxu0 0.0
  %1370 = vmatpush1.xpose.msra.mxu0 0.0
  %1371 = vmatprep.subr.mxu0 0.0
  %1372 = vmatpush1.xpose.msra.mxu0 0.0
  %1373 = vmatprep.subr.mxu0 0.0
  %1374 = vmatpush1.xpose.msra.mxu0 0.0
  %1375 = vmatprep.subr.mxu0 0.0
  %1376 = vmatpush1.xpose.msra.mxu0 0.0
  %1377 = vmatprep.subr.mxu0 0.0
  %1378 = vmatpush1.xpose.msra.mxu0 0.0
  %1379 = vmatprep.mubr.f32.mxu0 0.0
  %1380 = vmatmul.mubr.f32.gmra.mrb[0].mxu0 %v1307
  %v1381 = vpop.f32.mrb[0].mxu0
  %v1382 = vadd.f32 0.0, %v1381
  %v1383 = vpop.f32.mrb[0].mxu0
  %1384 = vmatprep.mubr.f32.mxu0 0.0
  %1385 = vmatmul.mubr.f32.gmra.mrb[0].mxu0 %v1309
  %v1386 = vpop.f32.mrb[0].mxu0
  %v1387 = vadd.f32 0.0, %v1386
  %v1388 = vpop.f32.mrb[0].mxu0
  %1389 = vdwg.mxu0
  %v1390 = vmul.f32 %v1109, 0.35355338
  %v1391 = vmul.f32 %v1114, 0.35355338
  %v1392 = vmul.f32 %v1200, 0.35355338
  %v1393 = vmul.f32 %v1205, 0.35355338
  %v1394 = vmul.f32 %v1291, 0.35355338
  %v1395 = vmul.f32 %v1296, 0.35355338
  %v1396 = vmul.f32 %v1382, 0.35355338
  %v1397 = vmul.f32 %v1387, 0.35355338
  %v1398 = vsel %vm581, %v1390, -inf
  %1399 = vmax.xlane.f32.xlu0 %v1398
  %v1400 = vpop.xlane.xlu0 %1399
  %v1401 = vsel %vm581, %v1391, -inf
  %1402 = vmax.xlane.f32.xlu0 %v1401
  %v1403 = vpop.xlane.xlu0 %1402
  %v1404 = vsel %vm581, %v1392, -inf
  %1405 = vmax.xlane.f32.xlu0 %v1404
  %v1406 = vpop.xlane.xlu0 %1405
  %v1407 = vsel %vm581, %v1393, -inf
  %1408 = vmax.xlane.f32.xlu0 %v1407
  %v1409 = vpop.xlane.xlu0 %1408
  %v1410 = vsel %vm581, %v1394, -inf
  %1411 = vmax.xlane.f32.xlu0 %v1410
  %v1412 = vpop.xlane.xlu0 %1411
  %v1413 = vsel %vm581, %v1395, -inf
  %1414 = vmax.xlane.f32.xlu0 %v1413
  %v1415 = vpop.xlane.xlu0 %1414
  %v1416 = vsel %vm581, %v1396, -inf
  %1417 = vmax.xlane.f32.xlu0 %v1416
  %v1418 = vpop.xlane.xlu0 %1417
  %v1419 = vsel %vm581, %v1397, -inf
  %1420 = vmax.xlane.f32.xlu0 %v1419
  %v1421 = vpop.xlane.xlu0 %1420
  %v1422 = vsub.f32 %v1390, %v1400
  %v1423 = vsub.f32 %v1391, %v1403
  %v1424 = vsub.f32 %v1392, %v1406
  %v1425 = vsub.f32 %v1393, %v1409
  %v1426 = vsub.f32 %v1394, %v1412
  %v1427 = vsub.f32 %v1395, %v1415
  %v1428 = vsub.f32 %v1396, %v1418
  %v1429 = vsub.f32 %v1397, %v1421
  %v1430 = vmul.f32 %v1422, 1.442695
  %v1431 = vpow.pop %v1430
  %v1432 = vmul.f32 %v1423, 1.442695
  %v1433 = vpow.pop %v1432
  %v1434 = vmul.f32 %v1424, 1.442695
  %v1435 = vpow.pop %v1434
  %v1436 = vmul.f32 %v1425, 1.442695
  %v1437 = vpow.pop %v1436
  %v1438 = vmul.f32 %v1426, 1.442695
  %v1439 = vpow.pop %v1438
  %v1440 = vmul.f32 %v1427, 1.442695
  %v1441 = vpow.pop %v1440
  %v1442 = vmul.f32 %v1428, 1.442695
  %v1443 = vpow.pop %v1442
  %v1444 = vmul.f32 %v1429, 1.442695
  %v1445 = vpow.pop %v1444
  %v1446 = vsel %vm581, %v1431, 0.0
  %1447 = vadd.xlane.f32.xlu0 %v1446
  %v1448 = vpop.xlane.xlu0 %1447
  %v1449 = vsel %vm581, %v1433, 0.0
  %1450 = vadd.xlane.f32.xlu0 %v1449
  %v1451 = vpop.xlane.xlu0 %1450
  %v1452 = vsel %vm581, %v1435, 0.0
  %1453 = vadd.xlane.f32.xlu0 %v1452
  %v1454 = vpop.xlane.xlu0 %1453
  %v1455 = vsel %vm581, %v1437, 0.0
  %1456 = vadd.xlane.f32.xlu0 %v1455
  %v1457 = vpop.xlane.xlu0 %1456
  %v1458 = vsel %vm581, %v1439, 0.0
  %1459 = vadd.xlane.f32.xlu0 %v1458
  %v1460 = vpop.xlane.xlu0 %1459
  %v1461 = vsel %vm581, %v1441, 0.0
  %1462 = vadd.xlane.f32.xlu0 %v1461
  %v1463 = vpop.xlane.xlu0 %1462
  %v1464 = vsel %vm581, %v1443, 0.0
  %1465 = vadd.xlane.f32.xlu0 %v1464
  %v1466 = vpop.xlane.xlu0 %1465
  %v1467 = vsel %vm581, %v1445, 0.0
  %1468 = vadd.xlane.f32.xlu0 %v1467
  %v1469 = vpop.xlane.xlu0 %1468
  %v1470 = vrcp.pop %v1448
  %v1471 = vrcp.pop %v1451
  %v1472 = vrcp.pop %v1454
  %v1473 = vrcp.pop %v1457
  %v1474 = vrcp.pop %v1460
  %v1475 = vrcp.pop %v1463
  %v1476 = vrcp.pop %v1466
  %v1477 = vrcp.pop %v1469
  %v1478 = vmul.f32 %v1431, %v1470
  %v1479 = vmul.f32 %v1433, %v1471
  %v1480 = vmul.f32 %v1435, %v1472
  %v1481 = vmul.f32 %v1437, %v1473
  %v1482 = vmul.f32 %v1439, %v1474
  %v1483 = vmul.f32 %v1441, %v1475
  %v1484 = vmul.f32 %v1443, %v1476
  %v1485 = vmul.f32 %v1445, %v1477
  %1486 = vrot.lane.b32.xlu0 %v200, 56
  %v1487 = vpop.permute.xlu0 %1486
  %1488 = vrot.lane.b32.xlu0 %v201, 56
  %v1489 = vpop.permute.xlu0 %1488
  %v1493 = vsel %vm581, %v1478, 0
  %v1496 = vsel %vm581, %v1479, 0
  %1498 = vmatprep.subr.mxu0 0.0
  %1499 = vmatpush1.msra.mxu0 %v1487
  %1500 = vmatprep.subr.mxu0 0.0
  %1501 = vmatpush1.msra.mxu0 %v1489
  %1502 = vmatprep.subr.mxu0 0.0
  %1503 = vmatpush1.msra.mxu0 0.0
  %1504 = vmatprep.subr.mxu0 0.0
  %1505 = vmatpush1.msra.mxu0 0.0
  %1506 = vmatprep.subr.mxu0 0.0
  %1507 = vmatpush1.msra.mxu0 0.0
  %1508 = vmatprep.subr.mxu0 0.0
  %1509 = vmatpush1.msra.mxu0 0.0
  %1510 = vmatprep.subr.mxu0 0.0
  %1511 = vmatpush1.msra.mxu0 0.0
  %1512 = vmatprep.subr.mxu0 0.0
  %1513 = vmatpush1.msra.mxu0 0.0
  %1514 = vmatprep.subr.mxu0 0.0
  %1515 = vmatpush1.msra.mxu0 0.0
  %1516 = vmatprep.subr.mxu0 0.0
  %1517 = vmatpush1.msra.mxu0 0.0
  %1518 = vmatprep.subr.mxu0 0.0
  %1519 = vmatpush1.msra.mxu0 0.0
  %1520 = vmatprep.subr.mxu0 0.0
  %1521 = vmatpush1.msra.mxu0 0.0
  %1522 = vmatprep.subr.mxu0 0.0
  %1523 = vmatpush1.msra.mxu0 0.0
  %1524 = vmatprep.subr.mxu0 0.0
  %1525 = vmatpush1.msra.mxu0 0.0
  %1526 = vmatprep.subr.mxu0 0.0
  %1527 = vmatpush1.msra.mxu0 0.0
  %1528 = vmatprep.subr.mxu0 0.0
  %1529 = vmatpush1.msra.mxu0 0.0
  %1530 = vmatprep.subr.mxu0 0.0
  %1531 = vmatpush1.msra.mxu0 0.0
  %1532 = vmatprep.subr.mxu0 0.0
  %1533 = vmatpush1.msra.mxu0 0.0
  %1534 = vmatprep.subr.mxu0 0.0
  %1535 = vmatpush1.msra.mxu0 0.0
  %1536 = vmatprep.subr.mxu0 0.0
  %1537 = vmatpush1.msra.mxu0 0.0
  %1538 = vmatprep.subr.mxu0 0.0
  %1539 = vmatpush1.msra.mxu0 0.0
  %1540 = vmatprep.subr.mxu0 0.0
  %1541 = vmatpush1.msra.mxu0 0.0
  %1542 = vmatprep.subr.mxu0 0.0
  %1543 = vmatpush1.msra.mxu0 0.0
  %1544 = vmatprep.subr.mxu0 0.0
  %1545 = vmatpush1.msra.mxu0 0.0
  %1546 = vmatprep.subr.mxu0 0.0
  %1547 = vmatpush1.msra.mxu0 0.0
  %1548 = vmatprep.subr.mxu0 0.0
  %1549 = vmatpush1.msra.mxu0 0.0
  %1550 = vmatprep.subr.mxu0 0.0
  %1551 = vmatpush1.msra.mxu0 0.0
  %1552 = vmatprep.subr.mxu0 0.0
  %1553 = vmatpush1.msra.mxu0 0.0
  %1554 = vmatprep.subr.mxu0 0.0
  %1555 = vmatpush1.msra.mxu0 0.0
  %1556 = vmatprep.subr.mxu0 0.0
  %1557 = vmatpush1.msra.mxu0 0.0
  %1558 = vmatprep.subr.mxu0 0.0
  %1559 = vmatpush1.msra.mxu0 0.0
  %1560 = vmatprep.subr.mxu0 0.0
  %1561 = vmatpush1.msra.mxu0 0.0
  %1562 = vmatprep.mubr.f32.mxu0 0.0
  %1563 = vmatmul.mubr.f32.gmra.mrb[0].mxu0 %v1493
  %v1564 = vpop.f32.mrb[0].mxu0
  %v1565 = vadd.f32 0.0, %v1564
  %v1566 = vpop.f32.mrb[0].mxu0
  %1567 = vmatprep.mubr.f32.mxu0 0.0
  %1568 = vmatmul.mubr.f32.gmra.mrb[0].mxu0 %v1496
  %v1569 = vpop.f32.mrb[0].mxu0
  %v1570 = vadd.f32 0.0, %v1569
  %v1571 = vpop.f32.mrb[0].mxu0
  %1572 = vdwg.mxu0
  %1573 = vrot.lane.b32.xlu0 %v202, 56
  %v1574 = vpop.permute.xlu0 %1573
  %1575 = vrot.lane.b32.xlu0 %v203, 56
  %v1576 = vpop.permute.xlu0 %1575
  %v1580 = vsel %vm581, %v1480, 0
  %v1583 = vsel %vm581, %v1481, 0
  %1585 = vmatprep.subr.mxu0 0.0
  %1586 = vmatpush1.msra.mxu0 %v1574
  %1587 = vmatprep.subr.mxu0 0.0
  %1588 = vmatpush1.msra.mxu0 %v1576
  %1589 = vmatprep.subr.mxu0 0.0
  %1590 = vmatpush1.msra.mxu0 0.0
  %1591 = vmatprep.subr.mxu0 0.0
  %1592 = vmatpush1.msra.mxu0 0.0
  %1593 = vmatprep.subr.mxu0 0.0
  %1594 = vmatpush1.msra.mxu0 0.0
  %1595 = vmatprep.subr.mxu0 0.0
  %1596 = vmatpush1.msra.mxu0 0.0
  %1597 = vmatprep.subr.mxu0 0.0
  %1598 = vmatpush1.msra.mxu0 0.0
  %1599 = vmatprep.subr.mxu0 0.0
  %1600 = vmatpush1.msra.mxu0 0.0
  %1601 = vmatprep.subr.mxu0 0.0
  %1602 = vmatpush1.msra.mxu0 0.0
  %1603 = vmatprep.subr.mxu0 0.0
  %1604 = vmatpush1.msra.mxu0 0.0
  %1605 = vmatprep.subr.mxu0 0.0
  %1606 = vmatpush1.msra.mxu0 0.0
  %1607 = vmatprep.subr.mxu0 0.0
  %1608 = vmatpush1.msra.mxu0 0.0
  %1609 = vmatprep.subr.mxu0 0.0
  %1610 = vmatpush1.msra.mxu0 0.0
  %1611 = vmatprep.subr.mxu0 0.0
  %1612 = vmatpush1.msra.mxu0 0.0
  %1613 = vmatprep.subr.mxu0 0.0
  %1614 = vmatpush1.msra.mxu0 0.0
  %1615 = vmatprep.subr.mxu0 0.0
  %1616 = vmatpush1.msra.mxu0 0.0
  %1617 = vmatprep.subr.mxu0 0.0
  %1618 = vmatpush1.msra.mxu0 0.0
  %1619 = vmatprep.subr.mxu0 0.0
  %1620 = vmatpush1.msra.mxu0 0.0
  %1621 = vmatprep.subr.mxu0 0.0
  %1622 = vmatpush1.msra.mxu0 0.0
  %1623 = vmatprep.subr.mxu0 0.0
  %1624 = vmatpush1.msra.mxu0 0.0
  %1625 = vmatprep.subr.mxu0 0.0
  %1626 = vmatpush1.msra.mxu0 0.0
  %1627 = vmatprep.subr.mxu0 0.0
  %1628 = vmatpush1.msra.mxu0 0.0
  %1629 = vmatprep.subr.mxu0 0.0
  %1630 = vmatpush1.msra.mxu0 0.0
  %1631 = vmatprep.subr.mxu0 0.0
  %1632 = vmatpush1.msra.mxu0 0.0
  %1633 = vmatprep.subr.mxu0 0.0
  %1634 = vmatpush1.msra.mxu0 0.0
  %1635 = vmatprep.subr.mxu0 0.0
  %1636 = vmatpush1.msra.mxu0 0.0
  %1637 = vmatprep.subr.mxu0 0.0
  %1638 = vmatpush1.msra.mxu0 0.0
  %1639 = vmatprep.subr.mxu0 0.0
  %1640 = vmatpush1.msra.mxu0 0.0
  %1641 = vmatprep.subr.mxu0 0.0
  %1642 = vmatpush1.msra.mxu0 0.0
  %1643 = vmatprep.subr.mxu0 0.0
  %1644 = vmatpush1.msra.mxu0 0.0
  %1645 = vmatprep.subr.mxu0 0.0
  %1646 = vmatpush1.msra.mxu0 0.0
  %1647 = vmatprep.subr.mxu0 0.0
  %1648 = vmatpush1.msra.mxu0 0.0
  %1649 = vmatprep.mubr.f32.mxu0 0.0
  %1650 = vmatmul.mubr.f32.gmra.mrb[0].mxu0 %v1580
  %v1651 = vpop.f32.mrb[0].mxu0
  %v1652 = vadd.f32 0.0, %v1651
  %v1653 = vpop.f32.mrb[0].mxu0
  %1654 = vmatprep.mubr.f32.mxu0 0.0
  %1655 = vmatmul.mubr.f32.gmra.mrb[0].mxu0 %v1583
  %v1656 = vpop.f32.mrb[0].mxu0
  %v1657 = vadd.f32 0.0, %v1656
  %v1658 = vpop.f32.mrb[0].mxu0
  %1659 = vdwg.mxu0
  %1660 = vrot.lane.b32.xlu0 %v204, 56
  %v1661 = vpop.permute.xlu0 %1660
  %1662 = vrot.lane.b32.xlu0 %v205, 56
  %v1663 = vpop.permute.xlu0 %1662
  %v1667 = vsel %vm581, %v1482, 0
  %v1670 = vsel %vm581, %v1483, 0
  %1672 = vmatprep.subr.mxu0 0.0
  %1673 = vmatpush1.msra.mxu0 %v1661
  %1674 = vmatprep.subr.mxu0 0.0
  %1675 = vmatpush1.msra.mxu0 %v1663
  %1676 = vmatprep.subr.mxu0 0.0
  %1677 = vmatpush1.msra.mxu0 0.0
  %1678 = vmatprep.subr.mxu0 0.0
  %1679 = vmatpush1.msra.mxu0 0.0
  %1680 = vmatprep.subr.mxu0 0.0
  %1681 = vmatpush1.msra.mxu0 0.0
  %1682 = vmatprep.subr.mxu0 0.0
  %1683 = vmatpush1.msra.mxu0 0.0
  %1684 = vmatprep.subr.mxu0 0.0
  %1685 = vmatpush1.msra.mxu0 0.0
  %1686 = vmatprep.subr.mxu0 0.0
  %1687 = vmatpush1.msra.mxu0 0.0
  %1688 = vmatprep.subr.mxu0 0.0
  %1689 = vmatpush1.msra.mxu0 0.0
  %1690 = vmatprep.subr.mxu0 0.0
  %1691 = vmatpush1.msra.mxu0 0.0
  %1692 = vmatprep.subr.mxu0 0.0
  %1693 = vmatpush1.msra.mxu0 0.0
  %1694 = vmatprep.subr.mxu0 0.0
  %1695 = vmatpush1.msra.mxu0 0.0
  %1696 = vmatprep.subr.mxu0 0.0
  %1697 = vmatpush1.msra.mxu0 0.0
  %1698 = vmatprep.subr.mxu0 0.0
  %1699 = vmatpush1.msra.mxu0 0.0
  %1700 = vmatprep.subr.mxu0 0.0
  %1701 = vmatpush1.msra.mxu0 0.0
  %1702 = vmatprep.subr.mxu0 0.0
  %1703 = vmatpush1.msra.mxu0 0.0
  %1704 = vmatprep.subr.mxu0 0.0
  %1705 = vmatpush1.msra.mxu0 0.0
  %1706 = vmatprep.subr.mxu0 0.0
  %1707 = vmatpush1.msra.mxu0 0.0
  %1708 = vmatprep.subr.mxu0 0.0
  %1709 = vmatpush1.msra.mxu0 0.0
  %1710 = vmatprep.subr.mxu0 0.0
  %1711 = vmatpush1.msra.mxu0 0.0
  %1712 = vmatprep.subr.mxu0 0.0
  %1713 = vmatpush1.msra.mxu0 0.0
  %1714 = vmatprep.subr.mxu0 0.0
  %1715 = vmatpush1.msra.mxu0 0.0
  %1716 = vmatprep.subr.mxu0 0.0
  %1717 = vmatpush1.msra.mxu0 0.0
  %1718 = vmatprep.subr.mxu0 0.0
  %1719 = vmatpush1.msra.mxu0 0.0
  %1720 = vmatprep.subr.mxu0 0.0
  %1721 = vmatpush1.msra.mxu0 0.0
  %1722 = vmatprep.subr.mxu0 0.0
  %1723 = vmatpush1.msra.mxu0 0.0
  %1724 = vmatprep.subr.mxu0 0.0
  %1725 = vmatpush1.msra.mxu0 0.0
  %1726 = vmatprep.subr.mxu0 0.0
  %1727 = vmatpush1.msra.mxu0 0.0
  %1728 = vmatprep.subr.mxu0 0.0
  %1729 = vmatpush1.msra.mxu0 0.0
  %1730 = vmatprep.subr.mxu0 0.0
  %1731 = vmatpush1.msra.mxu0 0.0
  %1732 = vmatprep.subr.mxu0 0.0
  %1733 = vmatpush1.msra.mxu0 0.0
  %1734 = vmatprep.subr.mxu0 0.0
  %1735 = vmatpush1.msra.mxu0 0.0
  %1736 = vmatprep.mubr.f32.mxu0 0.0
  %1737 = vmatmul.mubr.f32.gmra.mrb[0].mxu0 %v1667
  %v1738 = vpop.f32.mrb[0].mxu0
  %v1739 = vadd.f32 0.0, %v1738
  %v1740 = vpop.f32.mrb[0].mxu0
  %1741 = vmatprep.mubr.f32.mxu0 0.0
  %1742 = vmatmul.mubr.f32.gmra.mrb[0].mxu0 %v1670
  %v1743 = vpop.f32.mrb[0].mxu0
  %v1744 = vadd.f32 0.0, %v1743
  %v1745 = vpop.f32.mrb[0].mxu0
  %1746 = vdwg.mxu0
  %1747 = vrot.lane.b32.xlu0 %v206, 56
  %v1748 = vpop.permute.xlu0 %1747
  %1749 = vrot.lane.b32.xlu0 %v207, 56
  %v1750 = vpop.permute.xlu0 %1749
  %v1754 = vsel %vm581, %v1484, 0
  %v1757 = vsel %vm581, %v1485, 0
  %1759 = vmatprep.subr.mxu0 0.0
  %1760 = vmatpush1.msra.mxu0 %v1748
  %1761 = vmatprep.subr.mxu0 0.0
  %1762 = vmatpush1.msra.mxu0 %v1750
  %1763 = vmatprep.subr.mxu0 0.0
  %1764 = vmatpush1.msra.mxu0 0.0
  %1765 = vmatprep.subr.mxu0 0.0
  %1766 = vmatpush1.msra.mxu0 0.0
  %1767 = vmatprep.subr.mxu0 0.0
  %1768 = vmatpush1.msra.mxu0 0.0
  %1769 = vmatprep.subr.mxu0 0.0
  %1770 = vmatpush1.msra.mxu0 0.0
  %1771 = vmatprep.subr.mxu0 0.0
  %1772 = vmatpush1.msra.mxu0 0.0
  %1773 = vmatprep.subr.mxu0 0.0
  %1774 = vmatpush1.msra.mxu0 0.0
  %1775 = vmatprep.subr.mxu0 0.0
  %1776 = vmatpush1.msra.mxu0 0.0
  %1777 = vmatprep.subr.mxu0 0.0
  %1778 = vmatpush1.msra.mxu0 0.0
  %1779 = vmatprep.subr.mxu0 0.0
  %1780 = vmatpush1.msra.mxu0 0.0
  %1781 = vmatprep.subr.mxu0 0.0
  %1782 = vmatpush1.msra.mxu0 0.0
  %1783 = vmatprep.subr.mxu0 0.0
  %1784 = vmatpush1.msra.mxu0 0.0
  %1785 = vmatprep.subr.mxu0 0.0
  %1786 = vmatpush1.msra.mxu0 0.0
  %1787 = vmatprep.subr.mxu0 0.0
  %1788 = vmatpush1.msra.mxu0 0.0
  %1789 = vmatprep.subr.mxu0 0.0
  %1790 = vmatpush1.msra.mxu0 0.0
  %1791 = vmatprep.subr.mxu0 0.0
  %1792 = vmatpush1.msra.mxu0 0.0
  %1793 = vmatprep.subr.mxu0 0.0
  %1794 = vmatpush1.msra.mxu0 0.0
  %1795 = vmatprep.subr.mxu0 0.0
  %1796 = vmatpush1.msra.mxu0 0.0
  %1797 = vmatprep.subr.mxu0 0.0
  %1798 = vmatpush1.msra.mxu0 0.0
  %1799 = vmatprep.subr.mxu0 0.0
  %1800 = vmatpush1.msra.mxu0 0.0
  %1801 = vmatprep.subr.mxu0 0.0
  %1802 = vmatpush1.msra.mxu0 0.0
  %1803 = vmatprep.subr.mxu0 0.0
  %1804 = vmatpush1.msra.mxu0 0.0
  %1805 = vmatprep.subr.mxu0 0.0
  %1806 = vmatpush1.msra.mxu0 0.0
  %1807 = vmatprep.subr.mxu0 0.0
  %1808 = vmatpush1.msra.mxu0 0.0
  %1809 = vmatprep.subr.mxu0 0.0
  %1810 = vmatpush1.msra.mxu0 0.0
  %1811 = vmatprep.subr.mxu0 0.0
  %1812 = vmatpush1.msra.mxu0 0.0
  %1813 = vmatprep.subr.mxu0 0.0
  %1814 = vmatpush1.msra.mxu0 0.0
  %1815 = vmatprep.subr.mxu0 0.0
  %1816 = vmatpush1.msra.mxu0 0.0
  %1817 = vmatprep.subr.mxu0 0.0
  %1818 = vmatpush1.msra.mxu0 0.0
  %1819 = vmatprep.subr.mxu0 0.0
  %1820 = vmatpush1.msra.mxu0 0.0
  %1821 = vmatprep.subr.mxu0 0.0
  %1822 = vmatpush1.msra.mxu0 0.0
  %1823 = vmatprep.mubr.f32.mxu0 0.0
  %1824 = vmatmul.mubr.f32.gmra.mrb[0].mxu0 %v1754
  %v1825 = vpop.f32.mrb[0].mxu0
  %v1826 = vadd.f32 0.0, %v1825
  %v1827 = vpop.f32.mrb[0].mxu0
  %1828 = vmatprep.mubr.f32.mxu0 0.0
  %1829 = vmatmul.mubr.f32.gmra.mrb[0].mxu0 %v1757
  %v1830 = vpop.f32.mrb[0].mxu0
  %v1831 = vadd.f32 0.0, %v1830
  %v1832 = vpop.f32.mrb[0].mxu0
  %1833 = vdwg.mxu0
  %1835 = vrot.lane.b32.xlu0 %v29, 32
  %v1836 = vpop.permute.xlu0 %1835
  %v1839 = vsel %vm214, %v1565, 0
  %v1842 = vsel %vm214, %v1570, 0
  %v1845 = vsel %vm214, %v1652, 0
  %v1848 = vsel %vm214, %v1657, 0
  %v1851 = vsel %vm214, %v1739, 0
  %v1854 = vsel %vm214, %v1744, 0
  %v1857 = vsel %vm214, %v1826, 0
  %v1860 = vsel %vm214, %v1831, 0
  %1862 = vmatprep.subr.mxu0 0.0
  %1863 = vmatpush1.msra.mxu0 %v1836
  %1864 = vmatprep.subr.mxu0 0.0
  %1865 = vmatpush1.msra.mxu0 0.0
  %1866 = vmatprep.subr.mxu0 0.0
  %1867 = vmatpush1.msra.mxu0 0.0
  %1868 = vmatprep.subr.mxu0 0.0
  %1869 = vmatpush1.msra.mxu0 0.0
  %1870 = vmatprep.subr.mxu0 0.0
  %1871 = vmatpush1.msra.mxu0 0.0
  %1872 = vmatprep.subr.mxu0 0.0
  %1873 = vmatpush1.msra.mxu0 0.0
  %1874 = vmatprep.subr.mxu0 0.0
  %1875 = vmatpush1.msra.mxu0 0.0
  %1876 = vmatprep.subr.mxu0 0.0
  %1877 = vmatpush1.msra.mxu0 0.0
  %1878 = vmatprep.subr.mxu0 0.0
  %1879 = vmatpush1.msra.mxu0 0.0
  %1880 = vmatprep.subr.mxu0 0.0
  %1881 = vmatpush1.msra.mxu0 0.0
  %1882 = vmatprep.subr.mxu0 0.0
  %1883 = vmatpush1.msra.mxu0 0.0
  %1884 = vmatprep.subr.mxu0 0.0
  %1885 = vmatpush1.msra.mxu0 0.0
  %1886 = vmatprep.subr.mxu0 0.0
  %1887 = vmatpush1.msra.mxu0 0.0
  %1888 = vmatprep.subr.mxu0 0.0
  %1889 = vmatpush1.msra.mxu0 0.0
  %1890 = vmatprep.subr.mxu0 0.0
  %1891 = vmatpush1.msra.mxu0 0.0
  %1892 = vmatprep.subr.mxu0 0.0
  %1893 = vmatpush1.msra.mxu0 0.0
  %1894 = vmatprep.subr.mxu0 0.0
  %1895 = vmatpush1.msra.mxu0 0.0
  %1896 = vmatprep.subr.mxu0 0.0
  %1897 = vmatpush1.msra.mxu0 0.0
  %1898 = vmatprep.subr.mxu0 0.0
  %1899 = vmatpush1.msra.mxu0 0.0
  %1900 = vmatprep.subr.mxu0 0.0
  %1901 = vmatpush1.msra.mxu0 0.0
  %1902 = vmatprep.subr.mxu0 0.0
  %1903 = vmatpush1.msra.mxu0 0.0
  %1904 = vmatprep.subr.mxu0 0.0
  %1905 = vmatpush1.msra.mxu0 0.0
  %1906 = vmatprep.subr.mxu0 0.0
  %1907 = vmatpush1.msra.mxu0 0.0
  %1908 = vmatprep.subr.mxu0 0.0
  %1909 = vmatpush1.msra.mxu0 0.0
  %1910 = vmatprep.subr.mxu0 0.0
  %1911 = vmatpush1.msra.mxu0 0.0
  %1912 = vmatprep.subr.mxu0 0.0
  %1913 = vmatpush1.msra.mxu0 0.0
  %1914 = vmatprep.subr.mxu0 0.0
  %1915 = vmatpush1.msra.mxu0 0.0
  %1916 = vmatprep.subr.mxu0 0.0
  %1917 = vmatpush1.msra.mxu0 0.0
  %1918 = vmatprep.subr.mxu0 0.0
  %1919 = vmatpush1.msra.mxu0 0.0
  %1920 = vmatprep.subr.mxu0 0.0
  %1921 = vmatpush1.msra.mxu0 0.0
  %1922 = vmatprep.subr.mxu0 0.0
  %1923 = vmatpush1.msra.mxu0 0.0
  %1924 = vmatprep.subr.mxu0 0.0
  %1925 = vmatpush1.msra.mxu0 0.0
  %1926 = vmatprep.mubr.f32.mxu0 0.0
  %1927 = vmatmul.mubr.f32.gmra.mrb[0].mxu0 %v1839
  %v1928 = vpop.f32.mrb[0].mxu0
  %v1929 = vadd.f32 0.0, %v1928
  %v1930 = vpop.f32.mrb[0].mxu0
  %1931 = vmatprep.mubr.f32.mxu0 0.0
  %1932 = vmatmul.mubr.f32.gmra.mrb[0].mxu0 %v1842
  %v1933 = vpop.f32.mrb[0].mxu0
  %v1934 = vadd.f32 0.0, %v1933
  %v1935 = vpop.f32.mrb[0].mxu0
  %1936 = vmatprep.mubr.f32.mxu0 0.0
  %1937 = vmatmul.mubr.f32.gmra.mrb[0].mxu0 %v1845
  %v1938 = vpop.f32.mrb[0].mxu0
  %v1939 = vadd.f32 0.0, %v1938
  %v1940 = vpop.f32.mrb[0].mxu0
  %1941 = vmatprep.mubr.f32.mxu0 0.0
  %1942 = vmatmul.mubr.f32.gmra.mrb[0].mxu0 %v1848
  %v1943 = vpop.f32.mrb[0].mxu0
  %v1944 = vadd.f32 0.0, %v1943
  %v1945 = vpop.f32.mrb[0].mxu0
  %1946 = vmatprep.mubr.f32.mxu0 0.0
  %1947 = vmatmul.mubr.f32.gmra.mrb[0].mxu0 %v1851
  %v1948 = vpop.f32.mrb[0].mxu0
  %v1949 = vadd.f32 0.0, %v1948
  %v1950 = vpop.f32.mrb[0].mxu0
  %1951 = vmatprep.mubr.f32.mxu0 0.0
  %1952 = vmatmul.mubr.f32.gmra.mrb[0].mxu0 %v1854
  %v1953 = vpop.f32.mrb[0].mxu0
  %v1954 = vadd.f32 0.0, %v1953
  %v1955 = vpop.f32.mrb[0].mxu0
  %1956 = vmatprep.mubr.f32.mxu0 0.0
  %1957 = vmatmul.mubr.f32.gmra.mrb[0].mxu0 %v1857
  %v1958 = vpop.f32.mrb[0].mxu0
  %v1959 = vadd.f32 0.0, %v1958
  %v1960 = vpop.f32.mrb[0].mxu0
  %1961 = vmatprep.mubr.f32.mxu0 0.0
  %1962 = vmatmul.mubr.f32.gmra.mrb[0].mxu0 %v1860
  %v1963 = vpop.f32.mrb[0].mxu0
  %v1964 = vadd.f32 0.0, %v1963
  %v1965 = vpop.f32.mrb[0].mxu0
  %1966 = vdwg.mxu0
  %1968 = vrot.lane.b32.xlu0 %v28, 32
  %v1969 = vpop.permute.xlu0 %1968
  %v1972 = vsel %vm214, %v751, 0
  %v1975 = vsel %vm214, %v756, 0
  %v1978 = vsel %vm214, %v840, 0
  %v1981 = vsel %vm214, %v845, 0
  %v1984 = vsel %vm214, %v929, 0
  %v1987 = vsel %vm214, %v934, 0
  %v1990 = vsel %vm214, %v1018, 0
  %v1993 = vsel %vm214, %v1023, 0
  %1995 = vmatprep.subr.mxu0 0.0
  %1996 = vmatpush1.msra.mxu0 %v1969
  %1997 = vmatprep.subr.mxu0 0.0
  %1998 = vmatpush1.msra.mxu0 0.0
  %1999 = vmatprep.subr.mxu0 0.0
  %2000 = vmatpush1.msra.mxu0 0.0
  %2001 = vmatprep.subr.mxu0 0.0
  %2002 = vmatpush1.msra.mxu0 0.0
  %2003 = vmatprep.subr.mxu0 0.0
  %2004 = vmatpush1.msra.mxu0 0.0
  %2005 = vmatprep.subr.mxu0 0.0
  %2006 = vmatpush1.msra.mxu0 0.0
  %2007 = vmatprep.subr.mxu0 0.0
  %2008 = vmatpush1.msra.mxu0 0.0
  %2009 = vmatprep.subr.mxu0 0.0
  %2010 = vmatpush1.msra.mxu0 0.0
  %2011 = vmatprep.subr.mxu0 0.0
  %2012 = vmatpush1.msra.mxu0 0.0
  %2013 = vmatprep.subr.mxu0 0.0
  %2014 = vmatpush1.msra.mxu0 0.0
  %2015 = vmatprep.subr.mxu0 0.0
  %2016 = vmatpush1.msra.mxu0 0.0
  %2017 = vmatprep.subr.mxu0 0.0
  %2018 = vmatpush1.msra.mxu0 0.0
  %2019 = vmatprep.subr.mxu0 0.0
  %2020 = vmatpush1.msra.mxu0 0.0
  %2021 = vmatprep.subr.mxu0 0.0
  %2022 = vmatpush1.msra.mxu0 0.0
  %2023 = vmatprep.subr.mxu0 0.0
  %2024 = vmatpush1.msra.mxu0 0.0
  %2025 = vmatprep.subr.mxu0 0.0
  %2026 = vmatpush1.msra.mxu0 0.0
  %2027 = vmatprep.subr.mxu0 0.0
  %2028 = vmatpush1.msra.mxu0 0.0
  %2029 = vmatprep.subr.mxu0 0.0
  %2030 = vmatpush1.msra.mxu0 0.0
  %2031 = vmatprep.subr.mxu0 0.0
  %2032 = vmatpush1.msra.mxu0 0.0
  %2033 = vmatprep.subr.mxu0 0.0
  %2034 = vmatpush1.msra.mxu0 0.0
  %2035 = vmatprep.subr.mxu0 0.0
  %2036 = vmatpush1.msra.mxu0 0.0
  %2037 = vmatprep.subr.mxu0 0.0
  %2038 = vmatpush1.msra.mxu0 0.0
  %2039 = vmatprep.subr.mxu0 0.0
  %2040 = vmatpush1.msra.mxu0 0.0
  %2041 = vmatprep.subr.mxu0 0.0
  %2042 = vmatpush1.msra.mxu0 0.0
  %2043 = vmatprep.subr.mxu0 0.0
  %2044 = vmatpush1.msra.mxu0 0.0
  %2045 = vmatprep.subr.mxu0 0.0
  %2046 = vmatpush1.msra.mxu0 0.0
  %2047 = vmatprep.subr.mxu0 0.0
  %2048 = vmatpush1.msra.mxu0 0.0
  %2049 = vmatprep.subr.mxu0 0.0
  %2050 = vmatpush1.msra.mxu0 0.0
  %2051 = vmatprep.subr.mxu0 0.0
  %2052 = vmatpush1.msra.mxu0 0.0
  %2053 = vmatprep.subr.mxu0 0.0
  %2054 = vmatpush1.msra.mxu0 0.0
  %2055 = vmatprep.subr.mxu0 0.0
  %2056 = vmatpush1.msra.mxu0 0.0
  %2057 = vmatprep.subr.mxu0 0.0
  %2058 = vmatpush1.msra.mxu0 0.0
  %2059 = vmatprep.mubr.f32.mxu0 0.0
  %2060 = vmatmul.mubr.f32.gmra.mrb[0].mxu0 %v1972
  %v2061 = vpop.f32.mrb[0].mxu0
  %v2062 = vadd.f32 %v1929, %v2061
  %v2063 = vpop.f32.mrb[0].mxu0
  %2064 = vmatprep.mubr.f32.mxu0 0.0
  %2065 = vmatmul.mubr.f32.gmra.mrb[0].mxu0 %v1975
  %v2066 = vpop.f32.mrb[0].mxu0
  %v2067 = vadd.f32 %v1934, %v2066
  %v2068 = vpop.f32.mrb[0].mxu0
  %2069 = vmatprep.mubr.f32.mxu0 0.0
  %2070 = vmatmul.mubr.f32.gmra.mrb[0].mxu0 %v1978
  %v2071 = vpop.f32.mrb[0].mxu0
  %v2072 = vadd.f32 %v1939, %v2071
  %v2073 = vpop.f32.mrb[0].mxu0
  %2074 = vmatprep.mubr.f32.mxu0 0.0
  %2075 = vmatmul.mubr.f32.gmra.mrb[0].mxu0 %v1981
  %v2076 = vpop.f32.mrb[0].mxu0
  %v2077 = vadd.f32 %v1944, %v2076
  %v2078 = vpop.f32.mrb[0].mxu0
  %2079 = vmatprep.mubr.f32.mxu0 0.0
  %2080 = vmatmul.mubr.f32.gmra.mrb[0].mxu0 %v1984
  %v2081 = vpop.f32.mrb[0].mxu0
  %v2082 = vadd.f32 %v1949, %v2081
  %v2083 = vpop.f32.mrb[0].mxu0
  %2084 = vmatprep.mubr.f32.mxu0 0.0
  %2085 = vmatmul.mubr.f32.gmra.mrb[0].mxu0 %v1987
  %v2086 = vpop.f32.mrb[0].mxu0
  %v2087 = vadd.f32 %v1954, %v2086
  %v2088 = vpop.f32.mrb[0].mxu0
  %2089 = vmatprep.mubr.f32.mxu0 0.0
  %2090 = vmatmul.mubr.f32.gmra.mrb[0].mxu0 %v1990
  %v2091 = vpop.f32.mrb[0].mxu0
  %v2092 = vadd.f32 %v1959, %v2091
  %v2093 = vpop.f32.mrb[0].mxu0
  %2094 = vmatprep.mubr.f32.mxu0 0.0
  %2095 = vmatmul.mubr.f32.gmra.mrb[0].mxu0 %v1993
  %v2096 = vpop.f32.mrb[0].mxu0
  %v2097 = vadd.f32 %v1964, %v2096
  %v2098 = vpop.f32.mrb[0].mxu0
  %2099 = vdwg.mxu0
  %2100 = vrot.lane.b32.xlu0 %v168, 112
  %v2101 = vpop.permute.xlu0 %2100
  %2102 = vrot.lane.b32.xlu0 %v169, 112
  %v2103 = vpop.permute.xlu0 %2102
  %2104 = vrot.lane.b32.xlu0 %v184, 80
  %v2105 = vpop.permute.xlu0 %2104
  %2106 = vrot.lane.b32.xlu0 %v185, 80
  %v2107 = vpop.permute.xlu0 %2106
  %v2108 = vsel %vm214, %v2101, 0
  %v2110 = vsel %vm214, %v2103, 0
  %v2112 = vsel %vm214, %v2105, 0
  %v2114 = vsel %vm214, %v2107, 0
  %2116 = vmatprep.subr.mxu0 0.0
  %2117 = vmatpush1.xpose.msra.mxu0 %v2112
  %2118 = vmatprep.subr.mxu0 0.0
  %2119 = vmatpush1.xpose.msra.mxu0 %v2114
  %2120 = vmatprep.subr.mxu0 0.0
  %2121 = vmatpush1.xpose.msra.mxu0 0.0
  %2122 = vmatprep.subr.mxu0 0.0
  %2123 = vmatpush1.xpose.msra.mxu0 0.0
  %2124 = vmatprep.subr.mxu0 0.0
  %2125 = vmatpush1.xpose.msra.mxu0 0.0
  %2126 = vmatprep.subr.mxu0 0.0
  %2127 = vmatpush1.xpose.msra.mxu0 0.0
  %2128 = vmatprep.subr.mxu0 0.0
  %2129 = vmatpush1.xpose.msra.mxu0 0.0
  %2130 = vmatprep.subr.mxu0 0.0
  %2131 = vmatpush1.xpose.msra.mxu0 0.0
  %2132 = vmatprep.subr.mxu0 0.0
  %2133 = vmatpush1.xpose.msra.mxu0 0.0
  %2134 = vmatprep.subr.mxu0 0.0
  %2135 = vmatpush1.xpose.msra.mxu0 0.0
  %2136 = vmatprep.subr.mxu0 0.0
  %2137 = vmatpush1.xpose.msra.mxu0 0.0
  %2138 = vmatprep.subr.mxu0 0.0
  %2139 = vmatpush1.xpose.msra.mxu0 0.0
  %2140 = vmatprep.subr.mxu0 0.0
  %2141 = vmatpush1.xpose.msra.mxu0 0.0
  %2142 = vmatprep.subr.mxu0 0.0
  %2143 = vmatpush1.xpose.msra.mxu0 0.0
  %2144 = vmatprep.subr.mxu0 0.0
  %2145 = vmatpush1.xpose.msra.mxu0 0.0
  %2146 = vmatprep.subr.mxu0 0.0
  %2147 = vmatpush1.xpose.msra.mxu0 0.0
  %2148 = vmatprep.subr.mxu0 0.0
  %2149 = vmatpush1.xpose.msra.mxu0 0.0
  %2150 = vmatprep.subr.mxu0 0.0
  %2151 = vmatpush1.xpose.msra.mxu0 0.0
  %2152 = vmatprep.subr.mxu0 0.0
  %2153 = vmatpush1.xpose.msra.mxu0 0.0
  %2154 = vmatprep.subr.mxu0 0.0
  %2155 = vmatpush1.xpose.msra.mxu0 0.0
  %2156 = vmatprep.subr.mxu0 0.0
  %2157 = vmatpush1.xpose.msra.mxu0 0.0
  %2158 = vmatprep.subr.mxu0 0.0
  %2159 = vmatpush1.xpose.msra.mxu0 0.0
  %2160 = vmatprep.subr.mxu0 0.0
  %2161 = vmatpush1.xpose.msra.mxu0 0.0
  %2162 = vmatprep.subr.mxu0 0.0
  %2163 = vmatpush1.xpose.msra.mxu0 0.0
  %2164 = vmatprep.subr.mxu0 0.0
  %2165 = vmatpush1.xpose.msra.mxu0 0.0
  %2166 = vmatprep.subr.mxu0 0.0
  %2167 = vmatpush1.xpose.msra.mxu0 0.0
  %2168 = vmatprep.subr.mxu0 0.0
  %2169 = vmatpush1.xpose.msra.mxu0 0.0
  %2170 = vmatprep.subr.mxu0 0.0
  %2171 = vmatpush1.xpose.msra.mxu0 0.0
  %2172 = vmatprep.subr.mxu0 0.0
  %2173 = vmatpush1.xpose.msra.mxu0 0.0
  %2174 = vmatprep.subr.mxu0 0.0
  %2175 = vmatpush1.xpose.msra.mxu0 0.0
  %2176 = vmatprep.subr.mxu0 0.0
  %2177 = vmatpush1.xpose.msra.mxu0 0.0
  %2178 = vmatprep.subr.mxu0 0.0
  %2179 = vmatpush1.xpose.msra.mxu0 0.0
  %2180 = vmatprep.mubr.f32.mxu0 0.0
  %2181 = vmatmul.mubr.f32.gmra.mrb[0].mxu0 %v2108
  %v2182 = vpop.f32.mrb[0].mxu0
  %v2183 = vadd.f32 0.0, %v2182
  %v2184 = vpop.f32.mrb[0].mxu0
  %2185 = vmatprep.mubr.f32.mxu0 0.0
  %2186 = vmatmul.mubr.f32.gmra.mrb[0].mxu0 %v2110
  %v2187 = vpop.f32.mrb[0].mxu0
  %v2188 = vadd.f32 0.0, %v2187
  %v2189 = vpop.f32.mrb[0].mxu0
  %2190 = vdwg.mxu0
  %2191 = vrot.lane.b32.xlu0 %v170, 112
  %v2192 = vpop.permute.xlu0 %2191
  %2193 = vrot.lane.b32.xlu0 %v171, 112
  %v2194 = vpop.permute.xlu0 %2193
  %2195 = vrot.lane.b32.xlu0 %v186, 80
  %v2196 = vpop.permute.xlu0 %2195
  %2197 = vrot.lane.b32.xlu0 %v187, 80
  %v2198 = vpop.permute.xlu0 %2197
  %v2199 = vsel %vm214, %v2192, 0
  %v2201 = vsel %vm214, %v2194, 0
  %v2203 = vsel %vm214, %v2196, 0
  %v2205 = vsel %vm214, %v2198, 0
  %2207 = vmatprep.subr.mxu0 0.0
  %2208 = vmatpush1.xpose.msra.mxu0 %v2203
  %2209 = vmatprep.subr.mxu0 0.0
  %2210 = vmatpush1.xpose.msra.mxu0 %v2205
  %2211 = vmatprep.subr.mxu0 0.0
  %2212 = vmatpush1.xpose.msra.mxu0 0.0
  %2213 = vmatprep.subr.mxu0 0.0
  %2214 = vmatpush1.xpose.msra.mxu0 0.0
  %2215 = vmatprep.subr.mxu0 0.0
  %2216 = vmatpush1.xpose.msra.mxu0 0.0
  %2217 = vmatprep.subr.mxu0 0.0
  %2218 = vmatpush1.xpose.msra.mxu0 0.0
  %2219 = vmatprep.subr.mxu0 0.0
  %2220 = vmatpush1.xpose.msra.mxu0 0.0
  %2221 = vmatprep.subr.mxu0 0.0
  %2222 = vmatpush1.xpose.msra.mxu0 0.0
  %2223 = vmatprep.subr.mxu0 0.0
  %2224 = vmatpush1.xpose.msra.mxu0 0.0
  %2225 = vmatprep.subr.mxu0 0.0
  %2226 = vmatpush1.xpose.msra.mxu0 0.0
  %2227 = vmatprep.subr.mxu0 0.0
  %2228 = vmatpush1.xpose.msra.mxu0 0.0
  %2229 = vmatprep.subr.mxu0 0.0
  %2230 = vmatpush1.xpose.msra.mxu0 0.0
  %2231 = vmatprep.subr.mxu0 0.0
  %2232 = vmatpush1.xpose.msra.mxu0 0.0
  %2233 = vmatprep.subr.mxu0 0.0
  %2234 = vmatpush1.xpose.msra.mxu0 0.0
  %2235 = vmatprep.subr.mxu0 0.0
  %2236 = vmatpush1.xpose.msra.mxu0 0.0
  %2237 = vmatprep.subr.mxu0 0.0
  %2238 = vmatpush1.xpose.msra.mxu0 0.0
  %2239 = vmatprep.subr.mxu0 0.0
  %2240 = vmatpush1.xpose.msra.mxu0 0.0
  %2241 = vmatprep.subr.mxu0 0.0
  %2242 = vmatpush1.xpose.msra.mxu0 0.0
  %2243 = vmatprep.subr.mxu0 0.0
  %2244 = vmatpush1.xpose.msra.mxu0 0.0
  %2245 = vmatprep.subr.mxu0 0.0
  %2246 = vmatpush1.xpose.msra.mxu0 0.0
  %2247 = vmatprep.subr.mxu0 0.0
  %2248 = vmatpush1.xpose.msra.mxu0 0.0
  %2249 = vmatprep.subr.mxu0 0.0
  %2250 = vmatpush1.xpose.msra.mxu0 0.0
  %2251 = vmatprep.subr.mxu0 0.0
  %2252 = vmatpush1.xpose.msra.mxu0 0.0
  %2253 = vmatprep.subr.mxu0 0.0
  %2254 = vmatpush1.xpose.msra.mxu0 0.0
  %2255 = vmatprep.subr.mxu0 0.0
  %2256 = vmatpush1.xpose.msra.mxu0 0.0
  %2257 = vmatprep.subr.mxu0 0.0
  %2258 = vmatpush1.xpose.msra.mxu0 0.0
  %2259 = vmatprep.subr.mxu0 0.0
  %2260 = vmatpush1.xpose.msra.mxu0 0.0
  %2261 = vmatprep.subr.mxu0 0.0
  %2262 = vmatpush1.xpose.msra.mxu0 0.0
  %2263 = vmatprep.subr.mxu0 0.0
  %2264 = vmatpush1.xpose.msra.mxu0 0.0
  %2265 = vmatprep.subr.mxu0 0.0
  %2266 = vmatpush1.xpose.msra.mxu0 0.0
  %2267 = vmatprep.subr.mxu0 0.0
  %2268 = vmatpush1.xpose.msra.mxu0 0.0
  %2269 = vmatprep.subr.mxu0 0.0
  %2270 = vmatpush1.xpose.msra.mxu0 0.0
  %2271 = vmatprep.mubr.f32.mxu0 0.0
  %2272 = vmatmul.mubr.f32.gmra.mrb[0].mxu0 %v2199
  %v2273 = vpop.f32.mrb[0].mxu0
  %v2274 = vadd.f32 0.0, %v2273
  %v2275 = vpop.f32.mrb[0].mxu0
  %2276 = vmatprep.mubr.f32.mxu0 0.0
  %2277 = vmatmul.mubr.f32.gmra.mrb[0].mxu0 %v2201
  %v2278 = vpop.f32.mrb[0].mxu0
  %v2279 = vadd.f32 0.0, %v2278
  %v2280 = vpop.f32.mrb[0].mxu0
  %2281 = vdwg.mxu0
  %2282 = vrot.lane.b32.xlu0 %v172, 112
  %v2283 = vpop.permute.xlu0 %2282
  %2284 = vrot.lane.b32.xlu0 %v173, 112
  %v2285 = vpop.permute.xlu0 %2284
  %2286 = vrot.lane.b32.xlu0 %v188, 80
  %v2287 = vpop.permute.xlu0 %2286
  %2288 = vrot.lane.b32.xlu0 %v189, 80
  %v2289 = vpop.permute.xlu0 %2288
  %v2290 = vsel %vm214, %v2283, 0
  %v2292 = vsel %vm214, %v2285, 0
  %v2294 = vsel %vm214, %v2287, 0
  %v2296 = vsel %vm214, %v2289, 0
  %2298 = vmatprep.subr.mxu0 0.0
  %2299 = vmatpush1.xpose.msra.mxu0 %v2294
  %2300 = vmatprep.subr.mxu0 0.0
  %2301 = vmatpush1.xpose.msra.mxu0 %v2296
  %2302 = vmatprep.subr.mxu0 0.0
  %2303 = vmatpush1.xpose.msra.mxu0 0.0
  %2304 = vmatprep.subr.mxu0 0.0
  %2305 = vmatpush1.xpose.msra.mxu0 0.0
  %2306 = vmatprep.subr.mxu0 0.0
  %2307 = vmatpush1.xpose.msra.mxu0 0.0
  %2308 = vmatprep.subr.mxu0 0.0
  %2309 = vmatpush1.xpose.msra.mxu0 0.0
  %2310 = vmatprep.subr.mxu0 0.0
  %2311 = vmatpush1.xpose.msra.mxu0 0.0
  %2312 = vmatprep.subr.mxu0 0.0
  %2313 = vmatpush1.xpose.msra.mxu0 0.0
  %2314 = vmatprep.subr.mxu0 0.0
  %2315 = vmatpush1.xpose.msra.mxu0 0.0
  %2316 = vmatprep.subr.mxu0 0.0
  %2317 = vmatpush1.xpose.msra.mxu0 0.0
  %2318 = vmatprep.subr.mxu0 0.0
  %2319 = vmatpush1.xpose.msra.mxu0 0.0
  %2320 = vmatprep.subr.mxu0 0.0
  %2321 = vmatpush1.xpose.msra.mxu0 0.0
  %2322 = vmatprep.subr.mxu0 0.0
  %2323 = vmatpush1.xpose.msra.mxu0 0.0
  %2324 = vmatprep.subr.mxu0 0.0
  %2325 = vmatpush1.xpose.msra.mxu0 0.0
  %2326 = vmatprep.subr.mxu0 0.0
  %2327 = vmatpush1.xpose.msra.mxu0 0.0
  %2328 = vmatprep.subr.mxu0 0.0
  %2329 = vmatpush1.xpose.msra.mxu0 0.0
  %2330 = vmatprep.subr.mxu0 0.0
  %2331 = vmatpush1.xpose.msra.mxu0 0.0
  %2332 = vmatprep.subr.mxu0 0.0
  %2333 = vmatpush1.xpose.msra.mxu0 0.0
  %2334 = vmatprep.subr.mxu0 0.0
  %2335 = vmatpush1.xpose.msra.mxu0 0.0
  %2336 = vmatprep.subr.mxu0 0.0
  %2337 = vmatpush1.xpose.msra.mxu0 0.0
  %2338 = vmatprep.subr.mxu0 0.0
  %2339 = vmatpush1.xpose.msra.mxu0 0.0
  %2340 = vmatprep.subr.mxu0 0.0
  %2341 = vmatpush1.xpose.msra.mxu0 0.0
  %2342 = vmatprep.subr.mxu0 0.0
  %2343 = vmatpush1.xpose.msra.mxu0 0.0
  %2344 = vmatprep.subr.mxu0 0.0
  %2345 = vmatpush1.xpose.msra.mxu0 0.0
  %2346 = vmatprep.subr.mxu0 0.0
  %2347 = vmatpush1.xpose.msra.mxu0 0.0
  %2348 = vmatprep.subr.mxu0 0.0
  %2349 = vmatpush1.xpose.msra.mxu0 0.0
  %2350 = vmatprep.subr.mxu0 0.0
  %2351 = vmatpush1.xpose.msra.mxu0 0.0
  %2352 = vmatprep.subr.mxu0 0.0
  %2353 = vmatpush1.xpose.msra.mxu0 0.0
  %2354 = vmatprep.subr.mxu0 0.0
  %2355 = vmatpush1.xpose.msra.mxu0 0.0
  %2356 = vmatprep.subr.mxu0 0.0
  %2357 = vmatpush1.xpose.msra.mxu0 0.0
  %2358 = vmatprep.subr.mxu0 0.0
  %2359 = vmatpush1.xpose.msra.mxu0 0.0
  %2360 = vmatprep.subr.mxu0 0.0
  %2361 = vmatpush1.xpose.msra.mxu0 0.0
  %2362 = vmatprep.mubr.f32.mxu0 0.0
  %2363 = vmatmul.mubr.f32.gmra.mrb[0].mxu0 %v2290
  %v2364 = vpop.f32.mrb[0].mxu0
  %v2365 = vadd.f32 0.0, %v2364
  %v2366 = vpop.f32.mrb[0].mxu0
  %2367 = vmatprep.mubr.f32.mxu0 0.0
  %2368 = vmatmul.mubr.f32.gmra.mrb[0].mxu0 %v2292
  %v2369 = vpop.f32.mrb[0].mxu0
  %v2370 = vadd.f32 0.0, %v2369
  %v2371 = vpop.f32.mrb[0].mxu0
  %2372 = vdwg.mxu0
  %2373 = vrot.lane.b32.xlu0 %v174, 112
  %v2374 = vpop.permute.xlu0 %2373
  %2375 = vrot.lane.b32.xlu0 %v175, 112
  %v2376 = vpop.permute.xlu0 %2375
  %2377 = vrot.lane.b32.xlu0 %v190, 80
  %v2378 = vpop.permute.xlu0 %2377
  %2379 = vrot.lane.b32.xlu0 %v191, 80
  %v2380 = vpop.permute.xlu0 %2379
  %v2381 = vsel %vm214, %v2374, 0
  %v2383 = vsel %vm214, %v2376, 0
  %v2385 = vsel %vm214, %v2378, 0
  %v2387 = vsel %vm214, %v2380, 0
  %2389 = vmatprep.subr.mxu0 0.0
  %2390 = vmatpush1.xpose.msra.mxu0 %v2385
  %2391 = vmatprep.subr.mxu0 0.0
  %2392 = vmatpush1.xpose.msra.mxu0 %v2387
  %2393 = vmatprep.subr.mxu0 0.0
  %2394 = vmatpush1.xpose.msra.mxu0 0.0
  %2395 = vmatprep.subr.mxu0 0.0
  %2396 = vmatpush1.xpose.msra.mxu0 0.0
  %2397 = vmatprep.subr.mxu0 0.0
  %2398 = vmatpush1.xpose.msra.mxu0 0.0
  %2399 = vmatprep.subr.mxu0 0.0
  %2400 = vmatpush1.xpose.msra.mxu0 0.0
  %2401 = vmatprep.subr.mxu0 0.0
  %2402 = vmatpush1.xpose.msra.mxu0 0.0
  %2403 = vmatprep.subr.mxu0 0.0
  %2404 = vmatpush1.xpose.msra.mxu0 0.0
  %2405 = vmatprep.subr.mxu0 0.0
  %2406 = vmatpush1.xpose.msra.mxu0 0.0
  %2407 = vmatprep.subr.mxu0 0.0
  %2408 = vmatpush1.xpose.msra.mxu0 0.0
  %2409 = vmatprep.subr.mxu0 0.0
  %2410 = vmatpush1.xpose.msra.mxu0 0.0
  %2411 = vmatprep.subr.mxu0 0.0
  %2412 = vmatpush1.xpose.msra.mxu0 0.0
  %2413 = vmatprep.subr.mxu0 0.0
  %2414 = vmatpush1.xpose.msra.mxu0 0.0
  %2415 = vmatprep.subr.mxu0 0.0
  %2416 = vmatpush1.xpose.msra.mxu0 0.0
  %2417 = vmatprep.subr.mxu0 0.0
  %2418 = vmatpush1.xpose.msra.mxu0 0.0
  %2419 = vmatprep.subr.mxu0 0.0
  %2420 = vmatpush1.xpose.msra.mxu0 0.0
  %2421 = vmatprep.subr.mxu0 0.0
  %2422 = vmatpush1.xpose.msra.mxu0 0.0
  %2423 = vmatprep.subr.mxu0 0.0
  %2424 = vmatpush1.xpose.msra.mxu0 0.0
  %2425 = vmatprep.subr.mxu0 0.0
  %2426 = vmatpush1.xpose.msra.mxu0 0.0
  %2427 = vmatprep.subr.mxu0 0.0
  %2428 = vmatpush1.xpose.msra.mxu0 0.0
  %2429 = vmatprep.subr.mxu0 0.0
  %2430 = vmatpush1.xpose.msra.mxu0 0.0
  %2431 = vmatprep.subr.mxu0 0.0
  %2432 = vmatpush1.xpose.msra.mxu0 0.0
  %2433 = vmatprep.subr.mxu0 0.0
  %2434 = vmatpush1.xpose.msra.mxu0 0.0
  %2435 = vmatprep.subr.mxu0 0.0
  %2436 = vmatpush1.xpose.msra.mxu0 0.0
  %2437 = vmatprep.subr.mxu0 0.0
  %2438 = vmatpush1.xpose.msra.mxu0 0.0
  %2439 = vmatprep.subr.mxu0 0.0
  %2440 = vmatpush1.xpose.msra.mxu0 0.0
  %2441 = vmatprep.subr.mxu0 0.0
  %2442 = vmatpush1.xpose.msra.mxu0 0.0
  %2443 = vmatprep.subr.mxu0 0.0
  %2444 = vmatpush1.xpose.msra.mxu0 0.0
  %2445 = vmatprep.subr.mxu0 0.0
  %2446 = vmatpush1.xpose.msra.mxu0 0.0
  %2447 = vmatprep.subr.mxu0 0.0
  %2448 = vmatpush1.xpose.msra.mxu0 0.0
  %2449 = vmatprep.subr.mxu0 0.0
  %2450 = vmatpush1.xpose.msra.mxu0 0.0
  %2451 = vmatprep.subr.mxu0 0.0
  %2452 = vmatpush1.xpose.msra.mxu0 0.0
  %2453 = vmatprep.mubr.f32.mxu0 0.0
  %2454 = vmatmul.mubr.f32.gmra.mrb[0].mxu0 %v2381
  %v2455 = vpop.f32.mrb[0].mxu0
  %v2456 = vadd.f32 0.0, %v2455
  %v2457 = vpop.f32.mrb[0].mxu0
  %2458 = vmatprep.mubr.f32.mxu0 0.0
  %2459 = vmatmul.mubr.f32.gmra.mrb[0].mxu0 %v2383
  %v2460 = vpop.f32.mrb[0].mxu0
  %v2461 = vadd.f32 0.0, %v2460
  %v2462 = vpop.f32.mrb[0].mxu0
  %2463 = vdwg.mxu0
  %v2464 = vmul.f32 %v2183, 0.35355338
  %v2465 = vmul.f32 %v2188, 0.35355338
  %v2466 = vmul.f32 %v2274, 0.35355338
  %v2467 = vmul.f32 %v2279, 0.35355338
  %v2468 = vmul.f32 %v2365, 0.35355338
  %v2469 = vmul.f32 %v2370, 0.35355338
  %v2470 = vmul.f32 %v2456, 0.35355338
  %v2471 = vmul.f32 %v2461, 0.35355338
  %v2472 = vsel %vm581, %v2464, -inf
  %2473 = vmax.xlane.f32.xlu0 %v2472
  %v2474 = vpop.xlane.xlu0 %2473
  %v2475 = vsel %vm581, %v2465, -inf
  %2476 = vmax.xlane.f32.xlu0 %v2475
  %v2477 = vpop.xlane.xlu0 %2476
  %v2478 = vsel %vm581, %v2466, -inf
  %2479 = vmax.xlane.f32.xlu0 %v2478
  %v2480 = vpop.xlane.xlu0 %2479
  %v2481 = vsel %vm581, %v2467, -inf
  %2482 = vmax.xlane.f32.xlu0 %v2481
  %v2483 = vpop.xlane.xlu0 %2482
  %v2484 = vsel %vm581, %v2468, -inf
  %2485 = vmax.xlane.f32.xlu0 %v2484
  %v2486 = vpop.xlane.xlu0 %2485
  %v2487 = vsel %vm581, %v2469, -inf
  %2488 = vmax.xlane.f32.xlu0 %v2487
  %v2489 = vpop.xlane.xlu0 %2488
  %v2490 = vsel %vm581, %v2470, -inf
  %2491 = vmax.xlane.f32.xlu0 %v2490
  %v2492 = vpop.xlane.xlu0 %2491
  %v2493 = vsel %vm581, %v2471, -inf
  %2494 = vmax.xlane.f32.xlu0 %v2493
  %v2495 = vpop.xlane.xlu0 %2494
  %v2496 = vsub.f32 %v2464, %v2474
  %v2497 = vsub.f32 %v2465, %v2477
  %v2498 = vsub.f32 %v2466, %v2480
  %v2499 = vsub.f32 %v2467, %v2483
  %v2500 = vsub.f32 %v2468, %v2486
  %v2501 = vsub.f32 %v2469, %v2489
  %v2502 = vsub.f32 %v2470, %v2492
  %v2503 = vsub.f32 %v2471, %v2495
  %v2504 = vmul.f32 %v2496, 1.442695
  %v2505 = vpow.pop %v2504
  %v2506 = vmul.f32 %v2497, 1.442695
  %v2507 = vpow.pop %v2506
  %v2508 = vmul.f32 %v2498, 1.442695
  %v2509 = vpow.pop %v2508
  %v2510 = vmul.f32 %v2499, 1.442695
  %v2511 = vpow.pop %v2510
  %v2512 = vmul.f32 %v2500, 1.442695
  %v2513 = vpow.pop %v2512
  %v2514 = vmul.f32 %v2501, 1.442695
  %v2515 = vpow.pop %v2514
  %v2516 = vmul.f32 %v2502, 1.442695
  %v2517 = vpow.pop %v2516
  %v2518 = vmul.f32 %v2503, 1.442695
  %v2519 = vpow.pop %v2518
  %v2520 = vsel %vm581, %v2505, 0.0
  %2521 = vadd.xlane.f32.xlu0 %v2520
  %v2522 = vpop.xlane.xlu0 %2521
  %v2523 = vsel %vm581, %v2507, 0.0
  %2524 = vadd.xlane.f32.xlu0 %v2523
  %v2525 = vpop.xlane.xlu0 %2524
  %v2526 = vsel %vm581, %v2509, 0.0
  %2527 = vadd.xlane.f32.xlu0 %v2526
  %v2528 = vpop.xlane.xlu0 %2527
  %v2529 = vsel %vm581, %v2511, 0.0
  %2530 = vadd.xlane.f32.xlu0 %v2529
  %v2531 = vpop.xlane.xlu0 %2530
  %v2532 = vsel %vm581, %v2513, 0.0
  %2533 = vadd.xlane.f32.xlu0 %v2532
  %v2534 = vpop.xlane.xlu0 %2533
  %v2535 = vsel %vm581, %v2515, 0.0
  %2536 = vadd.xlane.f32.xlu0 %v2535
  %v2537 = vpop.xlane.xlu0 %2536
  %v2538 = vsel %vm581, %v2517, 0.0
  %2539 = vadd.xlane.f32.xlu0 %v2538
  %v2540 = vpop.xlane.xlu0 %2539
  %v2541 = vsel %vm581, %v2519, 0.0
  %2542 = vadd.xlane.f32.xlu0 %v2541
  %v2543 = vpop.xlane.xlu0 %2542
  %v2544 = vrcp.pop %v2522
  %v2545 = vrcp.pop %v2525
  %v2546 = vrcp.pop %v2528
  %v2547 = vrcp.pop %v2531
  %v2548 = vrcp.pop %v2534
  %v2549 = vrcp.pop %v2537
  %v2550 = vrcp.pop %v2540
  %v2551 = vrcp.pop %v2543
  %v2552 = vmul.f32 %v2505, %v2544
  %v2553 = vmul.f32 %v2507, %v2545
  %v2554 = vmul.f32 %v2509, %v2546
  %v2555 = vmul.f32 %v2511, %v2547
  %v2556 = vmul.f32 %v2513, %v2548
  %v2557 = vmul.f32 %v2515, %v2549
  %v2558 = vmul.f32 %v2517, %v2550
  %v2559 = vmul.f32 %v2519, %v2551
  %2560 = vrot.lane.b32.xlu0 %v200, 48
  %v2561 = vpop.permute.xlu0 %2560
  %2562 = vrot.lane.b32.xlu0 %v201, 48
  %v2563 = vpop.permute.xlu0 %2562
  %v2567 = vsel %vm581, %v2552, 0
  %v2570 = vsel %vm581, %v2553, 0
  %2572 = vmatprep.subr.mxu0 0.0
  %2573 = vmatpush1.msra.mxu0 %v2561
  %2574 = vmatprep.subr.mxu0 0.0
  %2575 = vmatpush1.msra.mxu0 %v2563
  %2576 = vmatprep.subr.mxu0 0.0
  %2577 = vmatpush1.msra.mxu0 0.0
  %2578 = vmatprep.subr.mxu0 0.0
  %2579 = vmatpush1.msra.mxu0 0.0
  %2580 = vmatprep.subr.mxu0 0.0
  %2581 = vmatpush1.msra.mxu0 0.0
  %2582 = vmatprep.subr.mxu0 0.0
  %2583 = vmatpush1.msra.mxu0 0.0
  %2584 = vmatprep.subr.mxu0 0.0
  %2585 = vmatpush1.msra.mxu0 0.0
  %2586 = vmatprep.subr.mxu0 0.0
  %2587 = vmatpush1.msra.mxu0 0.0
  %2588 = vmatprep.subr.mxu0 0.0
  %2589 = vmatpush1.msra.mxu0 0.0
  %2590 = vmatprep.subr.mxu0 0.0
  %2591 = vmatpush1.msra.mxu0 0.0
  %2592 = vmatprep.subr.mxu0 0.0
  %2593 = vmatpush1.msra.mxu0 0.0
  %2594 = vmatprep.subr.mxu0 0.0
  %2595 = vmatpush1.msra.mxu0 0.0
  %2596 = vmatprep.subr.mxu0 0.0
  %2597 = vmatpush1.msra.mxu0 0.0
  %2598 = vmatprep.subr.mxu0 0.0
  %2599 = vmatpush1.msra.mxu0 0.0
  %2600 = vmatprep.subr.mxu0 0.0
  %2601 = vmatpush1.msra.mxu0 0.0
  %2602 = vmatprep.subr.mxu0 0.0
  %2603 = vmatpush1.msra.mxu0 0.0
  %2604 = vmatprep.subr.mxu0 0.0
  %2605 = vmatpush1.msra.mxu0 0.0
  %2606 = vmatprep.subr.mxu0 0.0
  %2607 = vmatpush1.msra.mxu0 0.0
  %2608 = vmatprep.subr.mxu0 0.0
  %2609 = vmatpush1.msra.mxu0 0.0
  %2610 = vmatprep.subr.mxu0 0.0
  %2611 = vmatpush1.msra.mxu0 0.0
  %2612 = vmatprep.subr.mxu0 0.0
  %2613 = vmatpush1.msra.mxu0 0.0
  %2614 = vmatprep.subr.mxu0 0.0
  %2615 = vmatpush1.msra.mxu0 0.0
  %2616 = vmatprep.subr.mxu0 0.0
  %2617 = vmatpush1.msra.mxu0 0.0
  %2618 = vmatprep.subr.mxu0 0.0
  %2619 = vmatpush1.msra.mxu0 0.0
  %2620 = vmatprep.subr.mxu0 0.0
  %2621 = vmatpush1.msra.mxu0 0.0
  %2622 = vmatprep.subr.mxu0 0.0
  %2623 = vmatpush1.msra.mxu0 0.0
  %2624 = vmatprep.subr.mxu0 0.0
  %2625 = vmatpush1.msra.mxu0 0.0
  %2626 = vmatprep.subr.mxu0 0.0
  %2627 = vmatpush1.msra.mxu0 0.0
  %2628 = vmatprep.subr.mxu0 0.0
  %2629 = vmatpush1.msra.mxu0 0.0
  %2630 = vmatprep.subr.mxu0 0.0
  %2631 = vmatpush1.msra.mxu0 0.0
  %2632 = vmatprep.subr.mxu0 0.0
  %2633 = vmatpush1.msra.mxu0 0.0
  %2634 = vmatprep.subr.mxu0 0.0
  %2635 = vmatpush1.msra.mxu0 0.0
  %2636 = vmatprep.mubr.f32.mxu0 0.0
  %2637 = vmatmul.mubr.f32.gmra.mrb[0].mxu0 %v2567
  %v2638 = vpop.f32.mrb[0].mxu0
  %v2639 = vadd.f32 0.0, %v2638
  %v2640 = vpop.f32.mrb[0].mxu0
  %2641 = vmatprep.mubr.f32.mxu0 0.0
  %2642 = vmatmul.mubr.f32.gmra.mrb[0].mxu0 %v2570
  %v2643 = vpop.f32.mrb[0].mxu0
  %v2644 = vadd.f32 0.0, %v2643
  %v2645 = vpop.f32.mrb[0].mxu0
  %2646 = vdwg.mxu0
  %2647 = vrot.lane.b32.xlu0 %v202, 48
  %v2648 = vpop.permute.xlu0 %2647
  %2649 = vrot.lane.b32.xlu0 %v203, 48
  %v2650 = vpop.permute.xlu0 %2649
  %v2654 = vsel %vm581, %v2554, 0
  %v2657 = vsel %vm581, %v2555, 0
  %2659 = vmatprep.subr.mxu0 0.0
  %2660 = vmatpush1.msra.mxu0 %v2648
  %2661 = vmatprep.subr.mxu0 0.0
  %2662 = vmatpush1.msra.mxu0 %v2650
  %2663 = vmatprep.subr.mxu0 0.0
  %2664 = vmatpush1.msra.mxu0 0.0
  %2665 = vmatprep.subr.mxu0 0.0
  %2666 = vmatpush1.msra.mxu0 0.0
  %2667 = vmatprep.subr.mxu0 0.0
  %2668 = vmatpush1.msra.mxu0 0.0
  %2669 = vmatprep.subr.mxu0 0.0
  %2670 = vmatpush1.msra.mxu0 0.0
  %2671 = vmatprep.subr.mxu0 0.0
  %2672 = vmatpush1.msra.mxu0 0.0
  %2673 = vmatprep.subr.mxu0 0.0
  %2674 = vmatpush1.msra.mxu0 0.0
  %2675 = vmatprep.subr.mxu0 0.0
  %2676 = vmatpush1.msra.mxu0 0.0
  %2677 = vmatprep.subr.mxu0 0.0
  %2678 = vmatpush1.msra.mxu0 0.0
  %2679 = vmatprep.subr.mxu0 0.0
  %2680 = vmatpush1.msra.mxu0 0.0
  %2681 = vmatprep.subr.mxu0 0.0
  %2682 = vmatpush1.msra.mxu0 0.0
  %2683 = vmatprep.subr.mxu0 0.0
  %2684 = vmatpush1.msra.mxu0 0.0
  %2685 = vmatprep.subr.mxu0 0.0
  %2686 = vmatpush1.msra.mxu0 0.0
  %2687 = vmatprep.subr.mxu0 0.0
  %2688 = vmatpush1.msra.mxu0 0.0
  %2689 = vmatprep.subr.mxu0 0.0
  %2690 = vmatpush1.msra.mxu0 0.0
  %2691 = vmatprep.subr.mxu0 0.0
  %2692 = vmatpush1.msra.mxu0 0.0
  %2693 = vmatprep.subr.mxu0 0.0
  %2694 = vmatpush1.msra.mxu0 0.0
  %2695 = vmatprep.subr.mxu0 0.0
  %2696 = vmatpush1.msra.mxu0 0.0
  %2697 = vmatprep.subr.mxu0 0.0
  %2698 = vmatpush1.msra.mxu0 0.0
  %2699 = vmatprep.subr.mxu0 0.0
  %2700 = vmatpush1.msra.mxu0 0.0
  %2701 = vmatprep.subr.mxu0 0.0
  %2702 = vmatpush1.msra.mxu0 0.0
  %2703 = vmatprep.subr.mxu0 0.0
  %2704 = vmatpush1.msra.mxu0 0.0
  %2705 = vmatprep.subr.mxu0 0.0
  %2706 = vmatpush1.msra.mxu0 0.0
  %2707 = vmatprep.subr.mxu0 0.0
  %2708 = vmatpush1.msra.mxu0 0.0
  %2709 = vmatprep.subr.mxu0 0.0
  %2710 = vmatpush1.msra.mxu0 0.0
  %2711 = vmatprep.subr.mxu0 0.0
  %2712 = vmatpush1.msra.mxu0 0.0
  %2713 = vmatprep.subr.mxu0 0.0
  %2714 = vmatpush1.msra.mxu0 0.0
  %2715 = vmatprep.subr.mxu0 0.0
  %2716 = vmatpush1.msra.mxu0 0.0
  %2717 = vmatprep.subr.mxu0 0.0
  %2718 = vmatpush1.msra.mxu0 0.0
  %2719 = vmatprep.subr.mxu0 0.0
  %2720 = vmatpush1.msra.mxu0 0.0
  %2721 = vmatprep.subr.mxu0 0.0
  %2722 = vmatpush1.msra.mxu0 0.0
  %2723 = vmatprep.mubr.f32.mxu0 0.0
  %2724 = vmatmul.mubr.f32.gmra.mrb[0].mxu0 %v2654
  %v2725 = vpop.f32.mrb[0].mxu0
  %v2726 = vadd.f32 0.0, %v2725
  %v2727 = vpop.f32.mrb[0].mxu0
  %2728 = vmatprep.mubr.f32.mxu0 0.0
  %2729 = vmatmul.mubr.f32.gmra.mrb[0].mxu0 %v2657
  %v2730 = vpop.f32.mrb[0].mxu0
  %v2731 = vadd.f32 0.0, %v2730
  %v2732 = vpop.f32.mrb[0].mxu0
  %2733 = vdwg.mxu0
  %2734 = vrot.lane.b32.xlu0 %v204, 48
  %v2735 = vpop.permute.xlu0 %2734
  %2736 = vrot.lane.b32.xlu0 %v205, 48
  %v2737 = vpop.permute.xlu0 %2736
  %v2741 = vsel %vm581, %v2556, 0
  %v2744 = vsel %vm581, %v2557, 0
  %2746 = vmatprep.subr.mxu0 0.0
  %2747 = vmatpush1.msra.mxu0 %v2735
  %2748 = vmatprep.subr.mxu0 0.0
  %2749 = vmatpush1.msra.mxu0 %v2737
  %2750 = vmatprep.subr.mxu0 0.0
  %2751 = vmatpush1.msra.mxu0 0.0
  %2752 = vmatprep.subr.mxu0 0.0
  %2753 = vmatpush1.msra.mxu0 0.0
  %2754 = vmatprep.subr.mxu0 0.0
  %2755 = vmatpush1.msra.mxu0 0.0
  %2756 = vmatprep.subr.mxu0 0.0
  %2757 = vmatpush1.msra.mxu0 0.0
  %2758 = vmatprep.subr.mxu0 0.0
  %2759 = vmatpush1.msra.mxu0 0.0
  %2760 = vmatprep.subr.mxu0 0.0
  %2761 = vmatpush1.msra.mxu0 0.0
  %2762 = vmatprep.subr.mxu0 0.0
  %2763 = vmatpush1.msra.mxu0 0.0
  %2764 = vmatprep.subr.mxu0 0.0
  %2765 = vmatpush1.msra.mxu0 0.0
  %2766 = vmatprep.subr.mxu0 0.0
  %2767 = vmatpush1.msra.mxu0 0.0
  %2768 = vmatprep.subr.mxu0 0.0
  %2769 = vmatpush1.msra.mxu0 0.0
  %2770 = vmatprep.subr.mxu0 0.0
  %2771 = vmatpush1.msra.mxu0 0.0
  %2772 = vmatprep.subr.mxu0 0.0
  %2773 = vmatpush1.msra.mxu0 0.0
  %2774 = vmatprep.subr.mxu0 0.0
  %2775 = vmatpush1.msra.mxu0 0.0
  %2776 = vmatprep.subr.mxu0 0.0
  %2777 = vmatpush1.msra.mxu0 0.0
  %2778 = vmatprep.subr.mxu0 0.0
  %2779 = vmatpush1.msra.mxu0 0.0
  %2780 = vmatprep.subr.mxu0 0.0
  %2781 = vmatpush1.msra.mxu0 0.0
  %2782 = vmatprep.subr.mxu0 0.0
  %2783 = vmatpush1.msra.mxu0 0.0
  %2784 = vmatprep.subr.mxu0 0.0
  %2785 = vmatpush1.msra.mxu0 0.0
  %2786 = vmatprep.subr.mxu0 0.0
  %2787 = vmatpush1.msra.mxu0 0.0
  %2788 = vmatprep.subr.mxu0 0.0
  %2789 = vmatpush1.msra.mxu0 0.0
  %2790 = vmatprep.subr.mxu0 0.0
  %2791 = vmatpush1.msra.mxu0 0.0
  %2792 = vmatprep.subr.mxu0 0.0
  %2793 = vmatpush1.msra.mxu0 0.0
  %2794 = vmatprep.subr.mxu0 0.0
  %2795 = vmatpush1.msra.mxu0 0.0
  %2796 = vmatprep.subr.mxu0 0.0
  %2797 = vmatpush1.msra.mxu0 0.0
  %2798 = vmatprep.subr.mxu0 0.0
  %2799 = vmatpush1.msra.mxu0 0.0
  %2800 = vmatprep.subr.mxu0 0.0
  %2801 = vmatpush1.msra.mxu0 0.0
  %2802 = vmatprep.subr.mxu0 0.0
  %2803 = vmatpush1.msra.mxu0 0.0
  %2804 = vmatprep.subr.mxu0 0.0
  %2805 = vmatpush1.msra.mxu0 0.0
  %2806 = vmatprep.subr.mxu0 0.0
  %2807 = vmatpush1.msra.mxu0 0.0
  %2808 = vmatprep.subr.mxu0 0.0
  %2809 = vmatpush1.msra.mxu0 0.0
  %2810 = vmatprep.mubr.f32.mxu0 0.0
  %2811 = vmatmul.mubr.f32.gmra.mrb[0].mxu0 %v2741
  %v2812 = vpop.f32.mrb[0].mxu0
  %v2813 = vadd.f32 0.0, %v2812
  %v2814 = vpop.f32.mrb[0].mxu0
  %2815 = vmatprep.mubr.f32.mxu0 0.0
  %2816 = vmatmul.mubr.f32.gmra.mrb[0].mxu0 %v2744
  %v2817 = vpop.f32.mrb[0].mxu0
  %v2818 = vadd.f32 0.0, %v2817
  %v2819 = vpop.f32.mrb[0].mxu0
  %2820 = vdwg.mxu0
  %2821 = vrot.lane.b32.xlu0 %v206, 48
  %v2822 = vpop.permute.xlu0 %2821
  %2823 = vrot.lane.b32.xlu0 %v207, 48
  %v2824 = vpop.permute.xlu0 %2823
  %v2828 = vsel %vm581, %v2558, 0
  %v2831 = vsel %vm581, %v2559, 0
  %2833 = vmatprep.subr.mxu0 0.0
  %2834 = vmatpush1.msra.mxu0 %v2822
  %2835 = vmatprep.subr.mxu0 0.0
  %2836 = vmatpush1.msra.mxu0 %v2824
  %2837 = vmatprep.subr.mxu0 0.0
  %2838 = vmatpush1.msra.mxu0 0.0
  %2839 = vmatprep.subr.mxu0 0.0
  %2840 = vmatpush1.msra.mxu0 0.0
  %2841 = vmatprep.subr.mxu0 0.0
  %2842 = vmatpush1.msra.mxu0 0.0
  %2843 = vmatprep.subr.mxu0 0.0
  %2844 = vmatpush1.msra.mxu0 0.0
  %2845 = vmatprep.subr.mxu0 0.0
  %2846 = vmatpush1.msra.mxu0 0.0
  %2847 = vmatprep.subr.mxu0 0.0
  %2848 = vmatpush1.msra.mxu0 0.0
  %2849 = vmatprep.subr.mxu0 0.0
  %2850 = vmatpush1.msra.mxu0 0.0
  %2851 = vmatprep.subr.mxu0 0.0
  %2852 = vmatpush1.msra.mxu0 0.0
  %2853 = vmatprep.subr.mxu0 0.0
  %2854 = vmatpush1.msra.mxu0 0.0
  %2855 = vmatprep.subr.mxu0 0.0
  %2856 = vmatpush1.msra.mxu0 0.0
  %2857 = vmatprep.subr.mxu0 0.0
  %2858 = vmatpush1.msra.mxu0 0.0
  %2859 = vmatprep.subr.mxu0 0.0
  %2860 = vmatpush1.msra.mxu0 0.0
  %2861 = vmatprep.subr.mxu0 0.0
  %2862 = vmatpush1.msra.mxu0 0.0
  %2863 = vmatprep.subr.mxu0 0.0
  %2864 = vmatpush1.msra.mxu0 0.0
  %2865 = vmatprep.subr.mxu0 0.0
  %2866 = vmatpush1.msra.mxu0 0.0
  %2867 = vmatprep.subr.mxu0 0.0
  %2868 = vmatpush1.msra.mxu0 0.0
  %2869 = vmatprep.subr.mxu0 0.0
  %2870 = vmatpush1.msra.mxu0 0.0
  %2871 = vmatprep.subr.mxu0 0.0
  %2872 = vmatpush1.msra.mxu0 0.0
  %2873 = vmatprep.subr.mxu0 0.0
  %2874 = vmatpush1.msra.mxu0 0.0
  %2875 = vmatprep.subr.mxu0 0.0
  %2876 = vmatpush1.msra.mxu0 0.0
  %2877 = vmatprep.subr.mxu0 0.0
  %2878 = vmatpush1.msra.mxu0 0.0
  %2879 = vmatprep.subr.mxu0 0.0
  %2880 = vmatpush1.msra.mxu0 0.0
  %2881 = vmatprep.subr.mxu0 0.0
  %2882 = vmatpush1.msra.mxu0 0.0
  %2883 = vmatprep.subr.mxu0 0.0
  %2884 = vmatpush1.msra.mxu0 0.0
  %2885 = vmatprep.subr.mxu0 0.0
  %2886 = vmatpush1.msra.mxu0 0.0
  %2887 = vmatprep.subr.mxu0 0.0
  %2888 = vmatpush1.msra.mxu0 0.0
  %2889 = vmatprep.subr.mxu0 0.0
  %2890 = vmatpush1.msra.mxu0 0.0
  %2891 = vmatprep.subr.mxu0 0.0
  %2892 = vmatpush1.msra.mxu0 0.0
  %2893 = vmatprep.subr.mxu0 0.0
  %2894 = vmatpush1.msra.mxu0 0.0
  %2895 = vmatprep.subr.mxu0 0.0
  %2896 = vmatpush1.msra.mxu0 0.0
  %2897 = vmatprep.mubr.f32.mxu0 0.0
  %2898 = vmatmul.mubr.f32.gmra.mrb[0].mxu0 %v2828
  %v2899 = vpop.f32.mrb[0].mxu0
  %v2900 = vadd.f32 0.0, %v2899
  %v2901 = vpop.f32.mrb[0].mxu0
  %2902 = vmatprep.mubr.f32.mxu0 0.0
  %2903 = vmatmul.mubr.f32.gmra.mrb[0].mxu0 %v2831
  %v2904 = vpop.f32.mrb[0].mxu0
  %v2905 = vadd.f32 0.0, %v2904
  %v2906 = vpop.f32.mrb[0].mxu0
  %2907 = vdwg.mxu0
  %2909 = vrot.lane.b32.xlu0 %v30, 32
  %v2910 = vpop.permute.xlu0 %2909
  %v2913 = vsel %vm214, %v2639, 0
  %v2916 = vsel %vm214, %v2644, 0
  %v2919 = vsel %vm214, %v2726, 0
  %v2922 = vsel %vm214, %v2731, 0
  %v2925 = vsel %vm214, %v2813, 0
  %v2928 = vsel %vm214, %v2818, 0
  %v2931 = vsel %vm214, %v2900, 0
  %v2934 = vsel %vm214, %v2905, 0
  %2936 = vmatprep.subr.mxu0 0.0
  %2937 = vmatpush1.msra.mxu0 %v2910
  %2938 = vmatprep.subr.mxu0 0.0
  %2939 = vmatpush1.msra.mxu0 0.0
  %2940 = vmatprep.subr.mxu0 0.0
  %2941 = vmatpush1.msra.mxu0 0.0
  %2942 = vmatprep.subr.mxu0 0.0
  %2943 = vmatpush1.msra.mxu0 0.0
  %2944 = vmatprep.subr.mxu0 0.0
  %2945 = vmatpush1.msra.mxu0 0.0
  %2946 = vmatprep.subr.mxu0 0.0
  %2947 = vmatpush1.msra.mxu0 0.0
  %2948 = vmatprep.subr.mxu0 0.0
  %2949 = vmatpush1.msra.mxu0 0.0
  %2950 = vmatprep.subr.mxu0 0.0
  %2951 = vmatpush1.msra.mxu0 0.0
  %2952 = vmatprep.subr.mxu0 0.0
  %2953 = vmatpush1.msra.mxu0 0.0
  %2954 = vmatprep.subr.mxu0 0.0
  %2955 = vmatpush1.msra.mxu0 0.0
  %2956 = vmatprep.subr.mxu0 0.0
  %2957 = vmatpush1.msra.mxu0 0.0
  %2958 = vmatprep.subr.mxu0 0.0
  %2959 = vmatpush1.msra.mxu0 0.0
  %2960 = vmatprep.subr.mxu0 0.0
  %2961 = vmatpush1.msra.mxu0 0.0
  %2962 = vmatprep.subr.mxu0 0.0
  %2963 = vmatpush1.msra.mxu0 0.0
  %2964 = vmatprep.subr.mxu0 0.0
  %2965 = vmatpush1.msra.mxu0 0.0
  %2966 = vmatprep.subr.mxu0 0.0
  %2967 = vmatpush1.msra.mxu0 0.0
  %2968 = vmatprep.subr.mxu0 0.0
  %2969 = vmatpush1.msra.mxu0 0.0
  %2970 = vmatprep.subr.mxu0 0.0
  %2971 = vmatpush1.msra.mxu0 0.0
  %2972 = vmatprep.subr.mxu0 0.0
  %2973 = vmatpush1.msra.mxu0 0.0
  %2974 = vmatprep.subr.mxu0 0.0
  %2975 = vmatpush1.msra.mxu0 0.0
  %2976 = vmatprep.subr.mxu0 0.0
  %2977 = vmatpush1.msra.mxu0 0.0
  %2978 = vmatprep.subr.mxu0 0.0
  %2979 = vmatpush1.msra.mxu0 0.0
  %2980 = vmatprep.subr.mxu0 0.0
  %2981 = vmatpush1.msra.mxu0 0.0
  %2982 = vmatprep.subr.mxu0 0.0
  %2983 = vmatpush1.msra.mxu0 0.0
  %2984 = vmatprep.subr.mxu0 0.0
  %2985 = vmatpush1.msra.mxu0 0.0
  %2986 = vmatprep.subr.mxu0 0.0
  %2987 = vmatpush1.msra.mxu0 0.0
  %2988 = vmatprep.subr.mxu0 0.0
  %2989 = vmatpush1.msra.mxu0 0.0
  %2990 = vmatprep.subr.mxu0 0.0
  %2991 = vmatpush1.msra.mxu0 0.0
  %2992 = vmatprep.subr.mxu0 0.0
  %2993 = vmatpush1.msra.mxu0 0.0
  %2994 = vmatprep.subr.mxu0 0.0
  %2995 = vmatpush1.msra.mxu0 0.0
  %2996 = vmatprep.subr.mxu0 0.0
  %2997 = vmatpush1.msra.mxu0 0.0
  %2998 = vmatprep.subr.mxu0 0.0
  %2999 = vmatpush1.msra.mxu0 0.0
  %3000 = vmatprep.mubr.f32.mxu0 0.0
  %3001 = vmatmul.mubr.f32.gmra.mrb[0].mxu0 %v2913
  %v3002 = vpop.f32.mrb[0].mxu0
  %v3003 = vadd.f32 0.0, %v3002
  %v3004 = vpop.f32.mrb[0].mxu0
  %3005 = vmatprep.mubr.f32.mxu0 0.0
  %3006 = vmatmul.mubr.f32.gmra.mrb[0].mxu0 %v2916
  %v3007 = vpop.f32.mrb[0].mxu0
  %v3008 = vadd.f32 0.0, %v3007
  %v3009 = vpop.f32.mrb[0].mxu0
  %3010 = vmatprep.mubr.f32.mxu0 0.0
  %3011 = vmatmul.mubr.f32.gmra.mrb[0].mxu0 %v2919
  %v3012 = vpop.f32.mrb[0].mxu0
  %v3013 = vadd.f32 0.0, %v3012
  %v3014 = vpop.f32.mrb[0].mxu0
  %3015 = vmatprep.mubr.f32.mxu0 0.0
  %3016 = vmatmul.mubr.f32.gmra.mrb[0].mxu0 %v2922
  %v3017 = vpop.f32.mrb[0].mxu0
  %v3018 = vadd.f32 0.0, %v3017
  %v3019 = vpop.f32.mrb[0].mxu0
  %3020 = vmatprep.mubr.f32.mxu0 0.0
  %3021 = vmatmul.mubr.f32.gmra.mrb[0].mxu0 %v2925
  %v3022 = vpop.f32.mrb[0].mxu0
  %v3023 = vadd.f32 0.0, %v3022
  %v3024 = vpop.f32.mrb[0].mxu0
  %3025 = vmatprep.mubr.f32.mxu0 0.0
  %3026 = vmatmul.mubr.f32.gmra.mrb[0].mxu0 %v2928
  %v3027 = vpop.f32.mrb[0].mxu0
  %v3028 = vadd.f32 0.0, %v3027
  %v3029 = vpop.f32.mrb[0].mxu0
  %3030 = vmatprep.mubr.f32.mxu0 0.0
  %3031 = vmatmul.mubr.f32.gmra.mrb[0].mxu0 %v2931
  %v3032 = vpop.f32.mrb[0].mxu0
  %v3033 = vadd.f32 0.0, %v3032
  %v3034 = vpop.f32.mrb[0].mxu0
  %3035 = vmatprep.mubr.f32.mxu0 0.0
  %3036 = vmatmul.mubr.f32.gmra.mrb[0].mxu0 %v2934
  %v3037 = vpop.f32.mrb[0].mxu0
  %v3038 = vadd.f32 0.0, %v3037
  %v3039 = vpop.f32.mrb[0].mxu0
  %3040 = vdwg.mxu0
  %v3041 = vadd.f32 %v2062, %v3003
  %v3042 = vadd.f32 %v2067, %v3008
  %v3043 = vadd.f32 %v2072, %v3013
  %v3044 = vadd.f32 %v2077, %v3018
  %v3045 = vadd.f32 %v2082, %v3023
  %v3046 = vadd.f32 %v2087, %v3028
  %v3047 = vadd.f32 %v2092, %v3033
  %v3048 = vadd.f32 %v2097, %v3038
  %3049 = vrot.lane.b32.xlu0 %v168, 104
  %v3050 = vpop.permute.xlu0 %3049
  %3051 = vrot.lane.b32.xlu0 %v169, 104
  %v3052 = vpop.permute.xlu0 %3051
  %3053 = vrot.lane.b32.xlu0 %v184, 72
  %v3054 = vpop.permute.xlu0 %3053
  %3055 = vrot.lane.b32.xlu0 %v185, 72
  %v3056 = vpop.permute.xlu0 %3055
  %v3057 = vsel %vm214, %v3050, 0
  %v3059 = vsel %vm214, %v3052, 0
  %v3061 = vsel %vm214, %v3054, 0
  %v3063 = vsel %vm214, %v3056, 0
  %3065 = vmatprep.subr.mxu0 0.0
  %3066 = vmatpush1.xpose.msra.mxu0 %v3061
  %3067 = vmatprep.subr.mxu0 0.0
  %3068 = vmatpush1.xpose.msra.mxu0 %v3063
  %3069 = vmatprep.subr.mxu0 0.0
  %3070 = vmatpush1.xpose.msra.mxu0 0.0
  %3071 = vmatprep.subr.mxu0 0.0
  %3072 = vmatpush1.xpose.msra.mxu0 0.0
  %3073 = vmatprep.subr.mxu0 0.0
  %3074 = vmatpush1.xpose.msra.mxu0 0.0
  %3075 = vmatprep.subr.mxu0 0.0
  %3076 = vmatpush1.xpose.msra.mxu0 0.0
  %3077 = vmatprep.subr.mxu0 0.0
  %3078 = vmatpush1.xpose.msra.mxu0 0.0
  %3079 = vmatprep.subr.mxu0 0.0
  %3080 = vmatpush1.xpose.msra.mxu0 0.0
  %3081 = vmatprep.subr.mxu0 0.0
  %3082 = vmatpush1.xpose.msra.mxu0 0.0
  %3083 = vmatprep.subr.mxu0 0.0
  %3084 = vmatpush1.xpose.msra.mxu0 0.0
  %3085 = vmatprep.subr.mxu0 0.0
  %3086 = vmatpush1.xpose.msra.mxu0 0.0
  %3087 = vmatprep.subr.mxu0 0.0
  %3088 = vmatpush1.xpose.msra.mxu0 0.0
  %3089 = vmatprep.subr.mxu0 0.0
  %3090 = vmatpush1.xpose.msra.mxu0 0.0
  %3091 = vmatprep.subr.mxu0 0.0
  %3092 = vmatpush1.xpose.msra.mxu0 0.0
  %3093 = vmatprep.subr.mxu0 0.0
  %3094 = vmatpush1.xpose.msra.mxu0 0.0
  %3095 = vmatprep.subr.mxu0 0.0
  %3096 = vmatpush1.xpose.msra.mxu0 0.0
  %3097 = vmatprep.subr.mxu0 0.0
  %3098 = vmatpush1.xpose.msra.mxu0 0.0
  %3099 = vmatprep.subr.mxu0 0.0
  %3100 = vmatpush1.xpose.msra.mxu0 0.0
  %3101 = vmatprep.subr.mxu0 0.0
  %3102 = vmatpush1.xpose.msra.mxu0 0.0
  %3103 = vmatprep.subr.mxu0 0.0
  %3104 = vmatpush1.xpose.msra.mxu0 0.0
  %3105 = vmatprep.subr.mxu0 0.0
  %3106 = vmatpush1.xpose.msra.mxu0 0.0
  %3107 = vmatprep.subr.mxu0 0.0
  %3108 = vmatpush1.xpose.msra.mxu0 0.0
  %3109 = vmatprep.subr.mxu0 0.0
  %3110 = vmatpush1.xpose.msra.mxu0 0.0
  %3111 = vmatprep.subr.mxu0 0.0
  %3112 = vmatpush1.xpose.msra.mxu0 0.0
  %3113 = vmatprep.subr.mxu0 0.0
  %3114 = vmatpush1.xpose.msra.mxu0 0.0
  %3115 = vmatprep.subr.mxu0 0.0
  %3116 = vmatpush1.xpose.msra.mxu0 0.0
  %3117 = vmatprep.subr.mxu0 0.0
  %3118 = vmatpush1.xpose.msra.mxu0 0.0
  %3119 = vmatprep.subr.mxu0 0.0
  %3120 = vmatpush1.xpose.msra.mxu0 0.0
  %3121 = vmatprep.subr.mxu0 0.0
  %3122 = vmatpush1.xpose.msra.mxu0 0.0
  %3123 = vmatprep.subr.mxu0 0.0
  %3124 = vmatpush1.xpose.msra.mxu0 0.0
  %3125 = vmatprep.subr.mxu0 0.0
  %3126 = vmatpush1.xpose.msra.mxu0 0.0
  %3127 = vmatprep.subr.mxu0 0.0
  %3128 = vmatpush1.xpose.msra.mxu0 0.0
  %3129 = vmatprep.mubr.f32.mxu0 0.0
  %3130 = vmatmul.mubr.f32.gmra.mrb[0].mxu0 %v3057
  %v3131 = vpop.f32.mrb[0].mxu0
  %v3132 = vadd.f32 0.0, %v3131
  %v3133 = vpop.f32.mrb[0].mxu0
  %3134 = vmatprep.mubr.f32.mxu0 0.0
  %3135 = vmatmul.mubr.f32.gmra.mrb[0].mxu0 %v3059
  %v3136 = vpop.f32.mrb[0].mxu0
  %v3137 = vadd.f32 0.0, %v3136
  %v3138 = vpop.f32.mrb[0].mxu0
  %3139 = vdwg.mxu0
  %3140 = vrot.lane.b32.xlu0 %v170, 104
  %v3141 = vpop.permute.xlu0 %3140
  %3142 = vrot.lane.b32.xlu0 %v171, 104
  %v3143 = vpop.permute.xlu0 %3142
  %3144 = vrot.lane.b32.xlu0 %v186, 72
  %v3145 = vpop.permute.xlu0 %3144
  %3146 = vrot.lane.b32.xlu0 %v187, 72
  %v3147 = vpop.permute.xlu0 %3146
  %v3148 = vsel %vm214, %v3141, 0
  %v3150 = vsel %vm214, %v3143, 0
  %v3152 = vsel %vm214, %v3145, 0
  %v3154 = vsel %vm214, %v3147, 0
  %3156 = vmatprep.subr.mxu0 0.0
  %3157 = vmatpush1.xpose.msra.mxu0 %v3152
  %3158 = vmatprep.subr.mxu0 0.0
  %3159 = vmatpush1.xpose.msra.mxu0 %v3154
  %3160 = vmatprep.subr.mxu0 0.0
  %3161 = vmatpush1.xpose.msra.mxu0 0.0
  %3162 = vmatprep.subr.mxu0 0.0
  %3163 = vmatpush1.xpose.msra.mxu0 0.0
  %3164 = vmatprep.subr.mxu0 0.0
  %3165 = vmatpush1.xpose.msra.mxu0 0.0
  %3166 = vmatprep.subr.mxu0 0.0
  %3167 = vmatpush1.xpose.msra.mxu0 0.0
  %3168 = vmatprep.subr.mxu0 0.0
  %3169 = vmatpush1.xpose.msra.mxu0 0.0
  %3170 = vmatprep.subr.mxu0 0.0
  %3171 = vmatpush1.xpose.msra.mxu0 0.0
  %3172 = vmatprep.subr.mxu0 0.0
  %3173 = vmatpush1.xpose.msra.mxu0 0.0
  %3174 = vmatprep.subr.mxu0 0.0
  %3175 = vmatpush1.xpose.msra.mxu0 0.0
  %3176 = vmatprep.subr.mxu0 0.0
  %3177 = vmatpush1.xpose.msra.mxu0 0.0
  %3178 = vmatprep.subr.mxu0 0.0
  %3179 = vmatpush1.xpose.msra.mxu0 0.0
  %3180 = vmatprep.subr.mxu0 0.0
  %3181 = vmatpush1.xpose.msra.mxu0 0.0
  %3182 = vmatprep.subr.mxu0 0.0
  %3183 = vmatpush1.xpose.msra.mxu0 0.0
  %3184 = vmatprep.subr.mxu0 0.0
  %3185 = vmatpush1.xpose.msra.mxu0 0.0
  %3186 = vmatprep.subr.mxu0 0.0
  %3187 = vmatpush1.xpose.msra.mxu0 0.0
  %3188 = vmatprep.subr.mxu0 0.0
  %3189 = vmatpush1.xpose.msra.mxu0 0.0
  %3190 = vmatprep.subr.mxu0 0.0
  %3191 = vmatpush1.xpose.msra.mxu0 0.0
  %3192 = vmatprep.subr.mxu0 0.0
  %3193 = vmatpush1.xpose.msra.mxu0 0.0
  %3194 = vmatprep.subr.mxu0 0.0
  %3195 = vmatpush1.xpose.msra.mxu0 0.0
  %3196 = vmatprep.subr.mxu0 0.0
  %3197 = vmatpush1.xpose.msra.mxu0 0.0
  %3198 = vmatprep.subr.mxu0 0.0
  %3199 = vmatpush1.xpose.msra.mxu0 0.0
  %3200 = vmatprep.subr.mxu0 0.0
  %3201 = vmatpush1.xpose.msra.mxu0 0.0
  %3202 = vmatprep.subr.mxu0 0.0
  %3203 = vmatpush1.xpose.msra.mxu0 0.0
  %3204 = vmatprep.subr.mxu0 0.0
  %3205 = vmatpush1.xpose.msra.mxu0 0.0
  %3206 = vmatprep.subr.mxu0 0.0
  %3207 = vmatpush1.xpose.msra.mxu0 0.0
  %3208 = vmatprep.subr.mxu0 0.0
  %3209 = vmatpush1.xpose.msra.mxu0 0.0
  %3210 = vmatprep.subr.mxu0 0.0
  %3211 = vmatpush1.xpose.msra.mxu0 0.0
  %3212 = vmatprep.subr.mxu0 0.0
  %3213 = vmatpush1.xpose.msra.mxu0 0.0
  %3214 = vmatprep.subr.mxu0 0.0
  %3215 = vmatpush1.xpose.msra.mxu0 0.0
  %3216 = vmatprep.subr.mxu0 0.0
  %3217 = vmatpush1.xpose.msra.mxu0 0.0
  %3218 = vmatprep.subr.mxu0 0.0
  %3219 = vmatpush1.xpose.msra.mxu0 0.0
  %3220 = vmatprep.mubr.f32.mxu0 0.0
  %3221 = vmatmul.mubr.f32.gmra.mrb[0].mxu0 %v3148
  %v3222 = vpop.f32.mrb[0].mxu0
  %v3223 = vadd.f32 0.0, %v3222
  %v3224 = vpop.f32.mrb[0].mxu0
  %3225 = vmatprep.mubr.f32.mxu0 0.0
  %3226 = vmatmul.mubr.f32.gmra.mrb[0].mxu0 %v3150
  %v3227 = vpop.f32.mrb[0].mxu0
  %v3228 = vadd.f32 0.0, %v3227
  %v3229 = vpop.f32.mrb[0].mxu0
  %3230 = vdwg.mxu0
  %3231 = vrot.lane.b32.xlu0 %v172, 104
  %v3232 = vpop.permute.xlu0 %3231
  %3233 = vrot.lane.b32.xlu0 %v173, 104
  %v3234 = vpop.permute.xlu0 %3233
  %3235 = vrot.lane.b32.xlu0 %v188, 72
  %v3236 = vpop.permute.xlu0 %3235
  %3237 = vrot.lane.b32.xlu0 %v189, 72
  %v3238 = vpop.permute.xlu0 %3237
  %v3239 = vsel %vm214, %v3232, 0
  %v3241 = vsel %vm214, %v3234, 0
  %v3243 = vsel %vm214, %v3236, 0
  %v3245 = vsel %vm214, %v3238, 0
  %3247 = vmatprep.subr.mxu0 0.0
  %3248 = vmatpush1.xpose.msra.mxu0 %v3243
  %3249 = vmatprep.subr.mxu0 0.0
  %3250 = vmatpush1.xpose.msra.mxu0 %v3245
  %3251 = vmatprep.subr.mxu0 0.0
  %3252 = vmatpush1.xpose.msra.mxu0 0.0
  %3253 = vmatprep.subr.mxu0 0.0
  %3254 = vmatpush1.xpose.msra.mxu0 0.0
  %3255 = vmatprep.subr.mxu0 0.0
  %3256 = vmatpush1.xpose.msra.mxu0 0.0
  %3257 = vmatprep.subr.mxu0 0.0
  %3258 = vmatpush1.xpose.msra.mxu0 0.0
  %3259 = vmatprep.subr.mxu0 0.0
  %3260 = vmatpush1.xpose.msra.mxu0 0.0
  %3261 = vmatprep.subr.mxu0 0.0
  %3262 = vmatpush1.xpose.msra.mxu0 0.0
  %3263 = vmatprep.subr.mxu0 0.0
  %3264 = vmatpush1.xpose.msra.mxu0 0.0
  %3265 = vmatprep.subr.mxu0 0.0
  %3266 = vmatpush1.xpose.msra.mxu0 0.0
  %3267 = vmatprep.subr.mxu0 0.0
  %3268 = vmatpush1.xpose.msra.mxu0 0.0
  %3269 = vmatprep.subr.mxu0 0.0
  %3270 = vmatpush1.xpose.msra.mxu0 0.0
  %3271 = vmatprep.subr.mxu0 0.0
  %3272 = vmatpush1.xpose.msra.mxu0 0.0
  %3273 = vmatprep.subr.mxu0 0.0
  %3274 = vmatpush1.xpose.msra.mxu0 0.0
  %3275 = vmatprep.subr.mxu0 0.0
  %3276 = vmatpush1.xpose.msra.mxu0 0.0
  %3277 = vmatprep.subr.mxu0 0.0
  %3278 = vmatpush1.xpose.msra.mxu0 0.0
  %3279 = vmatprep.subr.mxu0 0.0
  %3280 = vmatpush1.xpose.msra.mxu0 0.0
  %3281 = vmatprep.subr.mxu0 0.0
  %3282 = vmatpush1.xpose.msra.mxu0 0.0
  %3283 = vmatprep.subr.mxu0 0.0
  %3284 = vmatpush1.xpose.msra.mxu0 0.0
  %3285 = vmatprep.subr.mxu0 0.0
  %3286 = vmatpush1.xpose.msra.mxu0 0.0
  %3287 = vmatprep.subr.mxu0 0.0
  %3288 = vmatpush1.xpose.msra.mxu0 0.0
  %3289 = vmatprep.subr.mxu0 0.0
  %3290 = vmatpush1.xpose.msra.mxu0 0.0
  %3291 = vmatprep.subr.mxu0 0.0
  %3292 = vmatpush1.xpose.msra.mxu0 0.0
  %3293 = vmatprep.subr.mxu0 0.0
  %3294 = vmatpush1.xpose.msra.mxu0 0.0
  %3295 = vmatprep.subr.mxu0 0.0
  %3296 = vmatpush1.xpose.msra.mxu0 0.0
  %3297 = vmatprep.subr.mxu0 0.0
  %3298 = vmatpush1.xpose.msra.mxu0 0.0
  %3299 = vmatprep.subr.mxu0 0.0
  %3300 = vmatpush1.xpose.msra.mxu0 0.0
  %3301 = vmatprep.subr.mxu0 0.0
  %3302 = vmatpush1.xpose.msra.mxu0 0.0
  %3303 = vmatprep.subr.mxu0 0.0
  %3304 = vmatpush1.xpose.msra.mxu0 0.0
  %3305 = vmatprep.subr.mxu0 0.0
  %3306 = vmatpush1.xpose.msra.mxu0 0.0
  %3307 = vmatprep.subr.mxu0 0.0
  %3308 = vmatpush1.xpose.msra.mxu0 0.0
  %3309 = vmatprep.subr.mxu0 0.0
  %3310 = vmatpush1.xpose.msra.mxu0 0.0
  %3311 = vmatprep.mubr.f32.mxu0 0.0
  %3312 = vmatmul.mubr.f32.gmra.mrb[0].mxu0 %v3239
  %v3313 = vpop.f32.mrb[0].mxu0
  %v3314 = vadd.f32 0.0, %v3313
  %v3315 = vpop.f32.mrb[0].mxu0
  %3316 = vmatprep.mubr.f32.mxu0 0.0
  %3317 = vmatmul.mubr.f32.gmra.mrb[0].mxu0 %v3241
  %v3318 = vpop.f32.mrb[0].mxu0
  %v3319 = vadd.f32 0.0, %v3318
  %v3320 = vpop.f32.mrb[0].mxu0
  %3321 = vdwg.mxu0
  %3322 = vrot.lane.b32.xlu0 %v174, 104
  %v3323 = vpop.permute.xlu0 %3322
  %3324 = vrot.lane.b32.xlu0 %v175, 104
  %v3325 = vpop.permute.xlu0 %3324
  %3326 = vrot.lane.b32.xlu0 %v190, 72
  %v3327 = vpop.permute.xlu0 %3326
  %3328 = vrot.lane.b32.xlu0 %v191, 72
  %v3329 = vpop.permute.xlu0 %3328
  %v3330 = vsel %vm214, %v3323, 0
  %v3332 = vsel %vm214, %v3325, 0
  %v3334 = vsel %vm214, %v3327, 0
  %v3336 = vsel %vm214, %v3329, 0
  %3338 = vmatprep.subr.mxu0 0.0
  %3339 = vmatpush1.xpose.msra.mxu0 %v3334
  %3340 = vmatprep.subr.mxu0 0.0
  %3341 = vmatpush1.xpose.msra.mxu0 %v3336
  %3342 = vmatprep.subr.mxu0 0.0
  %3343 = vmatpush1.xpose.msra.mxu0 0.0
  %3344 = vmatprep.subr.mxu0 0.0
  %3345 = vmatpush1.xpose.msra.mxu0 0.0
  %3346 = vmatprep.subr.mxu0 0.0
  %3347 = vmatpush1.xpose.msra.mxu0 0.0
  %3348 = vmatprep.subr.mxu0 0.0
  %3349 = vmatpush1.xpose.msra.mxu0 0.0
  %3350 = vmatprep.subr.mxu0 0.0
  %3351 = vmatpush1.xpose.msra.mxu0 0.0
  %3352 = vmatprep.subr.mxu0 0.0
  %3353 = vmatpush1.xpose.msra.mxu0 0.0
  %3354 = vmatprep.subr.mxu0 0.0
  %3355 = vmatpush1.xpose.msra.mxu0 0.0
  %3356 = vmatprep.subr.mxu0 0.0
  %3357 = vmatpush1.xpose.msra.mxu0 0.0
  %3358 = vmatprep.subr.mxu0 0.0
  %3359 = vmatpush1.xpose.msra.mxu0 0.0
  %3360 = vmatprep.subr.mxu0 0.0
  %3361 = vmatpush1.xpose.msra.mxu0 0.0
  %3362 = vmatprep.subr.mxu0 0.0
  %3363 = vmatpush1.xpose.msra.mxu0 0.0
  %3364 = vmatprep.subr.mxu0 0.0
  %3365 = vmatpush1.xpose.msra.mxu0 0.0
  %3366 = vmatprep.subr.mxu0 0.0
  %3367 = vmatpush1.xpose.msra.mxu0 0.0
  %3368 = vmatprep.subr.mxu0 0.0
  %3369 = vmatpush1.xpose.msra.mxu0 0.0
  %3370 = vmatprep.subr.mxu0 0.0
  %3371 = vmatpush1.xpose.msra.mxu0 0.0
  %3372 = vmatprep.subr.mxu0 0.0
  %3373 = vmatpush1.xpose.msra.mxu0 0.0
  %3374 = vmatprep.subr.mxu0 0.0
  %3375 = vmatpush1.xpose.msra.mxu0 0.0
  %3376 = vmatprep.subr.mxu0 0.0
  %3377 = vmatpush1.xpose.msra.mxu0 0.0
  %3378 = vmatprep.subr.mxu0 0.0
  %3379 = vmatpush1.xpose.msra.mxu0 0.0
  %3380 = vmatprep.subr.mxu0 0.0
  %3381 = vmatpush1.xpose.msra.mxu0 0.0
  %3382 = vmatprep.subr.mxu0 0.0
  %3383 = vmatpush1.xpose.msra.mxu0 0.0
  %3384 = vmatprep.subr.mxu0 0.0
  %3385 = vmatpush1.xpose.msra.mxu0 0.0
  %3386 = vmatprep.subr.mxu0 0.0
  %3387 = vmatpush1.xpose.msra.mxu0 0.0
  %3388 = vmatprep.subr.mxu0 0.0
  %3389 = vmatpush1.xpose.msra.mxu0 0.0
  %3390 = vmatprep.subr.mxu0 0.0
  %3391 = vmatpush1.xpose.msra.mxu0 0.0
  %3392 = vmatprep.subr.mxu0 0.0
  %3393 = vmatpush1.xpose.msra.mxu0 0.0
  %3394 = vmatprep.subr.mxu0 0.0
  %3395 = vmatpush1.xpose.msra.mxu0 0.0
  %3396 = vmatprep.subr.mxu0 0.0
  %3397 = vmatpush1.xpose.msra.mxu0 0.0
  %3398 = vmatprep.subr.mxu0 0.0
  %3399 = vmatpush1.xpose.msra.mxu0 0.0
  %3400 = vmatprep.subr.mxu0 0.0
  %3401 = vmatpush1.xpose.msra.mxu0 0.0
  %3402 = vmatprep.mubr.f32.mxu0 0.0
  %3403 = vmatmul.mubr.f32.gmra.mrb[0].mxu0 %v3330
  %v3404 = vpop.f32.mrb[0].mxu0
  %v3405 = vadd.f32 0.0, %v3404
  %v3406 = vpop.f32.mrb[0].mxu0
  %3407 = vmatprep.mubr.f32.mxu0 0.0
  %3408 = vmatmul.mubr.f32.gmra.mrb[0].mxu0 %v3332
  %v3409 = vpop.f32.mrb[0].mxu0
  %v3410 = vadd.f32 0.0, %v3409
  %v3411 = vpop.f32.mrb[0].mxu0
  %3412 = vdwg.mxu0
  %v3413 = vmul.f32 %v3132, 0.35355338
  %v3414 = vmul.f32 %v3137, 0.35355338
  %v3415 = vmul.f32 %v3223, 0.35355338
  %v3416 = vmul.f32 %v3228, 0.35355338
  %v3417 = vmul.f32 %v3314, 0.35355338
  %v3418 = vmul.f32 %v3319, 0.35355338
  %v3419 = vmul.f32 %v3405, 0.35355338
  %v3420 = vmul.f32 %v3410, 0.35355338
  %v3421 = vsel %vm581, %v3413, -inf
  %3422 = vmax.xlane.f32.xlu0 %v3421
  %v3423 = vpop.xlane.xlu0 %3422
  %v3424 = vsel %vm581, %v3414, -inf
  %3425 = vmax.xlane.f32.xlu0 %v3424
  %v3426 = vpop.xlane.xlu0 %3425
  %v3427 = vsel %vm581, %v3415, -inf
  %3428 = vmax.xlane.f32.xlu0 %v3427
  %v3429 = vpop.xlane.xlu0 %3428
  %v3430 = vsel %vm581, %v3416, -inf
  %3431 = vmax.xlane.f32.xlu0 %v3430
  %v3432 = vpop.xlane.xlu0 %3431
  %v3433 = vsel %vm581, %v3417, -inf
  %3434 = vmax.xlane.f32.xlu0 %v3433
  %v3435 = vpop.xlane.xlu0 %3434
  %v3436 = vsel %vm581, %v3418, -inf
  %3437 = vmax.xlane.f32.xlu0 %v3436
  %v3438 = vpop.xlane.xlu0 %3437
  %v3439 = vsel %vm581, %v3419, -inf
  %3440 = vmax.xlane.f32.xlu0 %v3439
  %v3441 = vpop.xlane.xlu0 %3440
  %v3442 = vsel %vm581, %v3420, -inf
  %3443 = vmax.xlane.f32.xlu0 %v3442
  %v3444 = vpop.xlane.xlu0 %3443
  %v3445 = vsub.f32 %v3413, %v3423
  %v3446 = vsub.f32 %v3414, %v3426
  %v3447 = vsub.f32 %v3415, %v3429
  %v3448 = vsub.f32 %v3416, %v3432
  %v3449 = vsub.f32 %v3417, %v3435
  %v3450 = vsub.f32 %v3418, %v3438
  %v3451 = vsub.f32 %v3419, %v3441
  %v3452 = vsub.f32 %v3420, %v3444
  %v3453 = vmul.f32 %v3445, 1.442695
  %v3454 = vpow.pop %v3453
  %v3455 = vmul.f32 %v3446, 1.442695
  %v3456 = vpow.pop %v3455
  %v3457 = vmul.f32 %v3447, 1.442695
  %v3458 = vpow.pop %v3457
  %v3459 = vmul.f32 %v3448, 1.442695
  %v3460 = vpow.pop %v3459
  %v3461 = vmul.f32 %v3449, 1.442695
  %v3462 = vpow.pop %v3461
  %v3463 = vmul.f32 %v3450, 1.442695
  %v3464 = vpow.pop %v3463
  %v3465 = vmul.f32 %v3451, 1.442695
  %v3466 = vpow.pop %v3465
  %v3467 = vmul.f32 %v3452, 1.442695
  %v3468 = vpow.pop %v3467
  %v3469 = vsel %vm581, %v3454, 0.0
  %3470 = vadd.xlane.f32.xlu0 %v3469
  %v3471 = vpop.xlane.xlu0 %3470
  %v3472 = vsel %vm581, %v3456, 0.0
  %3473 = vadd.xlane.f32.xlu0 %v3472
  %v3474 = vpop.xlane.xlu0 %3473
  %v3475 = vsel %vm581, %v3458, 0.0
  %3476 = vadd.xlane.f32.xlu0 %v3475
  %v3477 = vpop.xlane.xlu0 %3476
  %v3478 = vsel %vm581, %v3460, 0.0
  %3479 = vadd.xlane.f32.xlu0 %v3478
  %v3480 = vpop.xlane.xlu0 %3479
  %v3481 = vsel %vm581, %v3462, 0.0
  %3482 = vadd.xlane.f32.xlu0 %v3481
  %v3483 = vpop.xlane.xlu0 %3482
  %v3484 = vsel %vm581, %v3464, 0.0
  %3485 = vadd.xlane.f32.xlu0 %v3484
  %v3486 = vpop.xlane.xlu0 %3485
  %v3487 = vsel %vm581, %v3466, 0.0
  %3488 = vadd.xlane.f32.xlu0 %v3487
  %v3489 = vpop.xlane.xlu0 %3488
  %v3490 = vsel %vm581, %v3468, 0.0
  %3491 = vadd.xlane.f32.xlu0 %v3490
  %v3492 = vpop.xlane.xlu0 %3491
  %v3493 = vrcp.pop %v3471
  %v3494 = vrcp.pop %v3474
  %v3495 = vrcp.pop %v3477
  %v3496 = vrcp.pop %v3480
  %v3497 = vrcp.pop %v3483
  %v3498 = vrcp.pop %v3486
  %v3499 = vrcp.pop %v3489
  %v3500 = vrcp.pop %v3492
  %v3501 = vmul.f32 %v3454, %v3493
  %v3502 = vmul.f32 %v3456, %v3494
  %v3503 = vmul.f32 %v3458, %v3495
  %v3504 = vmul.f32 %v3460, %v3496
  %v3505 = vmul.f32 %v3462, %v3497
  %v3506 = vmul.f32 %v3464, %v3498
  %v3507 = vmul.f32 %v3466, %v3499
  %v3508 = vmul.f32 %v3468, %v3500
  %3509 = vrot.lane.b32.xlu0 %v200, 40
  %v3510 = vpop.permute.xlu0 %3509
  %3511 = vrot.lane.b32.xlu0 %v201, 40
  %v3512 = vpop.permute.xlu0 %3511
  %v3516 = vsel %vm581, %v3501, 0
  %v3519 = vsel %vm581, %v3502, 0
  %3521 = vmatprep.subr.mxu0 0.0
  %3522 = vmatpush1.msra.mxu0 %v3510
  %3523 = vmatprep.subr.mxu0 0.0
  %3524 = vmatpush1.msra.mxu0 %v3512
  %3525 = vmatprep.subr.mxu0 0.0
  %3526 = vmatpush1.msra.mxu0 0.0
  %3527 = vmatprep.subr.mxu0 0.0
  %3528 = vmatpush1.msra.mxu0 0.0
  %3529 = vmatprep.subr.mxu0 0.0
  %3530 = vmatpush1.msra.mxu0 0.0
  %3531 = vmatprep.subr.mxu0 0.0
  %3532 = vmatpush1.msra.mxu0 0.0
  %3533 = vmatprep.subr.mxu0 0.0
  %3534 = vmatpush1.msra.mxu0 0.0
  %3535 = vmatprep.subr.mxu0 0.0
  %3536 = vmatpush1.msra.mxu0 0.0
  %3537 = vmatprep.subr.mxu0 0.0
  %3538 = vmatpush1.msra.mxu0 0.0
  %3539 = vmatprep.subr.mxu0 0.0
  %3540 = vmatpush1.msra.mxu0 0.0
  %3541 = vmatprep.subr.mxu0 0.0
  %3542 = vmatpush1.msra.mxu0 0.0
  %3543 = vmatprep.subr.mxu0 0.0
  %3544 = vmatpush1.msra.mxu0 0.0
  %3545 = vmatprep.subr.mxu0 0.0
  %3546 = vmatpush1.msra.mxu0 0.0
  %3547 = vmatprep.subr.mxu0 0.0
  %3548 = vmatpush1.msra.mxu0 0.0
  %3549 = vmatprep.subr.mxu0 0.0
  %3550 = vmatpush1.msra.mxu0 0.0
  %3551 = vmatprep.subr.mxu0 0.0
  %3552 = vmatpush1.msra.mxu0 0.0
  %3553 = vmatprep.subr.mxu0 0.0
  %3554 = vmatpush1.msra.mxu0 0.0
  %3555 = vmatprep.subr.mxu0 0.0
  %3556 = vmatpush1.msra.mxu0 0.0
  %3557 = vmatprep.subr.mxu0 0.0
  %3558 = vmatpush1.msra.mxu0 0.0
  %3559 = vmatprep.subr.mxu0 0.0
  %3560 = vmatpush1.msra.mxu0 0.0
  %3561 = vmatprep.subr.mxu0 0.0
  %3562 = vmatpush1.msra.mxu0 0.0
  %3563 = vmatprep.subr.mxu0 0.0
  %3564 = vmatpush1.msra.mxu0 0.0
  %3565 = vmatprep.subr.mxu0 0.0
  %3566 = vmatpush1.msra.mxu0 0.0
  %3567 = vmatprep.subr.mxu0 0.0
  %3568 = vmatpush1.msra.mxu0 0.0
  %3569 = vmatprep.subr.mxu0 0.0
  %3570 = vmatpush1.msra.mxu0 0.0
  %3571 = vmatprep.subr.mxu0 0.0
  %3572 = vmatpush1.msra.mxu0 0.0
  %3573 = vmatprep.subr.mxu0 0.0
  %3574 = vmatpush1.msra.mxu0 0.0
  %3575 = vmatprep.subr.mxu0 0.0
  %3576 = vmatpush1.msra.mxu0 0.0
  %3577 = vmatprep.subr.mxu0 0.0
  %3578 = vmatpush1.msra.mxu0 0.0
  %3579 = vmatprep.subr.mxu0 0.0
  %3580 = vmatpush1.msra.mxu0 0.0
  %3581 = vmatprep.subr.mxu0 0.0
  %3582 = vmatpush1.msra.mxu0 0.0
  %3583 = vmatprep.subr.mxu0 0.0
  %3584 = vmatpush1.msra.mxu0 0.0
  %3585 = vmatprep.mubr.f32.mxu0 0.0
  %3586 = vmatmul.mubr.f32.gmra.mrb[0].mxu0 %v3516
  %v3587 = vpop.f32.mrb[0].mxu0
  %v3588 = vadd.f32 0.0, %v3587
  %v3589 = vpop.f32.mrb[0].mxu0
  %3590 = vmatprep.mubr.f32.mxu0 0.0
  %3591 = vmatmul.mubr.f32.gmra.mrb[0].mxu0 %v3519
  %v3592 = vpop.f32.mrb[0].mxu0
  %v3593 = vadd.f32 0.0, %v3592
  %v3594 = vpop.f32.mrb[0].mxu0
  %3595 = vdwg.mxu0
  %3596 = vrot.lane.b32.xlu0 %v202, 40
  %v3597 = vpop.permute.xlu0 %3596
  %3598 = vrot.lane.b32.xlu0 %v203, 40
  %v3599 = vpop.permute.xlu0 %3598
  %v3603 = vsel %vm581, %v3503, 0
  %v3606 = vsel %vm581, %v3504, 0
  %3608 = vmatprep.subr.mxu0 0.0
  %3609 = vmatpush1.msra.mxu0 %v3597
  %3610 = vmatprep.subr.mxu0 0.0
  %3611 = vmatpush1.msra.mxu0 %v3599
  %3612 = vmatprep.subr.mxu0 0.0
  %3613 = vmatpush1.msra.mxu0 0.0
  %3614 = vmatprep.subr.mxu0 0.0
  %3615 = vmatpush1.msra.mxu0 0.0
  %3616 = vmatprep.subr.mxu0 0.0
  %3617 = vmatpush1.msra.mxu0 0.0
  %3618 = vmatprep.subr.mxu0 0.0
  %3619 = vmatpush1.msra.mxu0 0.0
  %3620 = vmatprep.subr.mxu0 0.0
  %3621 = vmatpush1.msra.mxu0 0.0
  %3622 = vmatprep.subr.mxu0 0.0
  %3623 = vmatpush1.msra.mxu0 0.0
  %3624 = vmatprep.subr.mxu0 0.0
  %3625 = vmatpush1.msra.mxu0 0.0
  %3626 = vmatprep.subr.mxu0 0.0
  %3627 = vmatpush1.msra.mxu0 0.0
  %3628 = vmatprep.subr.mxu0 0.0
  %3629 = vmatpush1.msra.mxu0 0.0
  %3630 = vmatprep.subr.mxu0 0.0
  %3631 = vmatpush1.msra.mxu0 0.0
  %3632 = vmatprep.subr.mxu0 0.0
  %3633 = vmatpush1.msra.mxu0 0.0
  %3634 = vmatprep.subr.mxu0 0.0
  %3635 = vmatpush1.msra.mxu0 0.0
  %3636 = vmatprep.subr.mxu0 0.0
  %3637 = vmatpush1.msra.mxu0 0.0
  %3638 = vmatprep.subr.mxu0 0.0
  %3639 = vmatpush1.msra.mxu0 0.0
  %3640 = vmatprep.subr.mxu0 0.0
  %3641 = vmatpush1.msra.mxu0 0.0
  %3642 = vmatprep.subr.mxu0 0.0
  %3643 = vmatpush1.msra.mxu0 0.0
  %3644 = vmatprep.subr.mxu0 0.0
  %3645 = vmatpush1.msra.mxu0 0.0
  %3646 = vmatprep.subr.mxu0 0.0
  %3647 = vmatpush1.msra.mxu0 0.0
  %3648 = vmatprep.subr.mxu0 0.0
  %3649 = vmatpush1.msra.mxu0 0.0
  %3650 = vmatprep.subr.mxu0 0.0
  %3651 = vmatpush1.msra.mxu0 0.0
  %3652 = vmatprep.subr.mxu0 0.0
  %3653 = vmatpush1.msra.mxu0 0.0
  %3654 = vmatprep.subr.mxu0 0.0
  %3655 = vmatpush1.msra.mxu0 0.0
  %3656 = vmatprep.subr.mxu0 0.0
  %3657 = vmatpush1.msra.mxu0 0.0
  %3658 = vmatprep.subr.mxu0 0.0
  %3659 = vmatpush1.msra.mxu0 0.0
  %3660 = vmatprep.subr.mxu0 0.0
  %3661 = vmatpush1.msra.mxu0 0.0
  %3662 = vmatprep.subr.mxu0 0.0
  %3663 = vmatpush1.msra.mxu0 0.0
  %3664 = vmatprep.subr.mxu0 0.0
  %3665 = vmatpush1.msra.mxu0 0.0
  %3666 = vmatprep.subr.mxu0 0.0
  %3667 = vmatpush1.msra.mxu0 0.0
  %3668 = vmatprep.subr.mxu0 0.0
  %3669 = vmatpush1.msra.mxu0 0.0
  %3670 = vmatprep.subr.mxu0 0.0
  %3671 = vmatpush1.msra.mxu0 0.0
  %3672 = vmatprep.mubr.f32.mxu0 0.0
  %3673 = vmatmul.mubr.f32.gmra.mrb[0].mxu0 %v3603
  %v3674 = vpop.f32.mrb[0].mxu0
  %v3675 = vadd.f32 0.0, %v3674
  %v3676 = vpop.f32.mrb[0].mxu0
  %3677 = vmatprep.mubr.f32.mxu0 0.0
  %3678 = vmatmul.mubr.f32.gmra.mrb[0].mxu0 %v3606
  %v3679 = vpop.f32.mrb[0].mxu0
  %v3680 = vadd.f32 0.0, %v3679
  %v3681 = vpop.f32.mrb[0].mxu0
  %3682 = vdwg.mxu0
  %3683 = vrot.lane.b32.xlu0 %v204, 40
  %v3684 = vpop.permute.xlu0 %3683
  %3685 = vrot.lane.b32.xlu0 %v205, 40
  %v3686 = vpop.permute.xlu0 %3685
  %v3690 = vsel %vm581, %v3505, 0
  %v3693 = vsel %vm581, %v3506, 0
  %3695 = vmatprep.subr.mxu0 0.0
  %3696 = vmatpush1.msra.mxu0 %v3684
  %3697 = vmatprep.subr.mxu0 0.0
  %3698 = vmatpush1.msra.mxu0 %v3686
  %3699 = vmatprep.subr.mxu0 0.0
  %3700 = vmatpush1.msra.mxu0 0.0
  %3701 = vmatprep.subr.mxu0 0.0
  %3702 = vmatpush1.msra.mxu0 0.0
  %3703 = vmatprep.subr.mxu0 0.0
  %3704 = vmatpush1.msra.mxu0 0.0
  %3705 = vmatprep.subr.mxu0 0.0
  %3706 = vmatpush1.msra.mxu0 0.0
  %3707 = vmatprep.subr.mxu0 0.0
  %3708 = vmatpush1.msra.mxu0 0.0
  %3709 = vmatprep.subr.mxu0 0.0
  %3710 = vmatpush1.msra.mxu0 0.0
  %3711 = vmatprep.subr.mxu0 0.0
  %3712 = vmatpush1.msra.mxu0 0.0
  %3713 = vmatprep.subr.mxu0 0.0
  %3714 = vmatpush1.msra.mxu0 0.0
  %3715 = vmatprep.subr.mxu0 0.0
  %3716 = vmatpush1.msra.mxu0 0.0
  %3717 = vmatprep.subr.mxu0 0.0
  %3718 = vmatpush1.msra.mxu0 0.0
  %3719 = vmatprep.subr.mxu0 0.0
  %3720 = vmatpush1.msra.mxu0 0.0
  %3721 = vmatprep.subr.mxu0 0.0
  %3722 = vmatpush1.msra.mxu0 0.0
  %3723 = vmatprep.subr.mxu0 0.0
  %3724 = vmatpush1.msra.mxu0 0.0
  %3725 = vmatprep.subr.mxu0 0.0
  %3726 = vmatpush1.msra.mxu0 0.0
  %3727 = vmatprep.subr.mxu0 0.0
  %3728 = vmatpush1.msra.mxu0 0.0
  %3729 = vmatprep.subr.mxu0 0.0
  %3730 = vmatpush1.msra.mxu0 0.0
  %3731 = vmatprep.subr.mxu0 0.0
  %3732 = vmatpush1.msra.mxu0 0.0
  %3733 = vmatprep.subr.mxu0 0.0
  %3734 = vmatpush1.msra.mxu0 0.0
  %3735 = vmatprep.subr.mxu0 0.0
  %3736 = vmatpush1.msra.mxu0 0.0
  %3737 = vmatprep.subr.mxu0 0.0
  %3738 = vmatpush1.msra.mxu0 0.0
  %3739 = vmatprep.subr.mxu0 0.0
  %3740 = vmatpush1.msra.mxu0 0.0
  %3741 = vmatprep.subr.mxu0 0.0
  %3742 = vmatpush1.msra.mxu0 0.0
  %3743 = vmatprep.subr.mxu0 0.0
  %3744 = vmatpush1.msra.mxu0 0.0
  %3745 = vmatprep.subr.mxu0 0.0
  %3746 = vmatpush1.msra.mxu0 0.0
  %3747 = vmatprep.subr.mxu0 0.0
  %3748 = vmatpush1.msra.mxu0 0.0
  %3749 = vmatprep.subr.mxu0 0.0
  %3750 = vmatpush1.msra.mxu0 0.0
  %3751 = vmatprep.subr.mxu0 0.0
  %3752 = vmatpush1.msra.mxu0 0.0
  %3753 = vmatprep.subr.mxu0 0.0
  %3754 = vmatpush1.msra.mxu0 0.0
  %3755 = vmatprep.subr.mxu0 0.0
  %3756 = vmatpush1.msra.mxu0 0.0
  %3757 = vmatprep.subr.mxu0 0.0
  %3758 = vmatpush1.msra.mxu0 0.0
  %3759 = vmatprep.mubr.f32.mxu0 0.0
  %3760 = vmatmul.mubr.f32.gmra.mrb[0].mxu0 %v3690
  %v3761 = vpop.f32.mrb[0].mxu0
  %v3762 = vadd.f32 0.0, %v3761
  %v3763 = vpop.f32.mrb[0].mxu0
  %3764 = vmatprep.mubr.f32.mxu0 0.0
  %3765 = vmatmul.mubr.f32.gmra.mrb[0].mxu0 %v3693
  %v3766 = vpop.f32.mrb[0].mxu0
  %v3767 = vadd.f32 0.0, %v3766
  %v3768 = vpop.f32.mrb[0].mxu0
  %3769 = vdwg.mxu0
  %3770 = vrot.lane.b32.xlu0 %v206, 40
  %v3771 = vpop.permute.xlu0 %3770
  %3772 = vrot.lane.b32.xlu0 %v207, 40
  %v3773 = vpop.permute.xlu0 %3772
  %v3777 = vsel %vm581, %v3507, 0
  %v3780 = vsel %vm581, %v3508, 0
  %3782 = vmatprep.subr.mxu0 0.0
  %3783 = vmatpush1.msra.mxu0 %v3771
  %3784 = vmatprep.subr.mxu0 0.0
  %3785 = vmatpush1.msra.mxu0 %v3773
  %3786 = vmatprep.subr.mxu0 0.0
  %3787 = vmatpush1.msra.mxu0 0.0
  %3788 = vmatprep.subr.mxu0 0.0
  %3789 = vmatpush1.msra.mxu0 0.0
  %3790 = vmatprep.subr.mxu0 0.0
  %3791 = vmatpush1.msra.mxu0 0.0
  %3792 = vmatprep.subr.mxu0 0.0
  %3793 = vmatpush1.msra.mxu0 0.0
  %3794 = vmatprep.subr.mxu0 0.0
  %3795 = vmatpush1.msra.mxu0 0.0
  %3796 = vmatprep.subr.mxu0 0.0
  %3797 = vmatpush1.msra.mxu0 0.0
  %3798 = vmatprep.subr.mxu0 0.0
  %3799 = vmatpush1.msra.mxu0 0.0
  %3800 = vmatprep.subr.mxu0 0.0
  %3801 = vmatpush1.msra.mxu0 0.0
  %3802 = vmatprep.subr.mxu0 0.0
  %3803 = vmatpush1.msra.mxu0 0.0
  %3804 = vmatprep.subr.mxu0 0.0
  %3805 = vmatpush1.msra.mxu0 0.0
  %3806 = vmatprep.subr.mxu0 0.0
  %3807 = vmatpush1.msra.mxu0 0.0
  %3808 = vmatprep.subr.mxu0 0.0
  %3809 = vmatpush1.msra.mxu0 0.0
  %3810 = vmatprep.subr.mxu0 0.0
  %3811 = vmatpush1.msra.mxu0 0.0
  %3812 = vmatprep.subr.mxu0 0.0
  %3813 = vmatpush1.msra.mxu0 0.0
  %3814 = vmatprep.subr.mxu0 0.0
  %3815 = vmatpush1.msra.mxu0 0.0
  %3816 = vmatprep.subr.mxu0 0.0
  %3817 = vmatpush1.msra.mxu0 0.0
  %3818 = vmatprep.subr.mxu0 0.0
  %3819 = vmatpush1.msra.mxu0 0.0
  %3820 = vmatprep.subr.mxu0 0.0
  %3821 = vmatpush1.msra.mxu0 0.0
  %3822 = vmatprep.subr.mxu0 0.0
  %3823 = vmatpush1.msra.mxu0 0.0
  %3824 = vmatprep.subr.mxu0 0.0
  %3825 = vmatpush1.msra.mxu0 0.0
  %3826 = vmatprep.subr.mxu0 0.0
  %3827 = vmatpush1.msra.mxu0 0.0
  %3828 = vmatprep.subr.mxu0 0.0
  %3829 = vmatpush1.msra.mxu0 0.0
  %3830 = vmatprep.subr.mxu0 0.0
  %3831 = vmatpush1.msra.mxu0 0.0
  %3832 = vmatprep.subr.mxu0 0.0
  %3833 = vmatpush1.msra.mxu0 0.0
  %3834 = vmatprep.subr.mxu0 0.0
  %3835 = vmatpush1.msra.mxu0 0.0
  %3836 = vmatprep.subr.mxu0 0.0
  %3837 = vmatpush1.msra.mxu0 0.0
  %3838 = vmatprep.subr.mxu0 0.0
  %3839 = vmatpush1.msra.mxu0 0.0
  %3840 = vmatprep.subr.mxu0 0.0
  %3841 = vmatpush1.msra.mxu0 0.0
  %3842 = vmatprep.subr.mxu0 0.0
  %3843 = vmatpush1.msra.mxu0 0.0
  %3844 = vmatprep.subr.mxu0 0.0
  %3845 = vmatpush1.msra.mxu0 0.0
  %3846 = vmatprep.mubr.f32.mxu0 0.0
  %3847 = vmatmul.mubr.f32.gmra.mrb[0].mxu0 %v3777
  %v3848 = vpop.f32.mrb[0].mxu0
  %v3849 = vadd.f32 0.0, %v3848
  %v3850 = vpop.f32.mrb[0].mxu0
  %3851 = vmatprep.mubr.f32.mxu0 0.0
  %3852 = vmatmul.mubr.f32.gmra.mrb[0].mxu0 %v3780
  %v3853 = vpop.f32.mrb[0].mxu0
  %v3854 = vadd.f32 0.0, %v3853
  %v3855 = vpop.f32.mrb[0].mxu0
  %3856 = vdwg.mxu0
  %3858 = vrot.lane.b32.xlu0 %v31, 32
  %v3859 = vpop.permute.xlu0 %3858
  %v3862 = vsel %vm214, %v3588, 0
  %v3865 = vsel %vm214, %v3593, 0
  %v3868 = vsel %vm214, %v3675, 0
  %v3871 = vsel %vm214, %v3680, 0
  %v3874 = vsel %vm214, %v3762, 0
  %v3877 = vsel %vm214, %v3767, 0
  %v3880 = vsel %vm214, %v3849, 0
  %v3883 = vsel %vm214, %v3854, 0
  %3885 = vmatprep.subr.mxu0 0.0
  %3886 = vmatpush1.msra.mxu0 %v3859
  %3887 = vmatprep.subr.mxu0 0.0
  %3888 = vmatpush1.msra.mxu0 0.0
  %3889 = vmatprep.subr.mxu0 0.0
  %3890 = vmatpush1.msra.mxu0 0.0
  %3891 = vmatprep.subr.mxu0 0.0
  %3892 = vmatpush1.msra.mxu0 0.0
  %3893 = vmatprep.subr.mxu0 0.0
  %3894 = vmatpush1.msra.mxu0 0.0
  %3895 = vmatprep.subr.mxu0 0.0
  %3896 = vmatpush1.msra.mxu0 0.0
  %3897 = vmatprep.subr.mxu0 0.0
  %3898 = vmatpush1.msra.mxu0 0.0
  %3899 = vmatprep.subr.mxu0 0.0
  %3900 = vmatpush1.msra.mxu0 0.0
  %3901 = vmatprep.subr.mxu0 0.0
  %3902 = vmatpush1.msra.mxu0 0.0
  %3903 = vmatprep.subr.mxu0 0.0
  %3904 = vmatpush1.msra.mxu0 0.0
  %3905 = vmatprep.subr.mxu0 0.0
  %3906 = vmatpush1.msra.mxu0 0.0
  %3907 = vmatprep.subr.mxu0 0.0
  %3908 = vmatpush1.msra.mxu0 0.0
  %3909 = vmatprep.subr.mxu0 0.0
  %3910 = vmatpush1.msra.mxu0 0.0
  %3911 = vmatprep.subr.mxu0 0.0
  %3912 = vmatpush1.msra.mxu0 0.0
  %3913 = vmatprep.subr.mxu0 0.0
  %3914 = vmatpush1.msra.mxu0 0.0
  %3915 = vmatprep.subr.mxu0 0.0
  %3916 = vmatpush1.msra.mxu0 0.0
  %3917 = vmatprep.subr.mxu0 0.0
  %3918 = vmatpush1.msra.mxu0 0.0
  %3919 = vmatprep.subr.mxu0 0.0
  %3920 = vmatpush1.msra.mxu0 0.0
  %3921 = vmatprep.subr.mxu0 0.0
  %3922 = vmatpush1.msra.mxu0 0.0
  %3923 = vmatprep.subr.mxu0 0.0
  %3924 = vmatpush1.msra.mxu0 0.0
  %3925 = vmatprep.subr.mxu0 0.0
  %3926 = vmatpush1.msra.mxu0 0.0
  %3927 = vmatprep.subr.mxu0 0.0
  %3928 = vmatpush1.msra.mxu0 0.0
  %3929 = vmatprep.subr.mxu0 0.0
  %3930 = vmatpush1.msra.mxu0 0.0
  %3931 = vmatprep.subr.mxu0 0.0
  %3932 = vmatpush1.msra.mxu0 0.0
  %3933 = vmatprep.subr.mxu0 0.0
  %3934 = vmatpush1.msra.mxu0 0.0
  %3935 = vmatprep.subr.mxu0 0.0
  %3936 = vmatpush1.msra.mxu0 0.0
  %3937 = vmatprep.subr.mxu0 0.0
  %3938 = vmatpush1.msra.mxu0 0.0
  %3939 = vmatprep.subr.mxu0 0.0
  %3940 = vmatpush1.msra.mxu0 0.0
  %3941 = vmatprep.subr.mxu0 0.0
  %3942 = vmatpush1.msra.mxu0 0.0
  %3943 = vmatprep.subr.mxu0 0.0
  %3944 = vmatpush1.msra.mxu0 0.0
  %3945 = vmatprep.subr.mxu0 0.0
  %3946 = vmatpush1.msra.mxu0 0.0
  %3947 = vmatprep.subr.mxu0 0.0
  %3948 = vmatpush1.msra.mxu0 0.0
  %3949 = vmatprep.mubr.f32.mxu0 0.0
  %3950 = vmatmul.mubr.f32.gmra.mrb[0].mxu0 %v3862
  %v3951 = vpop.f32.mrb[0].mxu0
  %v3952 = vadd.f32 0.0, %v3951
  %v3953 = vpop.f32.mrb[0].mxu0
  %3954 = vmatprep.mubr.f32.mxu0 0.0
  %3955 = vmatmul.mubr.f32.gmra.mrb[0].mxu0 %v3865
  %v3956 = vpop.f32.mrb[0].mxu0
  %v3957 = vadd.f32 0.0, %v3956
  %v3958 = vpop.f32.mrb[0].mxu0
  %3959 = vmatprep.mubr.f32.mxu0 0.0
  %3960 = vmatmul.mubr.f32.gmra.mrb[0].mxu0 %v3868
  %v3961 = vpop.f32.mrb[0].mxu0
  %v3962 = vadd.f32 0.0, %v3961
  %v3963 = vpop.f32.mrb[0].mxu0
  %3964 = vmatprep.mubr.f32.mxu0 0.0
  %3965 = vmatmul.mubr.f32.gmra.mrb[0].mxu0 %v3871
  %v3966 = vpop.f32.mrb[0].mxu0
  %v3967 = vadd.f32 0.0, %v3966
  %v3968 = vpop.f32.mrb[0].mxu0
  %3969 = vmatprep.mubr.f32.mxu0 0.0
  %3970 = vmatmul.mubr.f32.gmra.mrb[0].mxu0 %v3874
  %v3971 = vpop.f32.mrb[0].mxu0
  %v3972 = vadd.f32 0.0, %v3971
  %v3973 = vpop.f32.mrb[0].mxu0
  %3974 = vmatprep.mubr.f32.mxu0 0.0
  %3975 = vmatmul.mubr.f32.gmra.mrb[0].mxu0 %v3877
  %v3976 = vpop.f32.mrb[0].mxu0
  %v3977 = vadd.f32 0.0, %v3976
  %v3978 = vpop.f32.mrb[0].mxu0
  %3979 = vmatprep.mubr.f32.mxu0 0.0
  %3980 = vmatmul.mubr.f32.gmra.mrb[0].mxu0 %v3880
  %v3981 = vpop.f32.mrb[0].mxu0
  %v3982 = vadd.f32 0.0, %v3981
  %v3983 = vpop.f32.mrb[0].mxu0
  %3984 = vmatprep.mubr.f32.mxu0 0.0
  %3985 = vmatmul.mubr.f32.gmra.mrb[0].mxu0 %v3883
  %v3986 = vpop.f32.mrb[0].mxu0
  %v3987 = vadd.f32 0.0, %v3986
  %v3988 = vpop.f32.mrb[0].mxu0
  %3989 = vdwg.mxu0
  %v3990 = vadd.f32 %v3041, %v3952
  %v3991 = vadd.f32 %v3042, %v3957
  %v3992 = vadd.f32 %v3043, %v3962
  %v3993 = vadd.f32 %v3044, %v3967
  %v3994 = vadd.f32 %v3045, %v3972
  %v3995 = vadd.f32 %v3046, %v3977
  %v3996 = vadd.f32 %v3047, %v3982
  %v3997 = vadd.f32 %v3048, %v3987
  %v3998 = vlaneseq
  %v3999 = vshrl.u32 %v3998, 7
  %v4000 = vsub.s32 3, %v3999
  %v4001 = vrot.slane %v32, %v4000
  %v4002 = vadd.f32 %v3990, %v4001
  %v4003 = vadd.f32 %v3991, %v4001
  %v4004 = vadd.f32 %v3992, %v4001
  %v4005 = vadd.f32 %v3993, %v4001
  %v4006 = vadd.f32 %v3994, %v4001
  %v4007 = vadd.f32 %v3995, %v4001
  %v4008 = vadd.f32 %v3996, %v4001
  %v4009 = vadd.f32 %v3997, %v4001
  %v4010 = vadd.f32 %v20, %v4002
  %v4011 = vadd.f32 %v21, %v4003
  %v4012 = vadd.f32 %v22, %v4004
  %v4013 = vadd.f32 %v23, %v4005
  %v4014 = vadd.f32 %v24, %v4006
  %v4015 = vadd.f32 %v25, %v4007
  %v4016 = vadd.f32 %v26, %v4008
  %v4017 = vadd.f32 %v27, %v4009
  %v4018 = vsel %vm34, %v4010, 0.0
  %4019 = vadd.xlane.f32.xlu0 %v4018
  %v4020 = vpop.xlane.xlu0 %4019
  %v4021 = vsel %vm34, %v4011, 0.0
  %4022 = vadd.xlane.f32.xlu0 %v4021
  %v4023 = vpop.xlane.xlu0 %4022
  %v4024 = vsel %vm34, %v4012, 0.0
  %4025 = vadd.xlane.f32.xlu0 %v4024
  %v4026 = vpop.xlane.xlu0 %4025
  %v4027 = vsel %vm34, %v4013, 0.0
  %4028 = vadd.xlane.f32.xlu0 %v4027
  %v4029 = vpop.xlane.xlu0 %4028
  %v4030 = vsel %vm34, %v4014, 0.0
  %4031 = vadd.xlane.f32.xlu0 %v4030
  %v4032 = vpop.xlane.xlu0 %4031
  %v4033 = vsel %vm34, %v4015, 0.0
  %4034 = vadd.xlane.f32.xlu0 %v4033
  %v4035 = vpop.xlane.xlu0 %4034
  %v4036 = vsel %vm34, %v4016, 0.0
  %4037 = vadd.xlane.f32.xlu0 %v4036
  %v4038 = vpop.xlane.xlu0 %4037
  %v4039 = vsel %vm34, %v4017, 0.0
  %4040 = vadd.xlane.f32.xlu0 %v4039
  %v4041 = vpop.xlane.xlu0 %4040
  %v4042 = vrcp.pop 32.0
  %v4043 = vmul.f32 %v4020, %v4042
  %v4044 = vmul.f32 %v4023, %v4042
  %v4045 = vmul.f32 %v4026, %v4042
  %v4046 = vmul.f32 %v4029, %v4042
  %v4047 = vmul.f32 %v4032, %v4042
  %v4048 = vmul.f32 %v4035, %v4042
  %v4049 = vmul.f32 %v4038, %v4042
  %v4050 = vmul.f32 %v4041, %v4042
  %v4051 = vsub.f32 %v4010, %v4043
  %v4052 = vsub.f32 %v4011, %v4044
  %v4053 = vsub.f32 %v4012, %v4045
  %v4054 = vsub.f32 %v4013, %v4046
  %v4055 = vsub.f32 %v4014, %v4047
  %v4056 = vsub.f32 %v4015, %v4048
  %v4057 = vsub.f32 %v4016, %v4049
  %v4058 = vsub.f32 %v4017, %v4050
  %v4059 = vmul.f32 %v4051, %v4051
  %v4060 = vmul.f32 %v4052, %v4052
  %v4061 = vmul.f32 %v4053, %v4053
  %v4062 = vmul.f32 %v4054, %v4054
  %v4063 = vmul.f32 %v4055, %v4055
  %v4064 = vmul.f32 %v4056, %v4056
  %v4065 = vmul.f32 %v4057, %v4057
  %v4066 = vmul.f32 %v4058, %v4058
  %v4067 = vsel %vm34, %v4059, 0.0
  %4068 = vadd.xlane.f32.xlu0 %v4067
  %v4069 = vpop.xlane.xlu0 %4068
  %v4070 = vsel %vm34, %v4060, 0.0
  %4071 = vadd.xlane.f32.xlu0 %v4070
  %v4072 = vpop.xlane.xlu0 %4071
  %v4073 = vsel %vm34, %v4061, 0.0
  %4074 = vadd.xlane.f32.xlu0 %v4073
  %v4075 = vpop.xlane.xlu0 %4074
  %v4076 = vsel %vm34, %v4062, 0.0
  %4077 = vadd.xlane.f32.xlu0 %v4076
  %v4078 = vpop.xlane.xlu0 %4077
  %v4079 = vsel %vm34, %v4063, 0.0
  %4080 = vadd.xlane.f32.xlu0 %v4079
  %v4081 = vpop.xlane.xlu0 %4080
  %v4082 = vsel %vm34, %v4064, 0.0
  %4083 = vadd.xlane.f32.xlu0 %v4082
  %v4084 = vpop.xlane.xlu0 %4083
  %v4085 = vsel %vm34, %v4065, 0.0
  %4086 = vadd.xlane.f32.xlu0 %v4085
  %v4087 = vpop.xlane.xlu0 %4086
  %v4088 = vsel %vm34, %v4066, 0.0
  %4089 = vadd.xlane.f32.xlu0 %v4088
  %v4090 = vpop.xlane.xlu0 %4089
  %v4091 = vmul.f32 %v4069, %v4042
  %v4092 = vmul.f32 %v4072, %v4042
  %v4093 = vmul.f32 %v4075, %v4042
  %v4094 = vmul.f32 %v4078, %v4042
  %v4095 = vmul.f32 %v4081, %v4042
  %v4096 = vmul.f32 %v4084, %v4042
  %v4097 = vmul.f32 %v4087, %v4042
  %v4098 = vmul.f32 %v4090, %v4042
  %v4099 = vadd.f32 %v4091, 1e-05
  %v4100 = vadd.f32 %v4092, 1e-05
  %v4101 = vadd.f32 %v4093, 1e-05
  %v4102 = vadd.f32 %v4094, 1e-05
  %v4103 = vadd.f32 %v4095, 1e-05
  %v4104 = vadd.f32 %v4096, 1e-05
  %v4105 = vadd.f32 %v4097, 1e-05
  %v4106 = vadd.f32 %v4098, 1e-05
  %v4107 = vrsqrt.pop %v4099
  %v4108 = vrsqrt.pop %v4100
  %v4109 = vrsqrt.pop %v4101
  %v4110 = vrsqrt.pop %v4102
  %v4111 = vrsqrt.pop %v4103
  %v4112 = vrsqrt.pop %v4104
  %v4113 = vrsqrt.pop %v4105
  %v4114 = vrsqrt.pop %v4106
  %v4115 = vmul.f32 %v4051, %v4107
  %v4116 = vmul.f32 %v4052, %v4108
  %v4117 = vmul.f32 %v4053, %v4109
  %v4118 = vmul.f32 %v4054, %v4110
  %v4119 = vmul.f32 %v4055, %v4111
  %v4120 = vmul.f32 %v4056, %v4112
  %v4121 = vmul.f32 %v4057, %v4113
  %v4122 = vmul.f32 %v4058, %v4114
  %v4123 = vlaneseq
  %v4124 = vshrl.u32 %v4123, 7
  %v4125 = vsub.s32 4, %v4124
  %v4126 = vrot.slane %v32, %v4125
  %v4127 = vmul.f32 %v4115, %v4126
  %v4128 = vmul.f32 %v4116, %v4126
  %v4129 = vmul.f32 %v4117, %v4126
  %v4130 = vmul.f32 %v4118, %v4126
  %v4131 = vmul.f32 %v4119, %v4126
  %v4132 = vmul.f32 %v4120, %v4126
  %v4133 = vmul.f32 %v4121, %v4126
  %v4134 = vmul.f32 %v4122, %v4126
  %v4135 = vlaneseq
  %v4136 = vshrl.u32 %v4135, 7
  %v4137 = vsub.s32 5, %v4136
  %v4138 = vrot.slane %v32, %v4137
  %v4139 = vadd.f32 %v4127, %v4138
  %v4140 = vadd.f32 %v4128, %v4138
  %v4141 = vadd.f32 %v4129, %v4138
  %v4142 = vadd.f32 %v4130, %v4138
  %v4143 = vadd.f32 %v4131, %v4138
  %v4144 = vadd.f32 %v4132, %v4138
  %v4145 = vadd.f32 %v4133, %v4138
  %v4146 = vadd.f32 %v4134, %v4138
  %v4147 = vld [vmem:[%s2] sm:$0xff]
  %v4148 = vld [vmem:[%s2 + $0x8] sm:$0xff]
  %v4149 = vld [vmem:[%s2 + $0x10] sm:$0xff]
  %v4150 = vld [vmem:[%s2 + $0x18] sm:$0xff]
  %v4151 = vlaneseq
  %v4152 = vshrl.u32 %v4151, 7
  %v4153 = vsub.s32 6, %v4152
  %v4154 = vrot.slane %v32, %v4153
  %v4156 = vsel %vm34, %v4139, 0
  %v4159 = vsel %vm34, %v4140, 0
  %v4162 = vsel %vm34, %v4141, 0
  %v4165 = vsel %vm34, %v4142, 0
  %v4168 = vsel %vm34, %v4143, 0
  %v4171 = vsel %vm34, %v4144, 0
  %v4174 = vsel %vm34, %v4145, 0
  %v4177 = vsel %vm34, %v4146, 0
  %4179 = vmatprep.subr.mxu0 0.0
  %4180 = vmatpush1.msra.mxu0 %v4147
  %4181 = vmatprep.subr.mxu0 0.0
  %4182 = vmatpush1.msra.mxu0 %v4148
  %4183 = vmatprep.subr.mxu0 0.0
  %4184 = vmatpush1.msra.mxu0 %v4149
  %4185 = vmatprep.subr.mxu0 0.0
  %4186 = vmatpush1.msra.mxu0 %v4150
  %4187 = vmatprep.subr.mxu0 0.0
  %4188 = vmatpush1.msra.mxu0 0.0
  %4189 = vmatprep.subr.mxu0 0.0
  %4190 = vmatpush1.msra.mxu0 0.0
  %4191 = vmatprep.subr.mxu0 0.0
  %4192 = vmatpush1.msra.mxu0 0.0
  %4193 = vmatprep.subr.mxu0 0.0
  %4194 = vmatpush1.msra.mxu0 0.0
  %4195 = vmatprep.subr.mxu0 0.0
  %4196 = vmatpush1.msra.mxu0 0.0
  %4197 = vmatprep.subr.mxu0 0.0
  %4198 = vmatpush1.msra.mxu0 0.0
  %4199 = vmatprep.subr.mxu0 0.0
  %4200 = vmatpush1.msra.mxu0 0.0
  %4201 = vmatprep.subr.mxu0 0.0
  %4202 = vmatpush1.msra.mxu0 0.0
  %4203 = vmatprep.subr.mxu0 0.0
  %4204 = vmatpush1.msra.mxu0 0.0
  %4205 = vmatprep.subr.mxu0 0.0
  %4206 = vmatpush1.msra.mxu0 0.0
  %4207 = vmatprep.subr.mxu0 0.0
  %4208 = vmatpush1.msra.mxu0 0.0
  %4209 = vmatprep.subr.mxu0 0.0
  %4210 = vmatpush1.msra.mxu0 0.0
  %4211 = vmatprep.subr.mxu0 0.0
  %4212 = vmatpush1.msra.mxu0 0.0
  %4213 = vmatprep.subr.mxu0 0.0
  %4214 = vmatpush1.msra.mxu0 0.0
  %4215 = vmatprep.subr.mxu0 0.0
  %4216 = vmatpush1.msra.mxu0 0.0
  %4217 = vmatprep.subr.mxu0 0.0
  %4218 = vmatpush1.msra.mxu0 0.0
  %4219 = vmatprep.subr.mxu0 0.0
  %4220 = vmatpush1.msra.mxu0 0.0
  %4221 = vmatprep.subr.mxu0 0.0
  %4222 = vmatpush1.msra.mxu0 0.0
  %4223 = vmatprep.subr.mxu0 0.0
  %4224 = vmatpush1.msra.mxu0 0.0
  %4225 = vmatprep.subr.mxu0 0.0
  %4226 = vmatpush1.msra.mxu0 0.0
  %4227 = vmatprep.subr.mxu0 0.0
  %4228 = vmatpush1.msra.mxu0 0.0
  %4229 = vmatprep.subr.mxu0 0.0
  %4230 = vmatpush1.msra.mxu0 0.0
  %4231 = vmatprep.subr.mxu0 0.0
  %4232 = vmatpush1.msra.mxu0 0.0
  %4233 = vmatprep.subr.mxu0 0.0
  %4234 = vmatpush1.msra.mxu0 0.0
  %4235 = vmatprep.subr.mxu0 0.0
  %4236 = vmatpush1.msra.mxu0 0.0
  %4237 = vmatprep.subr.mxu0 0.0
  %4238 = vmatpush1.msra.mxu0 0.0
  %4239 = vmatprep.subr.mxu0 0.0
  %4240 = vmatpush1.msra.mxu0 0.0
  %4241 = vmatprep.subr.mxu0 0.0
  %4242 = vmatpush1.msra.mxu0 0.0
  %4243 = vmatprep.mubr.f32.mxu0 0.0
  %4244 = vmatmul.mubr.f32.gmra.mrb[0].mxu0 %v4156
  %v4245 = vpop.f32.mrb[0].mxu0
  %v4246 = vadd.f32 %v4154, %v4245
  %v4247 = vpop.f32.mrb[0].mxu0
  %4248 = vmatprep.mubr.f32.mxu0 0.0
  %4249 = vmatmul.mubr.f32.gmra.mrb[0].mxu0 %v4159
  %v4250 = vpop.f32.mrb[0].mxu0
  %v4251 = vadd.f32 %v4154, %v4250
  %v4252 = vpop.f32.mrb[0].mxu0
  %4253 = vmatprep.mubr.f32.mxu0 0.0
  %4254 = vmatmul.mubr.f32.gmra.mrb[0].mxu0 %v4162
  %v4255 = vpop.f32.mrb[0].mxu0
  %v4256 = vadd.f32 %v4154, %v4255
  %v4257 = vpop.f32.mrb[0].mxu0
  %4258 = vmatprep.mubr.f32.mxu0 0.0
  %4259 = vmatmul.mubr.f32.gmra.mrb[0].mxu0 %v4165
  %v4260 = vpop.f32.mrb[0].mxu0
  %v4261 = vadd.f32 %v4154, %v4260
  %v4262 = vpop.f32.mrb[0].mxu0
  %4263 = vmatprep.mubr.f32.mxu0 0.0
  %4264 = vmatmul.mubr.f32.gmra.mrb[0].mxu0 %v4168
  %v4265 = vpop.f32.mrb[0].mxu0
  %v4266 = vadd.f32 %v4154, %v4265
  %v4267 = vpop.f32.mrb[0].mxu0
  %4268 = vmatprep.mubr.f32.mxu0 0.0
  %4269 = vmatmul.mubr.f32.gmra.mrb[0].mxu0 %v4171
  %v4270 = vpop.f32.mrb[0].mxu0
  %v4271 = vadd.f32 %v4154, %v4270
  %v4272 = vpop.f32.mrb[0].mxu0
  %4273 = vmatprep.mubr.f32.mxu0 0.0
  %4274 = vmatmul.mubr.f32.gmra.mrb[0].mxu0 %v4174
  %v4275 = vpop.f32.mrb[0].mxu0
  %v4276 = vadd.f32 %v4154, %v4275
  %v4277 = vpop.f32.mrb[0].mxu0
  %4278 = vmatprep.mubr.f32.mxu0 0.0
  %4279 = vmatmul.mubr.f32.gmra.mrb[0].mxu0 %v4177
  %v4280 = vpop.f32.mrb[0].mxu0
  %v4281 = vadd.f32 %v4154, %v4280
  %v4282 = vpop.f32.mrb[0].mxu0
  %4283 = vdwg.mxu0
  %v4284 = vmul.f32 %v4246, %v4246
  %v4285 = vmul.f32 %v4251, %v4251
  %v4286 = vmul.f32 %v4256, %v4256
  %v4287 = vmul.f32 %v4261, %v4261
  %v4288 = vmul.f32 %v4266, %v4266
  %v4289 = vmul.f32 %v4271, %v4271
  %v4290 = vmul.f32 %v4276, %v4276
  %v4291 = vmul.f32 %v4281, %v4281
  %v4292 = vmul.f32 %v4246, %v4284
  %v4293 = vmul.f32 %v4251, %v4285
  %v4294 = vmul.f32 %v4256, %v4286
  %v4295 = vmul.f32 %v4261, %v4287
  %v4296 = vmul.f32 %v4266, %v4288
  %v4297 = vmul.f32 %v4271, %v4289
  %v4298 = vmul.f32 %v4276, %v4290
  %v4299 = vmul.f32 %v4281, %v4291
  %v4300 = vmul.f32 %v4292, 0.044715
  %v4301 = vmul.f32 %v4293, 0.044715
  %v4302 = vmul.f32 %v4294, 0.044715
  %v4303 = vmul.f32 %v4295, 0.044715
  %v4304 = vmul.f32 %v4296, 0.044715
  %v4305 = vmul.f32 %v4297, 0.044715
  %v4306 = vmul.f32 %v4298, 0.044715
  %v4307 = vmul.f32 %v4299, 0.044715
  %v4308 = vadd.f32 %v4246, %v4300
  %v4309 = vadd.f32 %v4251, %v4301
  %v4310 = vadd.f32 %v4256, %v4302
  %v4311 = vadd.f32 %v4261, %v4303
  %v4312 = vadd.f32 %v4266, %v4304
  %v4313 = vadd.f32 %v4271, %v4305
  %v4314 = vadd.f32 %v4276, %v4306
  %v4315 = vadd.f32 %v4281, %v4307
  %v4316 = vmul.f32 %v4308, 0.7978846
  %v4317 = vmul.f32 %v4309, 0.7978846
  %v4318 = vmul.f32 %v4310, 0.7978846
  %v4319 = vmul.f32 %v4311, 0.7978846
  %v4320 = vmul.f32 %v4312, 0.7978846
  %v4321 = vmul.f32 %v4313, 0.7978846
  %v4322 = vmul.f32 %v4314, 0.7978846
  %v4323 = vmul.f32 %v4315, 0.7978846
  %v4324 = vtanh.pop %v4316
  %v4325 = vtanh.pop %v4317
  %v4326 = vtanh.pop %v4318
  %v4327 = vtanh.pop %v4319
  %v4328 = vtanh.pop %v4320
  %v4329 = vtanh.pop %v4321
  %v4330 = vtanh.pop %v4322
  %v4331 = vtanh.pop %v4323
  %v4332 = vadd.f32 %v4324, 1.0
  %v4333 = vadd.f32 %v4325, 1.0
  %v4334 = vadd.f32 %v4326, 1.0
  %v4335 = vadd.f32 %v4327, 1.0
  %v4336 = vadd.f32 %v4328, 1.0
  %v4337 = vadd.f32 %v4329, 1.0
  %v4338 = vadd.f32 %v4330, 1.0
  %v4339 = vadd.f32 %v4331, 1.0
  %v4340 = vmul.f32 %v4332, 0.5
  %v4341 = vmul.f32 %v4333, 0.5
  %v4342 = vmul.f32 %v4334, 0.5
  %v4343 = vmul.f32 %v4335, 0.5
  %v4344 = vmul.f32 %v4336, 0.5
  %v4345 = vmul.f32 %v4337, 0.5
  %v4346 = vmul.f32 %v4338, 0.5
  %v4347 = vmul.f32 %v4339, 0.5
  %v4348 = vmul.f32 %v4246, %v4340
  %v4349 = vmul.f32 %v4251, %v4341
  %v4350 = vmul.f32 %v4256, %v4342
  %v4351 = vmul.f32 %v4261, %v4343
  %v4352 = vmul.f32 %v4266, %v4344
  %v4353 = vmul.f32 %v4271, %v4345
  %v4354 = vmul.f32 %v4276, %v4346
  %v4355 = vmul.f32 %v4281, %v4347
  %v4356 = vld [vmem:[%s3] sm:$0xff]
  %v4357 = vld [vmem:[%s3 + $0x8] sm:$0xff]
  %v4358 = vld [vmem:[%s3 + $0x10] sm:$0xff]
  %v4359 = vld [vmem:[%s3 + $0x18] sm:$0xff]
  %v4360 = vld [vmem:[%s3 + $0x20] sm:$0xff]
  %v4361 = vld [vmem:[%s3 + $0x28] sm:$0xff]
  %v4362 = vld [vmem:[%s3 + $0x30] sm:$0xff]
  %v4363 = vld [vmem:[%s3 + $0x38] sm:$0xff]
  %v4364 = vlaneseq
  %v4365 = vshrl.u32 %v4364, 7
  %v4366 = vsub.s32 7, %v4365
  %v4367 = vrot.slane %v32, %v4366
  %vm4368 = vcmask 523264
  %v4370 = vsel %vm4368, %v4348, 0
  %v4373 = vsel %vm4368, %v4349, 0
  %v4376 = vsel %vm4368, %v4350, 0
  %v4379 = vsel %vm4368, %v4351, 0
  %v4382 = vsel %vm4368, %v4352, 0
  %v4385 = vsel %vm4368, %v4353, 0
  %v4388 = vsel %vm4368, %v4354, 0
  %v4391 = vsel %vm4368, %v4355, 0
  %4393 = vmatprep.subr.mxu0 0.0
  %4394 = vmatpush1.msra.mxu0 %v4356
  %4395 = vmatprep.subr.mxu0 0.0
  %4396 = vmatpush1.msra.mxu0 %v4357
  %4397 = vmatprep.subr.mxu0 0.0
  %4398 = vmatpush1.msra.mxu0 %v4358
  %4399 = vmatprep.subr.mxu0 0.0
  %4400 = vmatpush1.msra.mxu0 %v4359
  %4401 = vmatprep.subr.mxu0 0.0
  %4402 = vmatpush1.msra.mxu0 %v4360
  %4403 = vmatprep.subr.mxu0 0.0
  %4404 = vmatpush1.msra.mxu0 %v4361
  %4405 = vmatprep.subr.mxu0 0.0
  %4406 = vmatpush1.msra.mxu0 %v4362
  %4407 = vmatprep.subr.mxu0 0.0
  %4408 = vmatpush1.msra.mxu0 %v4363
  %4409 = vmatprep.subr.mxu0 0.0
  %4410 = vmatpush1.msra.mxu0 0.0
  %4411 = vmatprep.subr.mxu0 0.0
  %4412 = vmatpush1.msra.mxu0 0.0
  %4413 = vmatprep.subr.mxu0 0.0
  %4414 = vmatpush1.msra.mxu0 0.0
  %4415 = vmatprep.subr.mxu0 0.0
  %4416 = vmatpush1.msra.mxu0 0.0
  %4417 = vmatprep.subr.mxu0 0.0
  %4418 = vmatpush1.msra.mxu0 0.0
  %4419 = vmatprep.subr.mxu0 0.0
  %4420 = vmatpush1.msra.mxu0 0.0
  %4421 = vmatprep.subr.mxu0 0.0
  %4422 = vmatpush1.msra.mxu0 0.0
  %4423 = vmatprep.subr.mxu0 0.0
  %4424 = vmatpush1.msra.mxu0 0.0
  %4425 = vmatprep.subr.mxu0 0.0
  %4426 = vmatpush1.msra.mxu0 0.0
  %4427 = vmatprep.subr.mxu0 0.0
  %4428 = vmatpush1.msra.mxu0 0.0
  %4429 = vmatprep.subr.mxu0 0.0
  %4430 = vmatpush1.msra.mxu0 0.0
  %4431 = vmatprep.subr.mxu0 0.0
  %4432 = vmatpush1.msra.mxu0 0.0
  %4433 = vmatprep.subr.mxu0 0.0
  %4434 = vmatpush1.msra.mxu0 0.0
  %4435 = vmatprep.subr.mxu0 0.0
  %4436 = vmatpush1.msra.mxu0 0.0
  %4437 = vmatprep.subr.mxu0 0.0
  %4438 = vmatpush1.msra.mxu0 0.0
  %4439 = vmatprep.subr.mxu0 0.0
  %4440 = vmatpush1.msra.mxu0 0.0
  %4441 = vmatprep.subr.mxu0 0.0
  %4442 = vmatpush1.msra.mxu0 0.0
  %4443 = vmatprep.subr.mxu0 0.0
  %4444 = vmatpush1.msra.mxu0 0.0
  %4445 = vmatprep.subr.mxu0 0.0
  %4446 = vmatpush1.msra.mxu0 0.0
  %4447 = vmatprep.subr.mxu0 0.0
  %4448 = vmatpush1.msra.mxu0 0.0
  %4449 = vmatprep.subr.mxu0 0.0
  %4450 = vmatpush1.msra.mxu0 0.0
  %4451 = vmatprep.subr.mxu0 0.0
  %4452 = vmatpush1.msra.mxu0 0.0
  %4453 = vmatprep.subr.mxu0 0.0
  %4454 = vmatpush1.msra.mxu0 0.0
  %4455 = vmatprep.subr.mxu0 0.0
  %4456 = vmatpush1.msra.mxu0 0.0
  %4457 = vmatprep.mubr.f32.mxu0 0.0
  %4458 = vmatmul.mubr.f32.gmra.mrb[0].mxu0 %v4370
  %v4459 = vpop.f32.mrb[0].mxu0
  %v4460 = vadd.f32 %v4367, %v4459
  %v4461 = vpop.f32.mrb[0].mxu0
  %4462 = vmatprep.mubr.f32.mxu0 0.0
  %4463 = vmatmul.mubr.f32.gmra.mrb[0].mxu0 %v4373
  %v4464 = vpop.f32.mrb[0].mxu0
  %v4465 = vpop.f32.mrb[0].mxu0
  %4466 = vmatprep.mubr.f32.mxu0 0.0
  %4467 = vmatmul.mubr.f32.gmra.mrb[0].mxu0 %v4376
  %v4468 = vpop.f32.mrb[0].mxu0
  %v4469 = vadd.f32 %v4367, %v4468
  %v4470 = vpop.f32.mrb[0].mxu0
  %4471 = vmatprep.mubr.f32.mxu0 0.0
  %4472 = vmatmul.mubr.f32.gmra.mrb[0].mxu0 %v4379
  %v4473 = vpop.f32.mrb[0].mxu0
  %v4474 = vpop.f32.mrb[0].mxu0
  %4475 = vmatprep.mubr.f32.mxu0 0.0
  %4476 = vmatmul.mubr.f32.gmra.mrb[0].mxu0 %v4382
  %v4477 = vpop.f32.mrb[0].mxu0
  %v4478 = vadd.f32 %v4367, %v4477
  %v4479 = vpop.f32.mrb[0].mxu0
  %4480 = vmatprep.mubr.f32.mxu0 0.0
  %4481 = vmatmul.mubr.f32.gmra.mrb[0].mxu0 %v4385
  %v4482 = vpop.f32.mrb[0].mxu0
  %v4483 = vpop.f32.mrb[0].mxu0
  %4484 = vmatprep.mubr.f32.mxu0 0.0
  %4485 = vmatmul.mubr.f32.gmra.mrb[0].mxu0 %v4388
  %v4486 = vpop.f32.mrb[0].mxu0
  %v4487 = vadd.f32 %v4367, %v4486
  %v4488 = vpop.f32.mrb[0].mxu0
  %4489 = vmatprep.mubr.f32.mxu0 0.0
  %4490 = vmatmul.mubr.f32.gmra.mrb[0].mxu0 %v4391
  %v4491 = vpop.f32.mrb[0].mxu0
  %v4492 = vpop.f32.mrb[0].mxu0
  %4493 = vdwg.mxu0
  %v4494 = vadd.f32 %v4139, %v4460
  %v4495 = vadd.f32 %v4141, %v4469
  %v4496 = vadd.f32 %v4143, %v4478
  %v4497 = vadd.f32 %v4145, %v4487
  %v4498 = vsel %vm34, %v4494, 0.0
  %4499 = vadd.xlane.f32.xlu0 %v4498
  %v4500 = vpop.xlane.xlu0 %4499
  %v4501 = vsel %vm34, %v4495, 0.0
  %4502 = vadd.xlane.f32.xlu0 %v4501
  %v4503 = vpop.xlane.xlu0 %4502
  %v4504 = vsel %vm34, %v4496, 0.0
  %4505 = vadd.xlane.f32.xlu0 %v4504
  %v4506 = vpop.xlane.xlu0 %4505
  %v4507 = vsel %vm34, %v4497, 0.0
  %4508 = vadd.xlane.f32.xlu0 %v4507
  %v4509 = vpop.xlane.xlu0 %4508
  %v4510 = vmul.f32 %v4500, %v4042
  %v4511 = vmul.f32 %v4503, %v4042
  %v4512 = vmul.f32 %v4506, %v4042
  %v4513 = vmul.f32 %v4509, %v4042
  %v4514 = vsub.f32 %v4494, %v4510
  %v4515 = vsub.f32 %v4495, %v4511
  %v4516 = vsub.f32 %v4496, %v4512
  %v4517 = vsub.f32 %v4497, %v4513
  %v4518 = vmul.f32 %v4514, %v4514
  %v4519 = vmul.f32 %v4515, %v4515
  %v4520 = vmul.f32 %v4516, %v4516
  %v4521 = vmul.f32 %v4517, %v4517
  %v4522 = vsel %vm34, %v4518, 0.0
  %4523 = vadd.xlane.f32.xlu0 %v4522
  %v4524 = vpop.xlane.xlu0 %4523
  %v4525 = vsel %vm34, %v4519, 0.0
  %4526 = vadd.xlane.f32.xlu0 %v4525
  %v4527 = vpop.xlane.xlu0 %4526
  %v4528 = vsel %vm34, %v4520, 0.0
  %4529 = vadd.xlane.f32.xlu0 %v4528
  %v4530 = vpop.xlane.xlu0 %4529
  %v4531 = vsel %vm34, %v4521, 0.0
  %4532 = vadd.xlane.f32.xlu0 %v4531
  %v4533 = vpop.xlane.xlu0 %4532
  %v4534 = vmul.f32 %v4524, %v4042
  %v4535 = vmul.f32 %v4527, %v4042
  %v4536 = vmul.f32 %v4530, %v4042
  %v4537 = vmul.f32 %v4533, %v4042
  %v4538 = vadd.f32 %v4534, 1e-05
  %v4539 = vadd.f32 %v4535, 1e-05
  %v4540 = vadd.f32 %v4536, 1e-05
  %v4541 = vadd.f32 %v4537, 1e-05
  %v4542 = vrsqrt.pop %v4538
  %v4543 = vrsqrt.pop %v4539
  %v4544 = vrsqrt.pop %v4540
  %v4545 = vrsqrt.pop %v4541
  %v4546 = vmul.f32 %v4514, %v4542
  %v4547 = vmul.f32 %v4515, %v4543
  %v4548 = vmul.f32 %v4516, %v4544
  %v4549 = vmul.f32 %v4517, %v4545
  %v4550 = vlaneseq
  %v4551 = vshrl.u32 %v4550, 7
  %v4552 = vsub.s32 0, %v4551
  %v4553 = vrot.slane %v33, %v4552
  %v4554 = vmul.f32 %v4546, %v4553
  %v4555 = vmul.f32 %v4547, %v4553
  %v4556 = vmul.f32 %v4548, %v4553
  %v4557 = vmul.f32 %v4549, %v4553
  %v4558 = vlaneseq
  %v4559 = vshrl.u32 %v4558, 7
  %v4560 = vsub.s32 1, %v4559
  %v4561 = vrot.slane %v33, %v4560
  %v4562 = vadd.f32 %v4554, %v4561
  %v4563 = vadd.f32 %v4555, %v4561
  %v4564 = vadd.f32 %v4556, %v4561
  %v4565 = vadd.f32 %v4557, %v4561
  %v4566 = vlaneseq
  %v4567 = vshrl.u32 %v4566, 7
  %v4568 = vsub.s32 2, %v4567
  %v4569 = vrot.slane %v33, %v4568
  %v4570 = vmul.f32 %v4562, %v4569
  %v4571 = vmul.f32 %v4563, %v4569
  %v4572 = vmul.f32 %v4564, %v4569
  %v4573 = vmul.f32 %v4565, %v4569
  %v4578 = vrot.slane %v4571, 7
  %vm4579 = vcmask 1041409
  %v4580 = vsel %vm4579, %v4578, %v4570
  %v4581 = vrot.slane %v4572, 6
  %vm4582 = vcmask 1042434
  %v4583 = vsel %vm4582, %v4581, %v4580
  %v4584 = vrot.slane %v4573, 5
  %vm4585 = vcmask 1043459
  %v4586 = vsel %vm4585, %v4584, %v4583
  %vm4588 = vcmask 257024
  %v4589 = vsel %vm4588, %v4586, 0.0
  %4590 = vadd.xlane.f32.xlu0 %v4589
  %v4591 = vpop.xlane.xlu0 %4590
  %v4592 = vlaneseq
  %v4593 = vshrl.u32 %v4592, 7
  %v4594 = vsub.s32 3, %v4593
  %v4595 = vrot.slane %v33, %v4594
  %v4596 = vadd.f32 %v4591, %v4595
  %vm4597 = vcmask 3072
  %4598 = vst.msk [vmem:[%s5] sm:$0xf] %vm4597, %v4596
  // Predicated region
  $region22: #{cl_concat_forward.1} parent=0 // pred_check
    _
  $region23: #{cl_concat_forward.1} parent=0 // pred_check_branch
    %4600 = sbr.rel (0) target = $region25
  $region24: #{cl_concat_forward.1} parent=0 // pred_region
    _
  $region25: #{cl_concat_forward.1} parent=0 // pred_fallthru
    _
  // Predicated region
  $region26: #{cl_concat_forward.1} parent=0 // pred_check
    _
  $region27: #{cl_concat_forward.1} parent=0 // pred_check_branch
    %4602 = sbr.rel (0) target = $region29
  $region28: #{cl_concat_forward.1} parent=0 // pred_region
    _
  $region29: #{cl_concat_forward.1} parent=0 // pred_fallthru
    _

</llo_original>
